<compile_context>
chip_gen: v5e
topology: v5e:2x2
jax: 0.10.0
libtpu: 0.0.40
codegen_flags: <defaults>
</compile_context>

<pallas_src>
import functools

import jax
import jax.numpy as jnp
from jax.experimental import pallas as pl
from jax.experimental.pallas import tpu as pltpu


def _round_up(v, m):
    return ((v + m - 1) // m) * m


def _pick_strip_rows(H):
    """Rows of output computed per grid step (>=2 strips when H allows)."""
    for th in (32, 16, 8):
        if H % th == 0 and H > th:
            return th
    return H


def _basic_block_kernel(xp_ref, w1_ref, w2_ref, b1_ref, b2_ref, out_ref,
                        col_ref, h_ref, *, TH, W, Cp):
    """Fused conv1+bn1+relu -> conv2+bn2+residual+relu for one (batch, row-strip).

    xp_ref  : (1, H+4, W+2, Cp) bf16   x padded by 2 rows / 1 col / channels->Cp
    w1_ref  : (9*Cp, Cp) bf16          conv1 weights, BN1 scale folded in
    w2_ref  : (9*Cp, Cp) bf16          conv2 weights, BN2 scale folded in
    b1_ref  : (1, Cp) f32              folded BN1 bias
    b2_ref  : (1, Cp) f32              folded BN2 bias
    out_ref : (1, TH, W, Cp) f32
    col_ref : ((TH+2)*W, 9*Cp) bf16    im2col scratch (reused by both convs)
    h_ref   : (TH+2, W+2, Cp) bf16     intermediate activation with conv2 halo
    """
    s = pl.program_id(1)
    TH2 = TH + 2
    r0 = pl.multiple_of(s * TH, TH)           # start row of this strip in padded x

    # ---------------- conv1 (+ folded bn1) + relu -> h (with halo rows) -----
    for ky in range(3):                       # static unroll over the 9 taps
        for kx in range(3):
            t = ky * 3 + kx
            patch = xp_ref[0, pl.ds(r0 + ky, TH2), kx:kx + W, :]   # (TH2, W, Cp)
            col_ref[:, t * Cp:(t + 1) * Cp] = patch.reshape(TH2 * W, Cp)
    y1 = jnp.dot(col_ref[...], w1_ref[...],
                 preferred_element_type=jnp.float32)               # (TH2*W, Cp)
    h = jnp.maximum(y1 + b1_ref[...], 0.0).astype(h_ref.dtype)
    h_ref[:, 1:W + 1, :] = h.reshape(TH2, W, Cp)

    # conv2 zero padding: width halo columns are always outside the image.
    zcol = jnp.zeros((TH2, Cp), h_ref.dtype)
    h_ref[:, 0, :] = zcol
    h_ref[:, W + 1, :] = zcol

    # Row halos are outside the image only for the first / last strip.
    @pl.when(s == 0)
    def _():
        h_ref[0, :, :] = jnp.zeros((W + 2, Cp), h_ref.dtype)

    @pl.when(s == pl.num_programs(1) - 1)
    def _():
        h_ref[TH + 1, :, :] = jnp.zeros((W + 2, Cp), h_ref.dtype)

    # ---------------- conv2 (+ folded bn2) + residual + relu -> out ---------
    M2 = TH * W
    for ky in range(3):
        for kx in range(3):
            t = ky * 3 + kx
            patch = h_ref[ky:ky + TH, kx:kx + W, :]                # (TH, W, Cp)
            col_ref[0:M2, t * Cp:(t + 1) * Cp] = patch.reshape(M2, Cp)
    y2 = jnp.dot(col_ref[0:M2, :], w2_ref[...],
                 preferred_element_type=jnp.float32)               # (M2, Cp)
    res = xp_ref[0, pl.ds(r0 + 2, TH), 1:W + 1, :].reshape(M2, Cp).astype(jnp.float32)
    o = jnp.maximum(y2 + b2_ref[...] + res, 0.0)
    out_ref[0] = o.reshape(TH, W, Cp).astype(out_ref.dtype)


def _basic_block_pallas(xp, w1k, w2k, b1k, b2k, *, N, H, W, Cp, TH):
    S = H // TH
    kernel = functools.partial(_basic_block_kernel, TH=TH, W=W, Cp=Cp)
    return pl.pallas_call(
        kernel,
        out_shape=jax.ShapeDtypeStruct((N, H, W, Cp), jnp.float32),
        grid=(N, S),
        in_specs=[
            # full padded image per batch element; block index constant across
            # the strip axis so it is fetched once per batch element.
            pl.BlockSpec((1, H + 4, W + 2, Cp), lambda n, s: (n, 0, 0, 0)),
            pl.BlockSpec((9 * Cp, Cp), lambda n, s: (0, 0)),
            pl.BlockSpec((9 * Cp, Cp), lambda n, s: (0, 0)),
            pl.BlockSpec((1, Cp), lambda n, s: (0, 0)),
            pl.BlockSpec((1, Cp), lambda n, s: (0, 0)),
        ],
        out_specs=pl.BlockSpec((1, TH, W, Cp), lambda n, s: (n, s, 0, 0)),
        scratch_shapes=[
            pltpu.VMEM(((TH + 2) * W, 9 * Cp), jnp.bfloat16),   # im2col buffer
            pltpu.VMEM((TH + 2, W + 2, Cp), jnp.bfloat16),      # intermediate h
        ],
        compiler_params=pltpu.CompilerParams(
            dimension_semantics=("parallel", "parallel"),
            vmem_limit_bytes=32 * 1024 * 1024,
        ),
    )(xp, w1k, w2k, b1k, b2k)


class BasicBlockPallas:
    """Pallas implementation of the PyTorch BasicBlock (stride=1, no downsample)."""

    def __init__(self, inplanes, planes, key):
        assert inplanes == planes, "no-downsample BasicBlock needs inplanes == planes"
        C = planes
        ks = jax.random.split(key, 10)
        eps = 1e-5

        # conv weights, PyTorch shape (Cout, Cin, 3, 3) -> HWIO (3, 3, Cin, Cout)
        w1 = jax.random.normal(ks[0], (C, C, 3, 3), jnp.float32) * 0.1
        w2 = jax.random.normal(ks[1], (C, C, 3, 3), jnp.float32) * 0.1
        w1_hwio = jnp.transpose(w1, (2, 3, 1, 0))
        w2_hwio = jnp.transpose(w2, (2, 3, 1, 0))

        # BatchNorm (inference) params, folded to per-channel scale / bias.
        g1 = 1.0 + 0.1 * jax.random.normal(ks[2], (C,), jnp.float32)
        b1 = 0.1 * jax.random.normal(ks[3], (C,), jnp.float32)
        m1 = 0.1 * jax.random.normal(ks[4], (C,), jnp.float32)
        v1 = jnp.abs(jax.random.normal(ks[5], (C,), jnp.float32)) + 0.5
        g2 = 1.0 + 0.1 * jax.random.normal(ks[6], (C,), jnp.float32)
        b2 = 0.1 * jax.random.normal(ks[7], (C,), jnp.float32)
        m2 = 0.1 * jax.random.normal(ks[8], (C,), jnp.float32)
        v2 = jnp.abs(jax.random.normal(ks[9], (C,), jnp.float32)) + 0.5
        scale1 = g1 / jnp.sqrt(v1 + eps)
        bias1 = b1 - m1 * scale1
        scale2 = g2 / jnp.sqrt(v2 + eps)
        bias2 = b2 - m2 * scale2

        # float32 copies for the pure-JAX reference check
        self.ref_w1, self.ref_scale1, self.ref_bias1 = w1_hwio, scale1, bias1
        self.ref_w2, self.ref_scale2, self.ref_bias2 = w2_hwio, scale2, bias2

        # --- kernel-side parameters: fold BN scale into weights, pad channels
        #     to a lane-dense multiple of 128, reshape to (9*Cp, Cp), cast bf16.
        Cp = _round_up(C, 128)
        self.C, self.Cp = C, Cp

        def prep_w(w_hwio, scale):
            wf = w_hwio * scale[None, None, None, :]
            wp = jnp.zeros((3, 3, Cp, Cp), jnp.float32).at[:, :, :C, :C].set(wf)
            return wp.reshape(9 * Cp, Cp).astype(jnp.bfloat16)

        def prep_b(bias):
            return jnp.zeros((1, Cp), jnp.float32).at[0, :C].set(bias)

        self.w1k = prep_w(w1_hwio, scale1)
        self.w2k = prep_w(w2_hwio, scale2)
        self.b1k = prep_b(bias1)
        self.b2k = prep_b(bias2)

    def __call__(self, x_nchw):
        N, C, H, W = x_nchw.shape
        assert C == self.C
        Cp = self.Cp
        TH = _pick_strip_rows(H)

        x = jnp.transpose(x_nchw, (0, 2, 3, 1))                     # NCHW -> NHWC
        # Single pad of the input: +2 rows / +1 col spatial halo (covers both
        # convs' zero padding for the fused kernel) and channel pad to Cp.
        xp = jnp.pad(x, ((0, 0), (2, 2), (1, 1), (0, Cp - C))).astype(jnp.bfloat16)

        out = _basic_block_pallas(xp, self.w1k, self.w2k, self.b1k, self.b2k,
                                  N=N, H=H, W=W, Cp=Cp, TH=TH)
        out = out[..., :C]                                          # drop padded channels
        return jnp.transpose(out, (0, 3, 1, 2))                     # NHWC -> NCHW


def _reference_forward(block, x_nchw):
    """Pure-JAX reference (lax conv, float32) for a correctness check."""
    x = jnp.transpose(x_nchw, (0, 2, 3, 1))
    dn = ('NHWC', 'HWIO', 'NHWC')

    def conv(v, w):
        return jax.lax.conv_general_dilated(v, w, (1, 1), 'SAME',
                                            dimension_numbers=dn)

    h = jnp.maximum(conv(x, block.ref_w1) * block.ref_scale1 + block.ref_bias1, 0.0)
    o = conv(h, block.ref_w2) * block.ref_scale2 + block.ref_bias2 + x
    o = jnp.maximum(o, 0.0)
    return jnp.transpose(o, (0, 3, 1, 2))


if __name__ == "__main__":
    key = jax.random.PRNGKey(0)
    k_x, k_p = jax.random.split(key)
    N, C, H, W = 2, 4, 16, 16
    x = jax.random.normal(k_x, (N, C, H, W), jnp.float32)

    block = BasicBlockPallas(inplanes=C, planes=C, key=k_p)

    out = block(x)
    out = jax.block_until_ready(out)

    ref = _reference_forward(block, x)
    assert out.shape == (N, C, H, W)
    # bf16 activations/weights with f32 accumulation -> loosened tolerance.
    assert jnp.allclose(out, ref, atol=5e-2, rtol=5e-2), "mismatch vs JAX reference"

    print("KERNEL_OK")
</pallas_src>

<mosaic_0001>
module attributes {stable_mosaic.version = 11 : i64} {
  func.func @_basic_block_kernel(%arg0: i32, %arg1: i32, %arg2: memref<1x20x18x128xbf16, #tpu.memory_space<vmem>>, %arg3: memref<1152x128xbf16, #tpu.memory_space<vmem>>, %arg4: memref<1152x128xbf16, #tpu.memory_space<vmem>>, %arg5: memref<1x128xf32, #tpu.memory_space<vmem>>, %arg6: memref<1x128xf32, #tpu.memory_space<vmem>>, %arg7: memref<1x8x16x128xf32, #tpu.memory_space<vmem>>, %arg8: memref<160x1152xbf16, #tpu.memory_space<vmem>>, %arg9: memref<10x18x128xbf16, #tpu.memory_space<vmem>>) attributes {dimension_semantics = [#tpu.dimension_semantics<parallel>, #tpu.dimension_semantics<parallel>], iteration_bounds = array<i64: 2, 2>, scalar_prefetch = 0 : i64, scratch_operands = 2 : i64, tpu.core_type = #tpu.core_type<tc>, window_params = [{transform_indices = @transform_0, window_bounds = array<i64: 1, 20, 18, 128>}, {pipeline_mode = #tpu.pipeline_mode<synchronous>, transform_indices = @transform_1, window_bounds = array<i64: 1152, 128>}, {pipeline_mode = #tpu.pipeline_mode<synchronous>, transform_indices = @transform_2, window_bounds = array<i64: 1152, 128>}, {pipeline_mode = #tpu.pipeline_mode<synchronous>, transform_indices = @transform_3, window_bounds = array<i64: 1, 128>}, {pipeline_mode = #tpu.pipeline_mode<synchronous>, transform_indices = @transform_4, window_bounds = array<i64: 1, 128>}, {transform_indices = @transform_5, window_bounds = array<i64: 1, 8, 16, 128>}]} {
    %c8_i32 = arith.constant 8 : i32
    %0 = arith.muli %arg1, %c8_i32 : i32
    %1 = tpu.assume_multiple %0, 8 : i32
    %c0_i32 = arith.constant 0 : i32
    %2 = arith.addi %1, %c0_i32 : i32
    %c0 = arith.constant 0 : index
    %3 = arith.index_cast %2 : i32 to index
    %c0_0 = arith.constant 0 : index
    %c0_1 = arith.constant 0 : index
    %4 = vector.load %arg2[%c0, %3, %c0_0, %c0_1] : memref<1x20x18x128xbf16, #tpu.memory_space<vmem>>, vector<1x10x16x128xbf16>
    %5 = vector.shape_cast %4 : vector<1x10x16x128xbf16> to vector<10x16x128xbf16>
    %6 = vector.shape_cast %5 : vector<10x16x128xbf16> to vector<160x128xbf16>
    %c0_2 = arith.constant 0 : index
    %c0_3 = arith.constant 0 : index
    %7 = vector.load %arg8[%c0_2, %c0_3] : memref<160x1152xbf16, #tpu.memory_space<vmem>>, vector<160x128xbf16>
    tpu.vector_store %arg8[%c0_2, %c0_3], %6 {strides = array<i32>} : memref<160x1152xbf16, #tpu.memory_space<vmem>>, vector<160x128xbf16>,
    %c0_i32_4 = arith.constant 0 : i32
    %8 = arith.addi %1, %c0_i32_4 : i32
    %c0_5 = arith.constant 0 : index
    %9 = arith.index_cast %8 : i32 to index
    %c1 = arith.constant 1 : index
    %c0_6 = arith.constant 0 : index
    %10 = vector.load %arg2[%c0_5, %9, %c1, %c0_6] : memref<1x20x18x128xbf16, #tpu.memory_space<vmem>>, vector<1x10x16x128xbf16>
    %11 = vector.shape_cast %10 : vector<1x10x16x128xbf16> to vector<10x16x128xbf16>
    %12 = vector.shape_cast %11 : vector<10x16x128xbf16> to vector<160x128xbf16>
    %c0_7 = arith.constant 0 : index
    %c128 = arith.constant 128 : index
    %13 = vector.load %arg8[%c0_7, %c128] : memref<160x1152xbf16, #tpu.memory_space<vmem>>, vector<160x128xbf16>
    tpu.vector_store %arg8[%c0_7, %c128], %12 {strides = array<i32>} : memref<160x1152xbf16, #tpu.memory_space<vmem>>, vector<160x128xbf16>,
    %c0_i32_8 = arith.constant 0 : i32
    %14 = arith.addi %1, %c0_i32_8 : i32
    %c0_9 = arith.constant 0 : index
    %15 = arith.index_cast %14 : i32 to index
    %c2 = arith.constant 2 : index
    %c0_10 = arith.constant 0 : index
    %16 = vector.load %arg2[%c0_9, %15, %c2, %c0_10] : memref<1x20x18x128xbf16, #tpu.memory_space<vmem>>, vector<1x10x16x128xbf16>
    %17 = vector.shape_cast %16 : vector<1x10x16x128xbf16> to vector<10x16x128xbf16>
    %18 = vector.shape_cast %17 : vector<10x16x128xbf16> to vector<160x128xbf16>
    %c0_11 = arith.constant 0 : index
    %c256 = arith.constant 256 : index
    %19 = vector.load %arg8[%c0_11, %c256] : memref<160x1152xbf16, #tpu.memory_space<vmem>>, vector<160x128xbf16>
    tpu.vector_store %arg8[%c0_11, %c256], %18 {strides = array<i32>} : memref<160x1152xbf16, #tpu.memory_space<vmem>>, vector<160x128xbf16>,
    %c1_i32 = arith.constant 1 : i32
    %20 = arith.addi %1, %c1_i32 : i32
    %c0_12 = arith.constant 0 : index
    %21 = arith.index_cast %20 : i32 to index
    %c0_13 = arith.constant 0 : index
    %c0_14 = arith.constant 0 : index
    %22 = vector.load %arg2[%c0_12, %21, %c0_13, %c0_14] : memref<1x20x18x128xbf16, #tpu.memory_space<vmem>>, vector<1x10x16x128xbf16>
    %23 = vector.shape_cast %22 : vector<1x10x16x128xbf16> to vector<10x16x128xbf16>
    %24 = vector.shape_cast %23 : vector<10x16x128xbf16> to vector<160x128xbf16>
    %c0_15 = arith.constant 0 : index
    %c384 = arith.constant 384 : index
    %25 = vector.load %arg8[%c0_15, %c384] : memref<160x1152xbf16, #tpu.memory_space<vmem>>, vector<160x128xbf16>
    tpu.vector_store %arg8[%c0_15, %c384], %24 {strides = array<i32>} : memref<160x1152xbf16, #tpu.memory_space<vmem>>, vector<160x128xbf16>,
    %c1_i32_16 = arith.constant 1 : i32
    %26 = arith.addi %1, %c1_i32_16 : i32
    %c0_17 = arith.constant 0 : index
    %27 = arith.index_cast %26 : i32 to index
    %c1_18 = arith.constant 1 : index
    %c0_19 = arith.constant 0 : index
    %28 = vector.load %arg2[%c0_17, %27, %c1_18, %c0_19] : memref<1x20x18x128xbf16, #tpu.memory_space<vmem>>, vector<1x10x16x128xbf16>
    %29 = vector.shape_cast %28 : vector<1x10x16x128xbf16> to vector<10x16x128xbf16>
    %30 = vector.shape_cast %29 : vector<10x16x128xbf16> to vector<160x128xbf16>
    %c0_20 = arith.constant 0 : index
    %c512 = arith.constant 512 : index
    %31 = vector.load %arg8[%c0_20, %c512] : memref<160x1152xbf16, #tpu.memory_space<vmem>>, vector<160x128xbf16>
    tpu.vector_store %arg8[%c0_20, %c512], %30 {strides = array<i32>} : memref<160x1152xbf16, #tpu.memory_space<vmem>>, vector<160x128xbf16>,
    %c1_i32_21 = arith.constant 1 : i32
    %32 = arith.addi %1, %c1_i32_21 : i32
    %c0_22 = arith.constant 0 : index
    %33 = arith.index_cast %32 : i32 to index
    %c2_23 = arith.constant 2 : index
    %c0_24 = arith.constant 0 : index
    %34 = vector.load %arg2[%c0_22, %33, %c2_23, %c0_24] : memref<1x20x18x128xbf16, #tpu.memory_space<vmem>>, vector<1x10x16x128xbf16>
    %35 = vector.shape_cast %34 : vector<1x10x16x128xbf16> to vector<10x16x128xbf16>
    %36 = vector.shape_cast %35 : vector<10x16x128xbf16> to vector<160x128xbf16>
    %c0_25 = arith.constant 0 : index
    %c640 = arith.constant 640 : index
    %37 = vector.load %arg8[%c0_25, %c640] : memref<160x1152xbf16, #tpu.memory_space<vmem>>, vector<160x128xbf16>
    tpu.vector_store %arg8[%c0_25, %c640], %36 {strides = array<i32>} : memref<160x1152xbf16, #tpu.memory_space<vmem>>, vector<160x128xbf16>,
    %c2_i32 = arith.constant 2 : i32
    %38 = arith.addi %1, %c2_i32 : i32
    %c0_26 = arith.constant 0 : index
    %39 = arith.index_cast %38 : i32 to index
    %c0_27 = arith.constant 0 : index
    %c0_28 = arith.constant 0 : index
    %40 = vector.load %arg2[%c0_26, %39, %c0_27, %c0_28] : memref<1x20x18x128xbf16, #tpu.memory_space<vmem>>, vector<1x10x16x128xbf16>
    %41 = vector.shape_cast %40 : vector<1x10x16x128xbf16> to vector<10x16x128xbf16>
    %42 = vector.shape_cast %41 : vector<10x16x128xbf16> to vector<160x128xbf16>
    %c0_29 = arith.constant 0 : index
    %c768 = arith.constant 768 : index
    %43 = vector.load %arg8[%c0_29, %c768] : memref<160x1152xbf16, #tpu.memory_space<vmem>>, vector<160x128xbf16>
    tpu.vector_store %arg8[%c0_29, %c768], %42 {strides = array<i32>} : memref<160x1152xbf16, #tpu.memory_space<vmem>>, vector<160x128xbf16>,
    %c2_i32_30 = arith.constant 2 : i32
    %44 = arith.addi %1, %c2_i32_30 : i32
    %c0_31 = arith.constant 0 : index
    %45 = arith.index_cast %44 : i32 to index
    %c1_32 = arith.constant 1 : index
    %c0_33 = arith.constant 0 : index
    %46 = vector.load %arg2[%c0_31, %45, %c1_32, %c0_33] : memref<1x20x18x128xbf16, #tpu.memory_space<vmem>>, vector<1x10x16x128xbf16>
    %47 = vector.shape_cast %46 : vector<1x10x16x128xbf16> to vector<10x16x128xbf16>
    %48 = vector.shape_cast %47 : vector<10x16x128xbf16> to vector<160x128xbf16>
    %c0_34 = arith.constant 0 : index
    %c896 = arith.constant 896 : index
    %49 = vector.load %arg8[%c0_34, %c896] : memref<160x1152xbf16, #tpu.memory_space<vmem>>, vector<160x128xbf16>
    tpu.vector_store %arg8[%c0_34, %c896], %48 {strides = array<i32>} : memref<160x1152xbf16, #tpu.memory_space<vmem>>, vector<160x128xbf16>,
    %c2_i32_35 = arith.constant 2 : i32
    %50 = arith.addi %1, %c2_i32_35 : i32
    %c0_36 = arith.constant 0 : index
    %51 = arith.index_cast %50 : i32 to index
    %c2_37 = arith.constant 2 : index
    %c0_38 = arith.constant 0 : index
    %52 = vector.load %arg2[%c0_36, %51, %c2_37, %c0_38] : memref<1x20x18x128xbf16, #tpu.memory_space<vmem>>, vector<1x10x16x128xbf16>
    %53 = vector.shape_cast %52 : vector<1x10x16x128xbf16> to vector<10x16x128xbf16>
    %54 = vector.shape_cast %53 : vector<10x16x128xbf16> to vector<160x128xbf16>
    %c0_39 = arith.constant 0 : index
    %c1024 = arith.constant 1024 : index
    %55 = vector.load %arg8[%c0_39, %c1024] : memref<160x1152xbf16, #tpu.memory_space<vmem>>, vector<160x128xbf16>
    tpu.vector_store %arg8[%c0_39, %c1024], %54 {strides = array<i32>} : memref<160x1152xbf16, #tpu.memory_space<vmem>>, vector<160x128xbf16>,
    %c0_40 = arith.constant 0 : index
    %c0_41 = arith.constant 0 : index
    %56 = vector.load %arg8[%c0_40, %c0_41] : memref<160x1152xbf16, #tpu.memory_space<vmem>>, vector<160x1152xbf16>
    %c0_42 = arith.constant 0 : index
    %c0_43 = arith.constant 0 : index
    %57 = vector.load %arg3[%c0_42, %c0_43] : memref<1152x128xbf16, #tpu.memory_space<vmem>>, vector<1152x128xbf16>
    %cst = arith.constant dense<0.000000e+00> : vector<160x128xf32>
    %58 = tpu.matmul %56, %57, %cst {dimension_numbers = #tpu.dot_dimension_numbers<[1], [0], [0], [1], [0, 0, 1, 1], [], []>} : vector<160x1152xbf16>, vector<1152x128xbf16>, vector<160x128xf32> -> vector<160x128xf32>
    %c0_44 = arith.constant 0 : index
    %c0_45 = arith.constant 0 : index
    %59 = vector.load %arg5[%c0_44, %c0_45] : memref<1x128xf32, #tpu.memory_space<vmem>>, vector<1x128xf32>
    %60 = vector.broadcast %59 : vector<1x128xf32> to vector<160x128xf32>
    %61 = arith.addf %58, %60 : vector<160x128xf32>
    %cst_46 = arith.constant 0.000000e+00 : f32
    %62 = vector.broadcast %cst_46 : f32 to vector<160x128xf32>
    %63 = arith.maximumf %61, %62 : vector<160x128xf32>
    %64 = arith.truncf %63 : vector<160x128xf32> to vector<160x128xbf16>
    %65 = vector.shape_cast %64 : vector<160x128xbf16> to vector<10x16x128xbf16>
    %c0_47 = arith.constant 0 : index
    %c1_48 = arith.constant 1 : index
    %c0_49 = arith.constant 0 : index
    %66 = vector.load %arg9[%c0_47, %c1_48, %c0_49] : memref<10x18x128xbf16, #tpu.memory_space<vmem>>, vector<10x16x128xbf16>
    tpu.vector_store %arg9[%c0_47, %c1_48, %c0_49], %65 {strides = array<i32>} : memref<10x18x128xbf16, #tpu.memory_space<vmem>>, vector<10x16x128xbf16>,
    %cst_50 = arith.constant 0.000000e+00 : bf16
    %67 = vector.broadcast %cst_50 : bf16 to vector<10x128xbf16>
    %c0_51 = arith.constant 0 : index
    %c0_52 = arith.constant 0 : index
    %c0_53 = arith.constant 0 : index
    %68 = vector.load %arg9[%c0_51, %c0_52, %c0_53] : memref<10x18x128xbf16, #tpu.memory_space<vmem>>, vector<10x1x128xbf16>
    %69 = vector.shape_cast %68 : vector<10x1x128xbf16> to vector<10x128xbf16>
    %70 = vector.shape_cast %67 : vector<10x128xbf16> to vector<10x1x128xbf16>
    tpu.vector_store %arg9[%c0_51, %c0_52, %c0_53], %70 {strides = array<i32>} : memref<10x18x128xbf16, #tpu.memory_space<vmem>>, vector<10x1x128xbf16>,
    %c0_54 = arith.constant 0 : index
    %c17 = arith.constant 17 : index
    %c0_55 = arith.constant 0 : index
    %71 = vector.load %arg9[%c0_54, %c17, %c0_55] : memref<10x18x128xbf16, #tpu.memory_space<vmem>>, vector<10x1x128xbf16>
    %72 = vector.shape_cast %71 : vector<10x1x128xbf16> to vector<10x128xbf16>
    %73 = vector.shape_cast %67 : vector<10x128xbf16> to vector<10x1x128xbf16>
    tpu.vector_store %arg9[%c0_54, %c17, %c0_55], %73 {strides = array<i32>} : memref<10x18x128xbf16, #tpu.memory_space<vmem>>, vector<10x1x128xbf16>,
    %c0_i32_56 = arith.constant 0 : i32
    %74 = arith.cmpi eq, %arg1, %c0_i32_56 : i32
    %75 = arith.extui %74 : i1 to i32
    %c0_i32_57 = arith.constant 0 : i32
    %76 = arith.cmpi ne, %75, %c0_i32_57 : i32
    scf.if %76 {
      %cst_121 = arith.constant 0.000000e+00 : bf16
      %126 = vector.broadcast %cst_121 : bf16 to vector<18x128xbf16>
      %c0_122 = arith.constant 0 : index
      %c0_123 = arith.constant 0 : index
      %c0_124 = arith.constant 0 : index
      %127 = vector.load %arg9[%c0_122, %c0_123, %c0_124] : memref<10x18x128xbf16, #tpu.memory_space<vmem>>, vector<1x18x128xbf16>
      %128 = vector.shape_cast %127 : vector<1x18x128xbf16> to vector<18x128xbf16>
      %129 = vector.shape_cast %126 : vector<18x128xbf16> to vector<1x18x128xbf16>
      tpu.vector_store %arg9[%c0_122, %c0_123, %c0_124], %129 {strides = array<i32>} : memref<10x18x128xbf16, #tpu.memory_space<vmem>>, vector<1x18x128xbf16>,
    } else {
    }
    %c1_i32_58 = arith.constant 1 : i32
    %77 = arith.cmpi eq, %arg1, %c1_i32_58 : i32
    %78 = arith.extui %77 : i1 to i32
    %c0_i32_59 = arith.constant 0 : i32
    %79 = arith.cmpi ne, %78, %c0_i32_59 : i32
    scf.if %79 {
      %cst_121 = arith.constant 0.000000e+00 : bf16
      %126 = vector.broadcast %cst_121 : bf16 to vector<18x128xbf16>
      %c9 = arith.constant 9 : index
      %c0_122 = arith.constant 0 : index
      %c0_123 = arith.constant 0 : index
      %127 = vector.load %arg9[%c9, %c0_122, %c0_123] : memref<10x18x128xbf16, #tpu.memory_space<vmem>>, vector<1x18x128xbf16>
      %128 = vector.shape_cast %127 : vector<1x18x128xbf16> to vector<18x128xbf16>
      %129 = vector.shape_cast %126 : vector<18x128xbf16> to vector<1x18x128xbf16>
      tpu.vector_store %arg9[%c9, %c0_122, %c0_123], %129 {strides = array<i32>} : memref<10x18x128xbf16, #tpu.memory_space<vmem>>, vector<1x18x128xbf16>,
    } else {
    }
    %c0_60 = arith.constant 0 : index
    %c0_61 = arith.constant 0 : index
    %c0_62 = arith.constant 0 : index
    %80 = vector.load %arg9[%c0_60, %c0_61, %c0_62] : memref<10x18x128xbf16, #tpu.memory_space<vmem>>, vector<8x16x128xbf16>
    %81 = vector.shape_cast %80 : vector<8x16x128xbf16> to vector<128x128xbf16>
    %c0_63 = arith.constant 0 : index
    %c0_64 = arith.constant 0 : index
    %82 = vector.load %arg8[%c0_63, %c0_64] : memref<160x1152xbf16, #tpu.memory_space<vmem>>, vector<128x128xbf16>
    tpu.vector_store %arg8[%c0_63, %c0_64], %81 {strides = array<i32>} : memref<160x1152xbf16, #tpu.memory_space<vmem>>, vector<128x128xbf16>,
    %c0_65 = arith.constant 0 : index
    %c1_66 = arith.constant 1 : index
    %c0_67 = arith.constant 0 : index
    %83 = vector.load %arg9[%c0_65, %c1_66, %c0_67] : memref<10x18x128xbf16, #tpu.memory_space<vmem>>, vector<8x16x128xbf16>
    %84 = vector.shape_cast %83 : vector<8x16x128xbf16> to vector<128x128xbf16>
    %c0_68 = arith.constant 0 : index
    %c128_69 = arith.constant 128 : index
    %85 = vector.load %arg8[%c0_68, %c128_69] : memref<160x1152xbf16, #tpu.memory_space<vmem>>, vector<128x128xbf16>
    tpu.vector_store %arg8[%c0_68, %c128_69], %84 {strides = array<i32>} : memref<160x1152xbf16, #tpu.memory_space<vmem>>, vector<128x128xbf16>,
    %c0_70 = arith.constant 0 : index
    %c2_71 = arith.constant 2 : index
    %c0_72 = arith.constant 0 : index
    %86 = vector.load %arg9[%c0_70, %c2_71, %c0_72] : memref<10x18x128xbf16, #tpu.memory_space<vmem>>, vector<8x16x128xbf16>
    %87 = vector.shape_cast %86 : vector<8x16x128xbf16> to vector<128x128xbf16>
    %c0_73 = arith.constant 0 : index
    %c256_74 = arith.constant 256 : index
    %88 = vector.load %arg8[%c0_73, %c256_74] : memref<160x1152xbf16, #tpu.memory_space<vmem>>, vector<128x128xbf16>
    tpu.vector_store %arg8[%c0_73, %c256_74], %87 {strides = array<i32>} : memref<160x1152xbf16, #tpu.memory_space<vmem>>, vector<128x128xbf16>,
    %c1_75 = arith.constant 1 : index
    %c0_76 = arith.constant 0 : index
    %c0_77 = arith.constant 0 : index
    %89 = vector.load %arg9[%c1_75, %c0_76, %c0_77] : memref<10x18x128xbf16, #tpu.memory_space<vmem>>, vector<8x16x128xbf16>
    %90 = vector.shape_cast %89 : vector<8x16x128xbf16> to vector<128x128xbf16>
    %c0_78 = arith.constant 0 : index
    %c384_79 = arith.constant 384 : index
    %91 = vector.load %arg8[%c0_78, %c384_79] : memref<160x1152xbf16, #tpu.memory_space<vmem>>, vector<128x128xbf16>
    tpu.vector_store %arg8[%c0_78, %c384_79], %90 {strides = array<i32>} : memref<160x1152xbf16, #tpu.memory_space<vmem>>, vector<128x128xbf16>,
    %c1_80 = arith.constant 1 : index
    %c1_81 = arith.constant 1 : index
    %c0_82 = arith.constant 0 : index
    %92 = vector.load %arg9[%c1_80, %c1_81, %c0_82] : memref<10x18x128xbf16, #tpu.memory_space<vmem>>, vector<8x16x128xbf16>
    %93 = vector.shape_cast %92 : vector<8x16x128xbf16> to vector<128x128xbf16>
    %c0_83 = arith.constant 0 : index
    %c512_84 = arith.constant 512 : index
    %94 = vector.load %arg8[%c0_83, %c512_84] : memref<160x1152xbf16, #tpu.memory_space<vmem>>, vector<128x128xbf16>
    tpu.vector_store %arg8[%c0_83, %c512_84], %93 {strides = array<i32>} : memref<160x1152xbf16, #tpu.memory_space<vmem>>, vector<128x128xbf16>,
    %c1_85 = arith.constant 1 : index
    %c2_86 = arith.constant 2 : index
    %c0_87 = arith.constant 0 : index
    %95 = vector.load %arg9[%c1_85, %c2_86, %c0_87] : memref<10x18x128xbf16, #tpu.memory_space<vmem>>, vector<8x16x128xbf16>
    %96 = vector.shape_cast %95 : vector<8x16x128xbf16> to vector<128x128xbf16>
    %c0_88 = arith.constant 0 : index
    %c640_89 = arith.constant 640 : index
    %97 = vector.load %arg8[%c0_88, %c640_89] : memref<160x1152xbf16, #tpu.memory_space<vmem>>, vector<128x128xbf16>
    tpu.vector_store %arg8[%c0_88, %c640_89], %96 {strides = array<i32>} : memref<160x1152xbf16, #tpu.memory_space<vmem>>, vector<128x128xbf16>,
    %c2_90 = arith.constant 2 : index
    %c0_91 = arith.constant 0 : index
    %c0_92 = arith.constant 0 : index
    %98 = vector.load %arg9[%c2_90, %c0_91, %c0_92] : memref<10x18x128xbf16, #tpu.memory_space<vmem>>, vector<8x16x128xbf16>
    %99 = vector.shape_cast %98 : vector<8x16x128xbf16> to vector<128x128xbf16>
    %c0_93 = arith.constant 0 : index
    %c768_94 = arith.constant 768 : index
    %100 = vector.load %arg8[%c0_93, %c768_94] : memref<160x1152xbf16, #tpu.memory_space<vmem>>, vector<128x128xbf16>
    tpu.vector_store %arg8[%c0_93, %c768_94], %99 {strides = array<i32>} : memref<160x1152xbf16, #tpu.memory_space<vmem>>, vector<128x128xbf16>,
    %c2_95 = arith.constant 2 : index
    %c1_96 = arith.constant 1 : index
    %c0_97 = arith.constant 0 : index
    %101 = vector.load %arg9[%c2_95, %c1_96, %c0_97] : memref<10x18x128xbf16, #tpu.memory_space<vmem>>, vector<8x16x128xbf16>
    %102 = vector.shape_cast %101 : vector<8x16x128xbf16> to vector<128x128xbf16>
    %c0_98 = arith.constant 0 : index
    %c896_99 = arith.constant 896 : index
    %103 = vector.load %arg8[%c0_98, %c896_99] : memref<160x1152xbf16, #tpu.memory_space<vmem>>, vector<128x128xbf16>
    tpu.vector_store %arg8[%c0_98, %c896_99], %102 {strides = array<i32>} : memref<160x1152xbf16, #tpu.memory_space<vmem>>, vector<128x128xbf16>,
    %c2_100 = arith.constant 2 : index
    %c2_101 = arith.constant 2 : index
    %c0_102 = arith.constant 0 : index
    %104 = vector.load %arg9[%c2_100, %c2_101, %c0_102] : memref<10x18x128xbf16, #tpu.memory_space<vmem>>, vector<8x16x128xbf16>
    %105 = vector.shape_cast %104 : vector<8x16x128xbf16> to vector<128x128xbf16>
    %c0_103 = arith.constant 0 : index
    %c1024_104 = arith.constant 1024 : index
    %106 = vector.load %arg8[%c0_103, %c1024_104] : memref<160x1152xbf16, #tpu.memory_space<vmem>>, vector<128x128xbf16>
    tpu.vector_store %arg8[%c0_103, %c1024_104], %105 {strides = array<i32>} : memref<160x1152xbf16, #tpu.memory_space<vmem>>, vector<128x128xbf16>,
    %c0_105 = arith.constant 0 : index
    %c0_106 = arith.constant 0 : index
    %107 = vector.load %arg8[%c0_105, %c0_106] : memref<160x1152xbf16, #tpu.memory_space<vmem>>, vector<128x1152xbf16>
    %c0_107 = arith.constant 0 : index
    %c0_108 = arith.constant 0 : index
    %108 = vector.load %arg4[%c0_107, %c0_108] : memref<1152x128xbf16, #tpu.memory_space<vmem>>, vector<1152x128xbf16>
    %cst_109 = arith.constant dense<0.000000e+00> : vector<128x128xf32>
    %109 = tpu.matmul %107, %108, %cst_109 {dimension_numbers = #tpu.dot_dimension_numbers<[1], [0], [0], [1], [0, 0, 1, 1], [], []>} : vector<128x1152xbf16>, vector<1152x128xbf16>, vector<128x128xf32> -> vector<128x128xf32>
    %c2_i32_110 = arith.constant 2 : i32
    %110 = arith.addi %1, %c2_i32_110 : i32
    %c0_111 = arith.constant 0 : index
    %111 = arith.index_cast %110 : i32 to index
    %c1_112 = arith.constant 1 : index
    %c0_113 = arith.constant 0 : index
    %112 = vector.load %arg2[%c0_111, %111, %c1_112, %c0_113] : memref<1x20x18x128xbf16, #tpu.memory_space<vmem>>, vector<1x8x16x128xbf16>
    %113 = vector.shape_cast %112 : vector<1x8x16x128xbf16> to vector<8x16x128xbf16>
    %114 = vector.shape_cast %113 : vector<8x16x128xbf16> to vector<128x128xbf16>
    %115 = arith.extf %114 : vector<128x128xbf16> to vector<128x128xf32>
    %c0_114 = arith.constant 0 : index
    %c0_115 = arith.constant 0 : index
    %116 = vector.load %arg6[%c0_114, %c0_115] : memref<1x128xf32, #tpu.memory_space<vmem>>, vector<1x128xf32>
    %117 = vector.broadcast %116 : vector<1x128xf32> to vector<128x128xf32>
    %118 = arith.addf %109, %117 : vector<128x128xf32>
    %119 = arith.addf %118, %115 : vector<128x128xf32>
    %cst_116 = arith.constant 0.000000e+00 : f32
    %120 = vector.broadcast %cst_116 : f32 to vector<128x128xf32>
    %121 = arith.maximumf %119, %120 : vector<128x128xf32>
    %122 = vector.shape_cast %121 : vector<128x128xf32> to vector<8x16x128xf32>
    %c0_117 = arith.constant 0 : index
    %c0_118 = arith.constant 0 : index
    %c0_119 = arith.constant 0 : index
    %c0_120 = arith.constant 0 : index
    %123 = vector.load %arg7[%c0_117, %c0_118, %c0_119, %c0_120] : memref<1x8x16x128xf32, #tpu.memory_space<vmem>>, vector<1x8x16x128xf32>
    %124 = vector.shape_cast %123 : vector<1x8x16x128xf32> to vector<8x16x128xf32>
    %125 = vector.shape_cast %122 : vector<8x16x128xf32> to vector<1x8x16x128xf32>
    tpu.vector_store %arg7[%c0_117, %c0_118, %c0_119, %c0_120], %125 {strides = array<i32>} : memref<1x8x16x128xf32, #tpu.memory_space<vmem>>, vector<1x8x16x128xf32>,
    return
  }
  func.func @transform_0(%arg0: i32, %arg1: i32) -> (i32, i32, i32, i32) {
    %c0_i32 = arith.constant 0 : i32
    %c0_i32_0 = arith.constant 0 : i32
    %c0_i32_1 = arith.constant 0 : i32
    %c0_i32_2 = arith.constant 0 : i32
    return %arg0, %c0_i32, %c0_i32_0, %c0_i32_1 : i32, i32, i32, i32
  }
  func.func @transform_1(%arg0: i32, %arg1: i32) -> (i32, i32) {
    %c0_i32 = arith.constant 0 : i32
    %c0_i32_0 = arith.constant 0 : i32
    %c0_i32_1 = arith.constant 0 : i32
    return %c0_i32, %c0_i32_0 : i32, i32
  }
  func.func @transform_2(%arg0: i32, %arg1: i32) -> (i32, i32) {
    %c0_i32 = arith.constant 0 : i32
    %c0_i32_0 = arith.constant 0 : i32
    %c0_i32_1 = arith.constant 0 : i32
    return %c0_i32, %c0_i32_0 : i32, i32
  }
  func.func @transform_3(%arg0: i32, %arg1: i32) -> (i32, i32) {
    %c0_i32 = arith.constant 0 : i32
    %c0_i32_0 = arith.constant 0 : i32
    %c0_i32_1 = arith.constant 0 : i32
    return %c0_i32, %c0_i32_0 : i32, i32
  }
  func.func @transform_4(%arg0: i32, %arg1: i32) -> (i32, i32) {
    %c0_i32 = arith.constant 0 : i32
    %c0_i32_0 = arith.constant 0 : i32
    %c0_i32_1 = arith.constant 0 : i32
    return %c0_i32, %c0_i32_0 : i32, i32
  }
  func.func @transform_5(%arg0: i32, %arg1: i32) -> (i32, i32, i32, i32) {
    %c0_i32 = arith.constant 0 : i32
    %c0_i32_0 = arith.constant 0 : i32
    %c0_i32_1 = arith.constant 0 : i32
    return %arg0, %arg1, %c0_i32, %c0_i32_0 : i32, i32, i32, i32
  }
}

</mosaic_0001>

<llo_original>
// kernel: tpu_custom_call.1
$region0: #{tpu_custom_call.1}
  #allocation0 [shape = 'u32[]', space=smem, size = 0x4, offset = 0x4, fixed_abs, tag = 'smem constant byte address 0x4 - core index']
  #allocation1 [shape = 'u32[72,128]{1,0:T(1,128)}', space=vmem, size = 0x9000, scoped, tag = 'internal scratch']
  #allocation2 [shape = 'bf16[160,1152]{1,0:T(8,128)(2,1)}', space=vmem, size = 0x5a000, scoped, tag = 'scratch operand']
  #allocation3 [shape = 'bf16[10,18,128]{2,1,0:T(8,128)(2,1)}', space=vmem, size = 0xf000, scoped, tag = 'scratch operand']
  %s0 = inlined_call_operand.vmem [shape: bf16[2,20,18,128], index: 0, kind: input, shape index: {}]
  %s1 = inlined_call_operand.vmem [shape: bf16[1152,128], index: 1, kind: input, shape index: {}]
  %s2 = inlined_call_operand.hbm [shape: bf16[1152,128], index: 2, kind: input, shape index: {}]
  %s3 = inlined_call_operand.vmem [shape: f32[1,128], index: 3, kind: input, shape index: {}]
  %s4 = inlined_call_operand.vmem [shape: f32[1,128], index: 4, kind: input, shape index: {}]
  %s5 = inlined_call_operand.hbm [shape: f32[2,16,16,128], index: 5, kind: output, shape index: {}]
  %s6 = sld [smem:[#allocation0]]
  $region65: #{tpu_custom_call.1} parent=0
    _
  %s8 = ssub.s32 1, %s6
  %s9 = scalar_select 0, %s8, %s6
  $region1: #{tpu_custom_call.1} parent=0
    #allocation4 [shape = 'u8[294912]{0}', space=vmem, size = 0x48000, scoped, tag = 'input window, operand 2, single buffered']
    #allocation5 [shape = 's32[2]{0}', space=sflag, size = 0x8, scoped, tag = 'scoped memory for tpu_custom_call.1']
    #allocation6 [shape = 's32[2]{0}', space=sflag, size = 0x8, scoped, tag = 'scoped memory for tpu_custom_call.1']
    #allocation7 [shape = 'u8[131072]{0}', space=vmem, size = 0x20000, scoped, tag = 'output window, operand 0']
    %10 = vsyncpa [#allocation5], 0
    %11 = vsyncpa [#allocation6], 0
    %s12 = scalar_lea.sflag [#allocation6], 1
    %13 = vsyncpa %s12, 0
    loop: start=0, step=1, limit=6
    $region2: #{tpu_custom_call.1} parent=1 // loop_pre_header
      _
    $region3: #{tpu_custom_call.1} parent=1 // loop_header
      %s15 = sphi 0, %s19
      %p16 = scmp.ge.s32.totalorder %s15, 6
      %s22 = sphi 0, %s34
      %s23 = sphi 0, %s30
      %s24 = sphi 0, %s22
      %s25 = sphi 0, %s23
      %s26 = sphi 0, %s24
      %s27 = sphi 0, %s25
      %s37 = sphi 0, %s39
      %s40 = sphi 0, %s37
      %s41 = sphi 0, %s40
      %s57 = sphi 0, %s41
      %s61 = sphi 0, %s61
      %s63 = sphi 0, %s61
      %s64 = sphi 0, %s63
      %s78 = sphi 0, %s64
      %s82 = sphi 0, %s82
      %s84 = sphi 0, %s82
      %s85 = sphi 0, %s84
      %s99 = sphi 0, %s85
      %s103 = sphi 0, %s103
      %s105 = sphi 0, %s103
      %s106 = sphi 0, %s105
      %s120 = sphi 0, %s106
      %s124 = sphi 0, %s124
      %s126 = sphi 0, %s124
      %s127 = sphi 0, %s126
      %s141 = sphi 0, %s127
      %s149 = sphi 0, %s151
      %s152 = sphi 0, %s149
      %s153 = sphi 0, %s152
      %s169 = sphi 0, %s153
    $region4: #{tpu_custom_call.1} parent=1 // loop_header_branch
      %18 = sbr.rel (%p16) target = $region8
    $region5: #{tpu_custom_call.1} parent=1 // loop_body
      %s20 = ssub.s32 %s15, 1
      %s21 = ssub.s32 %s15, 2
      %s28 = sadd.s32 1, %s23
      %p29 = scmp.ge.s32.totalorder %s28, 2
      %s30 = scalar_select %p29, 0, %s28
      %s31 = sadd.s32 1, %s22
      %s32 = scalar_select %p29, %s31, %s22
      %p33 = scmp.ge.s32.totalorder %s32, 2
      %s34 = scalar_select %p33, 0, %s32
      %s35 = ssub.s32 %s22, %s34
      %p36 = scmp.eq.s32.totalorder %s35, 0
      %s38 = sadd.s32 %s37, 1
      %s39 = scalar_select %p36, %s37, %s38
      %p42 = pneg %p36
      %p43 = scmp.eq.s32.totalorder %s15, 3
      %p44 = por %p42, %p43
      %p45 = scmp.ne.s32.totalorder %s37, %s40
      %p46 = scmp.eq.s32.totalorder %s15, 0
      %p47 = por %p45, %p46
      %p48 = scmp.ne.s32.totalorder %s37, %s40
      %p49 = scmp.eq.s32.totalorder %s20, 3
      %p50 = por %p48, %p49
      %p51 = scmp.ne.s32.totalorder %s40, %s41
      %p52 = scmp.eq.s32.totalorder %s20, 0
      %p53 = por %p51, %p52
      %p54 = scmp.ne.s32.totalorder %s40, %s41
      %p55 = scmp.eq.s32.totalorder %s21, 3
      %p56 = por %p54, %p55
      %p58 = scmp.ne.s32.totalorder %s41, %s57
      %p59 = scmp.eq.s32.totalorder %s21, 0
      %p60 = por %p58, %p59
      %s62 = sadd.s32 %s61, 1
      %p65 = scmp.eq.s32.totalorder %s15, 3
      %p66 = scmp.ne.s32.totalorder %s61, %s63
      %p67 = scmp.eq.s32.totalorder %s15, 0
      %p68 = por %p66, %p67
      %p69 = scmp.ne.s32.totalorder %s61, %s63
      %p70 = scmp.eq.s32.totalorder %s20, 3
      %p71 = por %p69, %p70
      %p72 = scmp.ne.s32.totalorder %s63, %s64
      %p73 = scmp.eq.s32.totalorder %s20, 0
      %p74 = por %p72, %p73
      %p75 = scmp.ne.s32.totalorder %s63, %s64
      %p76 = scmp.eq.s32.totalorder %s21, 3
      %p77 = por %p75, %p76
      %p79 = scmp.ne.s32.totalorder %s64, %s78
      %p80 = scmp.eq.s32.totalorder %s21, 0
      %p81 = por %p79, %p80
      %s83 = sadd.s32 %s82, 1
      %p86 = scmp.eq.s32.totalorder %s15, 3
      %p87 = scmp.ne.s32.totalorder %s82, %s84
      %p88 = scmp.eq.s32.totalorder %s15, 0
      %p89 = por %p87, %p88
      %p90 = scmp.ne.s32.totalorder %s82, %s84
      %p91 = scmp.eq.s32.totalorder %s20, 3
      %p92 = por %p90, %p91
      %p93 = scmp.ne.s32.totalorder %s84, %s85
      %p94 = scmp.eq.s32.totalorder %s20, 0
      %p95 = por %p93, %p94
      %p96 = scmp.ne.s32.totalorder %s84, %s85
      %p97 = scmp.eq.s32.totalorder %s21, 3
      %p98 = por %p96, %p97
      %p100 = scmp.ne.s32.totalorder %s85, %s99
      %p101 = scmp.eq.s32.totalorder %s21, 0
      %p102 = por %p100, %p101
      %s104 = sadd.s32 %s103, 1
      %p107 = scmp.eq.s32.totalorder %s15, 3
      %p108 = scmp.ne.s32.totalorder %s103, %s105
      %p109 = scmp.eq.s32.totalorder %s15, 0
      %p110 = por %p108, %p109
      %p111 = scmp.ne.s32.totalorder %s103, %s105
      %p112 = scmp.eq.s32.totalorder %s20, 3
      %p113 = por %p111, %p112
      %p114 = scmp.ne.s32.totalorder %s105, %s106
      %p115 = scmp.eq.s32.totalorder %s20, 0
      %p116 = por %p114, %p115
      %p117 = scmp.ne.s32.totalorder %s105, %s106
      %p118 = scmp.eq.s32.totalorder %s21, 3
      %p119 = por %p117, %p118
      %p121 = scmp.ne.s32.totalorder %s106, %s120
      %p122 = scmp.eq.s32.totalorder %s21, 0
      %p123 = por %p121, %p122
      %s125 = sadd.s32 %s124, 1
      %p128 = scmp.eq.s32.totalorder %s15, 3
      %p129 = scmp.ne.s32.totalorder %s124, %s126
      %p130 = scmp.eq.s32.totalorder %s15, 0
      %p131 = por %p129, %p130
      %p132 = scmp.ne.s32.totalorder %s124, %s126
      %p133 = scmp.eq.s32.totalorder %s20, 3
      %p134 = por %p132, %p133
      %p135 = scmp.ne.s32.totalorder %s126, %s127
      %p136 = scmp.eq.s32.totalorder %s20, 0
      %p137 = por %p135, %p136
      %p138 = scmp.ne.s32.totalorder %s126, %s127
      %p139 = scmp.eq.s32.totalorder %s21, 3
      %p140 = por %p138, %p139
      %p142 = scmp.ne.s32.totalorder %s127, %s141
      %p143 = scmp.eq.s32.totalorder %s21, 0
      %p144 = por %p142, %p143
      %s145 = ssub.s32 %s22, %s34
      %s146 = ssub.s32 %s23, %s30
      %s147 = sor.u32 %s145, %s146
      %p148 = scmp.eq.s32.totalorder %s147, 0
      %s150 = sadd.s32 %s149, 1
      %s151 = scalar_select %p148, %s149, %s150
      %p154 = pneg %p148
      %p155 = scmp.eq.s32.totalorder %s15, 3
      %p156 = por %p154, %p155
      %p157 = scmp.ne.s32.totalorder %s149, %s152
      %p158 = scmp.eq.s32.totalorder %s15, 0
      %p159 = por %p157, %p158
      %p160 = scmp.ne.s32.totalorder %s149, %s152
      %p161 = scmp.eq.s32.totalorder %s20, 3
      %p162 = por %p160, %p161
      %p163 = scmp.ne.s32.totalorder %s152, %s153
      %p164 = scmp.eq.s32.totalorder %s20, 0
      %p165 = por %p163, %p164
      %p166 = scmp.ne.s32.totalorder %s152, %s153
      %p167 = scmp.eq.s32.totalorder %s21, 3
      %p168 = por %p166, %p167
      %p170 = scmp.ne.s32.totalorder %s153, %s169
      %p171 = scmp.eq.s32.totalorder %s21, 0
      %p172 = por %p170, %p171
      %p173 = scmp.le.s32.totalorder 1, %s15
      %p174 = scmp.lt.s32.totalorder %s15, 5
      %p175 = pnand %p173, %p174
      %p176 = pneg %p175
      // Predicated region
      $region9: #{tpu_custom_call.1} parent=5 // pred_check
        _
      $region10: #{tpu_custom_call.1} parent=5 // pred_check_branch
        %178 = sbr.rel (%p175) target = $region12
      $region11: #{tpu_custom_call.1} parent=5 // pred_region
        %s179 = ssub.s32 %s15, 1
        // Predicated region
        $region13: #{tpu_custom_call.1} parent=11 // pred_check
          %p180 = pneg %p74
        $region14: #{tpu_custom_call.1} parent=11 // pred_check_branch
          %182 = sbr.rel (%p180) target = $region16
        $region15: #{tpu_custom_call.1} parent=11 // pred_region
          _
        $region16: #{tpu_custom_call.1} parent=11 // pred_fallthru
          _
        // Predicated region
        $region17: #{tpu_custom_call.1} parent=11 // pred_check
          %p183 = pneg %p95
        $region18: #{tpu_custom_call.1} parent=11 // pred_check_branch
          %185 = sbr.rel (%p183) target = $region20
        $region19: #{tpu_custom_call.1} parent=11 // pred_region
          %187 = vsyncadd [#allocation5], 0
          %s188 = sshll.u32 %s2, 4
          %s189 = int_to_ptr.hbm [resolvable:$true] %s188
          %s190 = sshll.u32 [#allocation4], 4
          %s191 = int_to_ptr.vmem [resolvable:$true] %s190
          %196 = dma.hbm_to_vmem [thread:$0]  %s189, 9216, %s191, [#allocation5], 64, 64, 4
        $region20: #{tpu_custom_call.1} parent=11 // pred_fallthru
          _
        // Predicated region
        $region21: #{tpu_custom_call.1} parent=11 // pred_check
          %p197 = pneg %p116
        $region22: #{tpu_custom_call.1} parent=11 // pred_check_branch
          %199 = sbr.rel (%p197) target = $region24
        $region23: #{tpu_custom_call.1} parent=11 // pred_region
          _
        $region24: #{tpu_custom_call.1} parent=11 // pred_fallthru
          _
        // Predicated region
        $region25: #{tpu_custom_call.1} parent=11 // pred_check
          %p200 = pneg %p137
        $region26: #{tpu_custom_call.1} parent=11 // pred_check_branch
          %202 = sbr.rel (%p200) target = $region28
        $region27: #{tpu_custom_call.1} parent=11 // pred_region
          _
        $region28: #{tpu_custom_call.1} parent=11 // pred_fallthru
          _
      $region12: #{tpu_custom_call.1} parent=5 // pred_fallthru
        _
      %p203 = scmp.lt.s32.totalorder %s15, 4
      // Predicated region
      $region29: #{tpu_custom_call.1} parent=5 // pred_check
        %p204 = pneg %p203
      $region30: #{tpu_custom_call.1} parent=5 // pred_check_branch
        %206 = sbr.rel (%p204) target = $region32
      $region31: #{tpu_custom_call.1} parent=5 // pred_region
        // Predicated region
        $region33: #{tpu_custom_call.1} parent=31 // pred_check
          %p207 = pneg %p47
        $region34: #{tpu_custom_call.1} parent=31 // pred_check_branch
          %209 = sbr.rel (%p207) target = $region36
        $region35: #{tpu_custom_call.1} parent=31 // pred_region
          %p210 = scmp.lt.s32.totalorder %s22, 1
          %s211 = scalar_select %p210, %s22, 1
          %s212 = smul.addr %s211, 60
          %s213 = smul.addr %s212, 4
          %s214 = scalar_lea.vmem %s0, %s213
        $region36: #{tpu_custom_call.1} parent=31 // pred_fallthru
          _
      $region32: #{tpu_custom_call.1} parent=5 // pred_fallthru
        _
      %p215 = scmp.le.s32.totalorder 1, %s15
      %p216 = scmp.lt.s32.totalorder %s15, 5
      %p217 = pnand %p215, %p216
      %p218 = pneg %p217
      // Predicated region
      $region37: #{tpu_custom_call.1} parent=5 // pred_check
        _
      $region38: #{tpu_custom_call.1} parent=5 // pred_check_branch
        %220 = sbr.rel (%p217) target = $region40
      $region39: #{tpu_custom_call.1} parent=5 // pred_region
        %s221 = ssub.s32 %s15, 1
        // Predicated region
        $region41: #{tpu_custom_call.1} parent=39 // pred_check
          %p222 = pneg %p95
        $region42: #{tpu_custom_call.1} parent=39 // pred_check_branch
          %224 = sbr.rel (%p222) target = $region44
        $region43: #{tpu_custom_call.1} parent=39 // pred_region
          %226 = dma.done [#allocation5], 9216
        $region44: #{tpu_custom_call.1} parent=39 // pred_fallthru
          _
        %p227 = scmp.lt.s32.totalorder %s24, 1
        %s228 = scalar_select %p227, %s24, 1
        %s229 = smul.addr %s228, 60
        %s230 = smul.addr %s229, 4
        %s231 = scalar_lea.vmem %s0, %s230
        %p232 = pneg %p53
        %p233 = pneg %p50
        %p234 = pneg %p74
        %p235 = pneg %p71
        %p236 = pneg %p95
        %p237 = pneg %p92
        %p238 = pneg %p116
        %p239 = pneg %p113
        %p240 = pneg %p137
        %p241 = pneg %p134
        %p242 = pneg %p165
        %p243 = pneg %p162
        %s244 = sand.u32 %s152, 1
        %s245 = scalar_lea.sflag [#allocation6], %s244
        %s246 = sand.u32 %s152, 1
        %s247 = smul.addr %s246, 128
        %s248 = scalar_lea.vmem [#allocation7], %s247
        %p249 = scmp.lt.s32.totalorder %s24, 1
        %s250 = scalar_select %p249, %s24, 1
        %s251 = smul.addr %s250, 60
        %s252 = smul.addr %s251, 4
        %s253 = scalar_lea.vmem %s0, %s252
        %s254 = smul.u32 8, %s25
        %s256 = smul.u32 %s25, 8
        %s257 = smul.u32 %s256, 3
        %s258 = smul.addr %s257, 4
        %s259 = scalar_lea.vmem %s253, %s258
        %v260 = vld [vmem:[%s259] sm:$0xf]
        %v261 = vld [vmem:[%s259 + $0x4] sm:$0xf]
        %v262 = vld [vmem:[%s259 + $0xc] sm:$0xf]
        %v263 = vld [vmem:[%s259 + $0x10] sm:$0xf]
        %v264 = vld [vmem:[%s259 + $0x18] sm:$0xf]
        %v265 = vld [vmem:[%s259 + $0x1c] sm:$0xf]
        %v266 = vld [vmem:[%s259 + $0x24] sm:$0xf]
        %v267 = vld [vmem:[%s259 + $0x28] sm:$0xf]
        %v268 = vld [vmem:[%s259 + $0x30] sm:$0xf]
        %v269 = vld [vmem:[%s259 + $0x34] sm:$0xf]
        %v270 = vld [vmem:[%s259 + $0x3c] sm:$0xf]
        %v271 = vld [vmem:[%s259 + $0x40] sm:$0xf]
        %v272 = vld [vmem:[%s259 + $0x48] sm:$0xf]
        %v273 = vld [vmem:[%s259 + $0x4c] sm:$0xf]
        %v274 = vld [vmem:[%s259 + $0x54] sm:$0xf]
        %v275 = vld [vmem:[%s259 + $0x58] sm:$0xf]
        %v276 = vld [vmem:[%s259 + $0x60] sm:$0xf]
        %v277 = vld [vmem:[%s259 + $0x64] sm:$0xf]
        %v278 = vld [vmem:[%s259 + $0x6c] sm:$0xf]
        %v279 = vld [vmem:[%s259 + $0x70] sm:$0xf]
        %280 = vst [vmem:[#allocation2] sm:$0xf] %v260
        %281 = vst [vmem:[#allocation2 + $0x24] sm:$0xf] %v261
        %282 = vst [vmem:[#allocation2 + $0x48] sm:$0xf] %v262
        %283 = vst [vmem:[#allocation2 + $0x6c] sm:$0xf] %v263
        %284 = vst [vmem:[#allocation2 + $0x90] sm:$0xf] %v264
        %285 = vst [vmem:[#allocation2 + $0xb4] sm:$0xf] %v265
        %286 = vst [vmem:[#allocation2 + $0xd8] sm:$0xf] %v266
        %287 = vst [vmem:[#allocation2 + $0xfc] sm:$0xf] %v267
        %288 = vst [vmem:[#allocation2 + $0x120] sm:$0xf] %v268
        %289 = vst [vmem:[#allocation2 + $0x144] sm:$0xf] %v269
        %290 = vst [vmem:[#allocation2 + $0x168] sm:$0xf] %v270
        %291 = vst [vmem:[#allocation2 + $0x18c] sm:$0xf] %v271
        %292 = vst [vmem:[#allocation2 + $0x1b0] sm:$0xf] %v272
        %293 = vst [vmem:[#allocation2 + $0x1d4] sm:$0xf] %v273
        %294 = vst [vmem:[#allocation2 + $0x1f8] sm:$0xf] %v274
        %295 = vst [vmem:[#allocation2 + $0x21c] sm:$0xf] %v275
        %296 = vst [vmem:[#allocation2 + $0x240] sm:$0xf] %v276
        %297 = vst [vmem:[#allocation2 + $0x264] sm:$0xf] %v277
        %298 = vst [vmem:[#allocation2 + $0x288] sm:$0xf] %v278
        %299 = vst [vmem:[#allocation2 + $0x2ac] sm:$0xf] %v279
        %v300 = vld [vmem:[%s259] sm:$0xf]
        %v301 = vld [vmem:[%s259 + $0x4] sm:$0xf]
        %v302 = vld [vmem:[%s259 + $0x8] sm:$0x1]
        %v303 = vld [vmem:[%s259 + $0xc] sm:$0xf]
        %v304 = vld [vmem:[%s259 + $0x10] sm:$0xf]
        %v305 = vld [vmem:[%s259 + $0x14] sm:$0x1]
        %v306 = vld [vmem:[%s259 + $0x18] sm:$0xf]
        %v307 = vld [vmem:[%s259 + $0x1c] sm:$0xf]
        %v308 = vld [vmem:[%s259 + $0x20] sm:$0x1]
        %v309 = vld [vmem:[%s259 + $0x24] sm:$0xf]
        %v310 = vld [vmem:[%s259 + $0x28] sm:$0xf]
        %v311 = vld [vmem:[%s259 + $0x2c] sm:$0x1]
        %v312 = vld [vmem:[%s259 + $0x30] sm:$0xf]
        %v313 = vld [vmem:[%s259 + $0x34] sm:$0xf]
        %v314 = vld [vmem:[%s259 + $0x38] sm:$0x1]
        %v315 = vld [vmem:[%s259 + $0x3c] sm:$0xf]
        %v316 = vld [vmem:[%s259 + $0x40] sm:$0xf]
        %v317 = vld [vmem:[%s259 + $0x44] sm:$0x1]
        %v318 = vld [vmem:[%s259 + $0x48] sm:$0xf]
        %v319 = vld [vmem:[%s259 + $0x4c] sm:$0xf]
        %v320 = vld [vmem:[%s259 + $0x50] sm:$0x1]
        %v321 = vld [vmem:[%s259 + $0x54] sm:$0xf]
        %v322 = vld [vmem:[%s259 + $0x58] sm:$0xf]
        %v323 = vld [vmem:[%s259 + $0x5c] sm:$0x1]
        %v324 = vld [vmem:[%s259 + $0x60] sm:$0xf]
        %v325 = vld [vmem:[%s259 + $0x64] sm:$0xf]
        %v326 = vld [vmem:[%s259 + $0x68] sm:$0x1]
        %v327 = vld [vmem:[%s259 + $0x6c] sm:$0xf]
        %v328 = vld [vmem:[%s259 + $0x70] sm:$0xf]
        %v329 = vld [vmem:[%s259 + $0x74] sm:$0x1]
        %vm330 = vsmask.f32 3328
        %vm331 = vsmask.f32 7440
        %vm332 = vmor %vm330, %vm331
        %v334 = vshrl.u32 %v300, 16
        %v336 = vrot.slane %v334, 4
        %v337 = vshll.u32 %v300, 16
        %v339 = vrot.slane %v337, 5
        %v340 = vor.u32 %v336, %v339
        %v341 = vrot.slane %v340, 4
        %v343 = vshll.u32 %v301, 16
        %v345 = vrot.slane %v343, 5
        %v346 = vsel %vm332, %v341, %v345
        %v347 = vshrl.u32 %v301, 16
        %v349 = vrot.slane %v347, 4
        %v350 = vor.u32 %v349, %v345
        %v351 = vrot.slane %v350, 4
        %v353 = vshll.u32 %v302, 16
        %v355 = vrot.slane %v353, 5
        %v356 = vsel %vm332, %v351, %v355
        %v358 = vshrl.u32 %v303, 16
        %v360 = vrot.slane %v358, 4
        %v361 = vshll.u32 %v303, 16
        %v363 = vrot.slane %v361, 5
        %v364 = vor.u32 %v360, %v363
        %v365 = vrot.slane %v364, 4
        %v367 = vshll.u32 %v304, 16
        %v369 = vrot.slane %v367, 5
        %v370 = vsel %vm332, %v365, %v369
        %v371 = vshrl.u32 %v304, 16
        %v373 = vrot.slane %v371, 4
        %v374 = vor.u32 %v373, %v369
        %v375 = vrot.slane %v374, 4
        %v377 = vshll.u32 %v305, 16
        %v379 = vrot.slane %v377, 5
        %v380 = vsel %vm332, %v375, %v379
        %v382 = vshrl.u32 %v306, 16
        %v384 = vrot.slane %v382, 4
        %v385 = vshll.u32 %v306, 16
        %v387 = vrot.slane %v385, 5
        %v388 = vor.u32 %v384, %v387
        %v389 = vrot.slane %v388, 4
        %v391 = vshll.u32 %v307, 16
        %v393 = vrot.slane %v391, 5
        %v394 = vsel %vm332, %v389, %v393
        %v395 = vshrl.u32 %v307, 16
        %v397 = vrot.slane %v395, 4
        %v398 = vor.u32 %v397, %v393
        %v399 = vrot.slane %v398, 4
        %v401 = vshll.u32 %v308, 16
        %v403 = vrot.slane %v401, 5
        %v404 = vsel %vm332, %v399, %v403
        %v406 = vshrl.u32 %v309, 16
        %v408 = vrot.slane %v406, 4
        %v409 = vshll.u32 %v309, 16
        %v411 = vrot.slane %v409, 5
        %v412 = vor.u32 %v408, %v411
        %v413 = vrot.slane %v412, 4
        %v415 = vshll.u32 %v310, 16
        %v417 = vrot.slane %v415, 5
        %v418 = vsel %vm332, %v413, %v417
        %v419 = vshrl.u32 %v310, 16
        %v421 = vrot.slane %v419, 4
        %v422 = vor.u32 %v421, %v417
        %v423 = vrot.slane %v422, 4
        %v425 = vshll.u32 %v311, 16
        %v427 = vrot.slane %v425, 5
        %v428 = vsel %vm332, %v423, %v427
        %v430 = vshrl.u32 %v312, 16
        %v432 = vrot.slane %v430, 4
        %v433 = vshll.u32 %v312, 16
        %v435 = vrot.slane %v433, 5
        %v436 = vor.u32 %v432, %v435
        %v437 = vrot.slane %v436, 4
        %v439 = vshll.u32 %v313, 16
        %v441 = vrot.slane %v439, 5
        %v442 = vsel %vm332, %v437, %v441
        %v443 = vshrl.u32 %v313, 16
        %v445 = vrot.slane %v443, 4
        %v446 = vor.u32 %v445, %v441
        %v447 = vrot.slane %v446, 4
        %v449 = vshll.u32 %v314, 16
        %v451 = vrot.slane %v449, 5
        %v452 = vsel %vm332, %v447, %v451
        %v454 = vshrl.u32 %v315, 16
        %v456 = vrot.slane %v454, 4
        %v457 = vshll.u32 %v315, 16
        %v459 = vrot.slane %v457, 5
        %v460 = vor.u32 %v456, %v459
        %v461 = vrot.slane %v460, 4
        %v463 = vshll.u32 %v316, 16
        %v465 = vrot.slane %v463, 5
        %v466 = vsel %vm332, %v461, %v465
        %v467 = vshrl.u32 %v316, 16
        %v469 = vrot.slane %v467, 4
        %v470 = vor.u32 %v469, %v465
        %v471 = vrot.slane %v470, 4
        %v473 = vshll.u32 %v317, 16
        %v475 = vrot.slane %v473, 5
        %v476 = vsel %vm332, %v471, %v475
        %v478 = vshrl.u32 %v318, 16
        %v480 = vrot.slane %v478, 4
        %v481 = vshll.u32 %v318, 16
        %v483 = vrot.slane %v481, 5
        %v484 = vor.u32 %v480, %v483
        %v485 = vrot.slane %v484, 4
        %v487 = vshll.u32 %v319, 16
        %v489 = vrot.slane %v487, 5
        %v490 = vsel %vm332, %v485, %v489
        %v491 = vshrl.u32 %v319, 16
        %v493 = vrot.slane %v491, 4
        %v494 = vor.u32 %v493, %v489
        %v495 = vrot.slane %v494, 4
        %v497 = vshll.u32 %v320, 16
        %v499 = vrot.slane %v497, 5
        %v500 = vsel %vm332, %v495, %v499
        %v502 = vshrl.u32 %v321, 16
        %v504 = vrot.slane %v502, 4
        %v505 = vshll.u32 %v321, 16
        %v507 = vrot.slane %v505, 5
        %v508 = vor.u32 %v504, %v507
        %v509 = vrot.slane %v508, 4
        %v511 = vshll.u32 %v322, 16
        %v513 = vrot.slane %v511, 5
        %v514 = vsel %vm332, %v509, %v513
        %v515 = vshrl.u32 %v322, 16
        %v517 = vrot.slane %v515, 4
        %v518 = vor.u32 %v517, %v513
        %v519 = vrot.slane %v518, 4
        %v521 = vshll.u32 %v323, 16
        %v523 = vrot.slane %v521, 5
        %v524 = vsel %vm332, %v519, %v523
        %v526 = vshrl.u32 %v324, 16
        %v528 = vrot.slane %v526, 4
        %v529 = vshll.u32 %v324, 16
        %v531 = vrot.slane %v529, 5
        %v532 = vor.u32 %v528, %v531
        %v533 = vrot.slane %v532, 4
        %v535 = vshll.u32 %v325, 16
        %v537 = vrot.slane %v535, 5
        %v538 = vsel %vm332, %v533, %v537
        %v539 = vshrl.u32 %v325, 16
        %v541 = vrot.slane %v539, 4
        %v542 = vor.u32 %v541, %v537
        %v543 = vrot.slane %v542, 4
        %v545 = vshll.u32 %v326, 16
        %v547 = vrot.slane %v545, 5
        %v548 = vsel %vm332, %v543, %v547
        %v550 = vshrl.u32 %v327, 16
        %v552 = vrot.slane %v550, 4
        %v553 = vshll.u32 %v327, 16
        %v555 = vrot.slane %v553, 5
        %v556 = vor.u32 %v552, %v555
        %v557 = vrot.slane %v556, 4
        %v559 = vshll.u32 %v328, 16
        %v561 = vrot.slane %v559, 5
        %v562 = vsel %vm332, %v557, %v561
        %v563 = vshrl.u32 %v328, 16
        %v565 = vrot.slane %v563, 4
        %v566 = vor.u32 %v565, %v561
        %v567 = vrot.slane %v566, 4
        %v569 = vshll.u32 %v329, 16
        %v571 = vrot.slane %v569, 5
        %v572 = vsel %vm332, %v567, %v571
        %593 = vst [vmem:[#allocation2 + $0x4] sm:$0xf] %v346
        %594 = vst [vmem:[#allocation2 + $0x28] sm:$0xf] %v356
        %595 = vst [vmem:[#allocation2 + $0x4c] sm:$0xf] %v370
        %596 = vst [vmem:[#allocation2 + $0x70] sm:$0xf] %v380
        %597 = vst [vmem:[#allocation2 + $0x94] sm:$0xf] %v394
        %598 = vst [vmem:[#allocation2 + $0xb8] sm:$0xf] %v404
        %599 = vst [vmem:[#allocation2 + $0xdc] sm:$0xf] %v418
        %600 = vst [vmem:[#allocation2 + $0x100] sm:$0xf] %v428
        %601 = vst [vmem:[#allocation2 + $0x124] sm:$0xf] %v442
        %602 = vst [vmem:[#allocation2 + $0x148] sm:$0xf] %v452
        %603 = vst [vmem:[#allocation2 + $0x16c] sm:$0xf] %v466
        %604 = vst [vmem:[#allocation2 + $0x190] sm:$0xf] %v476
        %605 = vst [vmem:[#allocation2 + $0x1b4] sm:$0xf] %v490
        %606 = vst [vmem:[#allocation2 + $0x1d8] sm:$0xf] %v500
        %607 = vst [vmem:[#allocation2 + $0x1fc] sm:$0xf] %v514
        %608 = vst [vmem:[#allocation2 + $0x220] sm:$0xf] %v524
        %609 = vst [vmem:[#allocation2 + $0x244] sm:$0xf] %v538
        %610 = vst [vmem:[#allocation2 + $0x268] sm:$0xf] %v548
        %611 = vst [vmem:[#allocation2 + $0x28c] sm:$0xf] %v562
        %612 = vst [vmem:[#allocation2 + $0x2b0] sm:$0xf] %v572
        %v613 = vld [vmem:[%s259] sm:$0xe]
        %v614 = vld [vmem:[%s259 + $0x4] sm:$0xf]
        %v615 = vld [vmem:[%s259 + $0x8] sm:$0x1]
        %v616 = vld [vmem:[%s259 + $0xc] sm:$0xe]
        %v617 = vld [vmem:[%s259 + $0x10] sm:$0xf]
        %v618 = vld [vmem:[%s259 + $0x14] sm:$0x1]
        %v619 = vld [vmem:[%s259 + $0x18] sm:$0xe]
        %v620 = vld [vmem:[%s259 + $0x1c] sm:$0xf]
        %v621 = vld [vmem:[%s259 + $0x20] sm:$0x1]
        %v622 = vld [vmem:[%s259 + $0x24] sm:$0xe]
        %v623 = vld [vmem:[%s259 + $0x28] sm:$0xf]
        %v624 = vld [vmem:[%s259 + $0x2c] sm:$0x1]
        %v625 = vld [vmem:[%s259 + $0x30] sm:$0xe]
        %v626 = vld [vmem:[%s259 + $0x34] sm:$0xf]
        %v627 = vld [vmem:[%s259 + $0x38] sm:$0x1]
        %v628 = vld [vmem:[%s259 + $0x3c] sm:$0xe]
        %v629 = vld [vmem:[%s259 + $0x40] sm:$0xf]
        %v630 = vld [vmem:[%s259 + $0x44] sm:$0x1]
        %v631 = vld [vmem:[%s259 + $0x48] sm:$0xe]
        %v632 = vld [vmem:[%s259 + $0x4c] sm:$0xf]
        %v633 = vld [vmem:[%s259 + $0x50] sm:$0x1]
        %v634 = vld [vmem:[%s259 + $0x54] sm:$0xe]
        %v635 = vld [vmem:[%s259 + $0x58] sm:$0xf]
        %v636 = vld [vmem:[%s259 + $0x5c] sm:$0x1]
        %v637 = vld [vmem:[%s259 + $0x60] sm:$0xe]
        %v638 = vld [vmem:[%s259 + $0x64] sm:$0xf]
        %v639 = vld [vmem:[%s259 + $0x68] sm:$0x1]
        %v640 = vld [vmem:[%s259 + $0x6c] sm:$0xe]
        %v641 = vld [vmem:[%s259 + $0x70] sm:$0xf]
        %v642 = vld [vmem:[%s259 + $0x74] sm:$0x1]
        %vm673 = vcmask 1042432
        %vm674 = vcmask 1046532
        %vm675 = vmor %vm673, %vm674
        %v676 = vrot.slane %v613, 5
        %v677 = vrot.slane %v676, 4
        %v678 = vrot.slane %v614, 5
        %v679 = vsel %vm675, %v677, %v678
        %v680 = vrot.slane %v678, 4
        %v681 = vrot.slane %v615, 5
        %v682 = vsel %vm675, %v680, %v681
        %v683 = vrot.slane %v616, 5
        %v684 = vrot.slane %v683, 4
        %v685 = vrot.slane %v617, 5
        %v686 = vsel %vm675, %v684, %v685
        %v687 = vrot.slane %v685, 4
        %v688 = vrot.slane %v618, 5
        %v689 = vsel %vm675, %v687, %v688
        %v690 = vrot.slane %v619, 5
        %v691 = vrot.slane %v690, 4
        %v692 = vrot.slane %v620, 5
        %v693 = vsel %vm675, %v691, %v692
        %v694 = vrot.slane %v692, 4
        %v695 = vrot.slane %v621, 5
        %v696 = vsel %vm675, %v694, %v695
        %v697 = vrot.slane %v622, 5
        %v698 = vrot.slane %v697, 4
        %v699 = vrot.slane %v623, 5
        %v700 = vsel %vm675, %v698, %v699
        %v701 = vrot.slane %v699, 4
        %v702 = vrot.slane %v624, 5
        %v703 = vsel %vm675, %v701, %v702
        %v704 = vrot.slane %v625, 5
        %v705 = vrot.slane %v704, 4
        %v706 = vrot.slane %v626, 5
        %v707 = vsel %vm675, %v705, %v706
        %v708 = vrot.slane %v706, 4
        %v709 = vrot.slane %v627, 5
        %v710 = vsel %vm675, %v708, %v709
        %v711 = vrot.slane %v628, 5
        %v712 = vrot.slane %v711, 4
        %v713 = vrot.slane %v629, 5
        %v714 = vsel %vm675, %v712, %v713
        %v715 = vrot.slane %v713, 4
        %v716 = vrot.slane %v630, 5
        %v717 = vsel %vm675, %v715, %v716
        %v718 = vrot.slane %v631, 5
        %v719 = vrot.slane %v718, 4
        %v720 = vrot.slane %v632, 5
        %v721 = vsel %vm675, %v719, %v720
        %v722 = vrot.slane %v720, 4
        %v723 = vrot.slane %v633, 5
        %v724 = vsel %vm675, %v722, %v723
        %v725 = vrot.slane %v634, 5
        %v726 = vrot.slane %v725, 4
        %v727 = vrot.slane %v635, 5
        %v728 = vsel %vm675, %v726, %v727
        %v729 = vrot.slane %v727, 4
        %v730 = vrot.slane %v636, 5
        %v731 = vsel %vm675, %v729, %v730
        %v732 = vrot.slane %v637, 5
        %v733 = vrot.slane %v732, 4
        %v734 = vrot.slane %v638, 5
        %v735 = vsel %vm675, %v733, %v734
        %v736 = vrot.slane %v734, 4
        %v737 = vrot.slane %v639, 5
        %v738 = vsel %vm675, %v736, %v737
        %v739 = vrot.slane %v640, 5
        %v740 = vrot.slane %v739, 4
        %v741 = vrot.slane %v641, 5
        %v742 = vsel %vm675, %v740, %v741
        %v743 = vrot.slane %v741, 4
        %v744 = vrot.slane %v642, 5
        %v745 = vsel %vm675, %v743, %v744
        %766 = vst [vmem:[#allocation2 + $0x8] sm:$0xf] %v679
        %767 = vst [vmem:[#allocation2 + $0x2c] sm:$0xf] %v682
        %768 = vst [vmem:[#allocation2 + $0x50] sm:$0xf] %v686
        %769 = vst [vmem:[#allocation2 + $0x74] sm:$0xf] %v689
        %770 = vst [vmem:[#allocation2 + $0x98] sm:$0xf] %v693
        %771 = vst [vmem:[#allocation2 + $0xbc] sm:$0xf] %v696
        %772 = vst [vmem:[#allocation2 + $0xe0] sm:$0xf] %v700
        %773 = vst [vmem:[#allocation2 + $0x104] sm:$0xf] %v703
        %774 = vst [vmem:[#allocation2 + $0x128] sm:$0xf] %v707
        %775 = vst [vmem:[#allocation2 + $0x14c] sm:$0xf] %v710
        %776 = vst [vmem:[#allocation2 + $0x170] sm:$0xf] %v714
        %777 = vst [vmem:[#allocation2 + $0x194] sm:$0xf] %v717
        %778 = vst [vmem:[#allocation2 + $0x1b8] sm:$0xf] %v721
        %779 = vst [vmem:[#allocation2 + $0x1dc] sm:$0xf] %v724
        %780 = vst [vmem:[#allocation2 + $0x200] sm:$0xf] %v728
        %781 = vst [vmem:[#allocation2 + $0x224] sm:$0xf] %v731
        %782 = vst [vmem:[#allocation2 + $0x248] sm:$0xf] %v735
        %783 = vst [vmem:[#allocation2 + $0x26c] sm:$0xf] %v738
        %784 = vst [vmem:[#allocation2 + $0x290] sm:$0xf] %v742
        %785 = vst [vmem:[#allocation2 + $0x2b4] sm:$0xf] %v745
        %s786 = sadd.s32 %s256, 1
        %s787 = smul.u32 %s786, 3
        %s788 = smul.addr %s787, 4
        %s789 = scalar_lea.vmem %s253, %s788
        %v790 = vld [vmem:[%s789] sm:$0xf]
        %v791 = vld [vmem:[%s789 + $0x4] sm:$0xf]
        %v792 = vld [vmem:[%s789 + $0xc] sm:$0xf]
        %v793 = vld [vmem:[%s789 + $0x10] sm:$0xf]
        %v794 = vld [vmem:[%s789 + $0x18] sm:$0xf]
        %v795 = vld [vmem:[%s789 + $0x1c] sm:$0xf]
        %v796 = vld [vmem:[%s789 + $0x24] sm:$0xf]
        %v797 = vld [vmem:[%s789 + $0x28] sm:$0xf]
        %v798 = vld [vmem:[%s789 + $0x30] sm:$0xf]
        %v799 = vld [vmem:[%s789 + $0x34] sm:$0xf]
        %v800 = vld [vmem:[%s789 + $0x3c] sm:$0xf]
        %v801 = vld [vmem:[%s789 + $0x40] sm:$0xf]
        %v802 = vld [vmem:[%s789 + $0x48] sm:$0xf]
        %v803 = vld [vmem:[%s789 + $0x4c] sm:$0xf]
        %v804 = vld [vmem:[%s789 + $0x54] sm:$0xf]
        %v805 = vld [vmem:[%s789 + $0x58] sm:$0xf]
        %v806 = vld [vmem:[%s789 + $0x60] sm:$0xf]
        %v807 = vld [vmem:[%s789 + $0x64] sm:$0xf]
        %v808 = vld [vmem:[%s789 + $0x6c] sm:$0xf]
        %v809 = vld [vmem:[%s789 + $0x70] sm:$0xf]
        %810 = vst [vmem:[#allocation2 + $0xc] sm:$0xf] %v790
        %811 = vst [vmem:[#allocation2 + $0x30] sm:$0xf] %v791
        %812 = vst [vmem:[#allocation2 + $0x54] sm:$0xf] %v792
        %813 = vst [vmem:[#allocation2 + $0x78] sm:$0xf] %v793
        %814 = vst [vmem:[#allocation2 + $0x9c] sm:$0xf] %v794
        %815 = vst [vmem:[#allocation2 + $0xc0] sm:$0xf] %v795
        %816 = vst [vmem:[#allocation2 + $0xe4] sm:$0xf] %v796
        %817 = vst [vmem:[#allocation2 + $0x108] sm:$0xf] %v797
        %818 = vst [vmem:[#allocation2 + $0x12c] sm:$0xf] %v798
        %819 = vst [vmem:[#allocation2 + $0x150] sm:$0xf] %v799
        %820 = vst [vmem:[#allocation2 + $0x174] sm:$0xf] %v800
        %821 = vst [vmem:[#allocation2 + $0x198] sm:$0xf] %v801
        %822 = vst [vmem:[#allocation2 + $0x1bc] sm:$0xf] %v802
        %823 = vst [vmem:[#allocation2 + $0x1e0] sm:$0xf] %v803
        %824 = vst [vmem:[#allocation2 + $0x204] sm:$0xf] %v804
        %825 = vst [vmem:[#allocation2 + $0x228] sm:$0xf] %v805
        %826 = vst [vmem:[#allocation2 + $0x24c] sm:$0xf] %v806
        %827 = vst [vmem:[#allocation2 + $0x270] sm:$0xf] %v807
        %828 = vst [vmem:[#allocation2 + $0x294] sm:$0xf] %v808
        %829 = vst [vmem:[#allocation2 + $0x2b8] sm:$0xf] %v809
        %v830 = vld [vmem:[%s789] sm:$0xf]
        %v831 = vld [vmem:[%s789 + $0x4] sm:$0xf]
        %v832 = vld [vmem:[%s789 + $0x8] sm:$0x1]
        %v833 = vld [vmem:[%s789 + $0xc] sm:$0xf]
        %v834 = vld [vmem:[%s789 + $0x10] sm:$0xf]
        %v835 = vld [vmem:[%s789 + $0x14] sm:$0x1]
        %v836 = vld [vmem:[%s789 + $0x18] sm:$0xf]
        %v837 = vld [vmem:[%s789 + $0x1c] sm:$0xf]
        %v838 = vld [vmem:[%s789 + $0x20] sm:$0x1]
        %v839 = vld [vmem:[%s789 + $0x24] sm:$0xf]
        %v840 = vld [vmem:[%s789 + $0x28] sm:$0xf]
        %v841 = vld [vmem:[%s789 + $0x2c] sm:$0x1]
        %v842 = vld [vmem:[%s789 + $0x30] sm:$0xf]
        %v843 = vld [vmem:[%s789 + $0x34] sm:$0xf]
        %v844 = vld [vmem:[%s789 + $0x38] sm:$0x1]
        %v845 = vld [vmem:[%s789 + $0x3c] sm:$0xf]
        %v846 = vld [vmem:[%s789 + $0x40] sm:$0xf]
        %v847 = vld [vmem:[%s789 + $0x44] sm:$0x1]
        %v848 = vld [vmem:[%s789 + $0x48] sm:$0xf]
        %v849 = vld [vmem:[%s789 + $0x4c] sm:$0xf]
        %v850 = vld [vmem:[%s789 + $0x50] sm:$0x1]
        %v851 = vld [vmem:[%s789 + $0x54] sm:$0xf]
        %v852 = vld [vmem:[%s789 + $0x58] sm:$0xf]
        %v853 = vld [vmem:[%s789 + $0x5c] sm:$0x1]
        %v854 = vld [vmem:[%s789 + $0x60] sm:$0xf]
        %v855 = vld [vmem:[%s789 + $0x64] sm:$0xf]
        %v856 = vld [vmem:[%s789 + $0x68] sm:$0x1]
        %v857 = vld [vmem:[%s789 + $0x6c] sm:$0xf]
        %v858 = vld [vmem:[%s789 + $0x70] sm:$0xf]
        %v859 = vld [vmem:[%s789 + $0x74] sm:$0x1]
        %v861 = vshrl.u32 %v830, 16
        %v863 = vrot.slane %v861, 4
        %v864 = vshll.u32 %v830, 16
        %v866 = vrot.slane %v864, 5
        %v867 = vor.u32 %v863, %v866
        %v868 = vrot.slane %v867, 4
        %v870 = vshll.u32 %v831, 16
        %v872 = vrot.slane %v870, 5
        %v873 = vsel %vm332, %v868, %v872
        %v874 = vshrl.u32 %v831, 16
        %v876 = vrot.slane %v874, 4
        %v877 = vor.u32 %v876, %v872
        %v878 = vrot.slane %v877, 4
        %v880 = vshll.u32 %v832, 16
        %v882 = vrot.slane %v880, 5
        %v883 = vsel %vm332, %v878, %v882
        %v885 = vshrl.u32 %v833, 16
        %v887 = vrot.slane %v885, 4
        %v888 = vshll.u32 %v833, 16
        %v890 = vrot.slane %v888, 5
        %v891 = vor.u32 %v887, %v890
        %v892 = vrot.slane %v891, 4
        %v894 = vshll.u32 %v834, 16
        %v896 = vrot.slane %v894, 5
        %v897 = vsel %vm332, %v892, %v896
        %v898 = vshrl.u32 %v834, 16
        %v900 = vrot.slane %v898, 4
        %v901 = vor.u32 %v900, %v896
        %v902 = vrot.slane %v901, 4
        %v904 = vshll.u32 %v835, 16
        %v906 = vrot.slane %v904, 5
        %v907 = vsel %vm332, %v902, %v906
        %v909 = vshrl.u32 %v836, 16
        %v911 = vrot.slane %v909, 4
        %v912 = vshll.u32 %v836, 16
        %v914 = vrot.slane %v912, 5
        %v915 = vor.u32 %v911, %v914
        %v916 = vrot.slane %v915, 4
        %v918 = vshll.u32 %v837, 16
        %v920 = vrot.slane %v918, 5
        %v921 = vsel %vm332, %v916, %v920
        %v922 = vshrl.u32 %v837, 16
        %v924 = vrot.slane %v922, 4
        %v925 = vor.u32 %v924, %v920
        %v926 = vrot.slane %v925, 4
        %v928 = vshll.u32 %v838, 16
        %v930 = vrot.slane %v928, 5
        %v931 = vsel %vm332, %v926, %v930
        %v933 = vshrl.u32 %v839, 16
        %v935 = vrot.slane %v933, 4
        %v936 = vshll.u32 %v839, 16
        %v938 = vrot.slane %v936, 5
        %v939 = vor.u32 %v935, %v938
        %v940 = vrot.slane %v939, 4
        %v942 = vshll.u32 %v840, 16
        %v944 = vrot.slane %v942, 5
        %v945 = vsel %vm332, %v940, %v944
        %v946 = vshrl.u32 %v840, 16
        %v948 = vrot.slane %v946, 4
        %v949 = vor.u32 %v948, %v944
        %v950 = vrot.slane %v949, 4
        %v952 = vshll.u32 %v841, 16
        %v954 = vrot.slane %v952, 5
        %v955 = vsel %vm332, %v950, %v954
        %v957 = vshrl.u32 %v842, 16
        %v959 = vrot.slane %v957, 4
        %v960 = vshll.u32 %v842, 16
        %v962 = vrot.slane %v960, 5
        %v963 = vor.u32 %v959, %v962
        %v964 = vrot.slane %v963, 4
        %v966 = vshll.u32 %v843, 16
        %v968 = vrot.slane %v966, 5
        %v969 = vsel %vm332, %v964, %v968
        %v970 = vshrl.u32 %v843, 16
        %v972 = vrot.slane %v970, 4
        %v973 = vor.u32 %v972, %v968
        %v974 = vrot.slane %v973, 4
        %v976 = vshll.u32 %v844, 16
        %v978 = vrot.slane %v976, 5
        %v979 = vsel %vm332, %v974, %v978
        %v981 = vshrl.u32 %v845, 16
        %v983 = vrot.slane %v981, 4
        %v984 = vshll.u32 %v845, 16
        %v986 = vrot.slane %v984, 5
        %v987 = vor.u32 %v983, %v986
        %v988 = vrot.slane %v987, 4
        %v990 = vshll.u32 %v846, 16
        %v992 = vrot.slane %v990, 5
        %v993 = vsel %vm332, %v988, %v992
        %v994 = vshrl.u32 %v846, 16
        %v996 = vrot.slane %v994, 4
        %v997 = vor.u32 %v996, %v992
        %v998 = vrot.slane %v997, 4
        %v1000 = vshll.u32 %v847, 16
        %v1002 = vrot.slane %v1000, 5
        %v1003 = vsel %vm332, %v998, %v1002
        %v1005 = vshrl.u32 %v848, 16
        %v1007 = vrot.slane %v1005, 4
        %v1008 = vshll.u32 %v848, 16
        %v1010 = vrot.slane %v1008, 5
        %v1011 = vor.u32 %v1007, %v1010
        %v1012 = vrot.slane %v1011, 4
        %v1014 = vshll.u32 %v849, 16
        %v1016 = vrot.slane %v1014, 5
        %v1017 = vsel %vm332, %v1012, %v1016
        %v1018 = vshrl.u32 %v849, 16
        %v1020 = vrot.slane %v1018, 4
        %v1021 = vor.u32 %v1020, %v1016
        %v1022 = vrot.slane %v1021, 4
        %v1024 = vshll.u32 %v850, 16
        %v1026 = vrot.slane %v1024, 5
        %v1027 = vsel %vm332, %v1022, %v1026
        %v1029 = vshrl.u32 %v851, 16
        %v1031 = vrot.slane %v1029, 4
        %v1032 = vshll.u32 %v851, 16
        %v1034 = vrot.slane %v1032, 5
        %v1035 = vor.u32 %v1031, %v1034
        %v1036 = vrot.slane %v1035, 4
        %v1038 = vshll.u32 %v852, 16
        %v1040 = vrot.slane %v1038, 5
        %v1041 = vsel %vm332, %v1036, %v1040
        %v1042 = vshrl.u32 %v852, 16
        %v1044 = vrot.slane %v1042, 4
        %v1045 = vor.u32 %v1044, %v1040
        %v1046 = vrot.slane %v1045, 4
        %v1048 = vshll.u32 %v853, 16
        %v1050 = vrot.slane %v1048, 5
        %v1051 = vsel %vm332, %v1046, %v1050
        %v1053 = vshrl.u32 %v854, 16
        %v1055 = vrot.slane %v1053, 4
        %v1056 = vshll.u32 %v854, 16
        %v1058 = vrot.slane %v1056, 5
        %v1059 = vor.u32 %v1055, %v1058
        %v1060 = vrot.slane %v1059, 4
        %v1062 = vshll.u32 %v855, 16
        %v1064 = vrot.slane %v1062, 5
        %v1065 = vsel %vm332, %v1060, %v1064
        %v1066 = vshrl.u32 %v855, 16
        %v1068 = vrot.slane %v1066, 4
        %v1069 = vor.u32 %v1068, %v1064
        %v1070 = vrot.slane %v1069, 4
        %v1072 = vshll.u32 %v856, 16
        %v1074 = vrot.slane %v1072, 5
        %v1075 = vsel %vm332, %v1070, %v1074
        %v1077 = vshrl.u32 %v857, 16
        %v1079 = vrot.slane %v1077, 4
        %v1080 = vshll.u32 %v857, 16
        %v1082 = vrot.slane %v1080, 5
        %v1083 = vor.u32 %v1079, %v1082
        %v1084 = vrot.slane %v1083, 4
        %v1086 = vshll.u32 %v858, 16
        %v1088 = vrot.slane %v1086, 5
        %v1089 = vsel %vm332, %v1084, %v1088
        %v1090 = vshrl.u32 %v858, 16
        %v1092 = vrot.slane %v1090, 4
        %v1093 = vor.u32 %v1092, %v1088
        %v1094 = vrot.slane %v1093, 4
        %v1096 = vshll.u32 %v859, 16
        %v1098 = vrot.slane %v1096, 5
        %v1099 = vsel %vm332, %v1094, %v1098
        %1120 = vst [vmem:[#allocation2 + $0x10] sm:$0xf] %v873
        %1121 = vst [vmem:[#allocation2 + $0x34] sm:$0xf] %v883
        %1122 = vst [vmem:[#allocation2 + $0x58] sm:$0xf] %v897
        %1123 = vst [vmem:[#allocation2 + $0x7c] sm:$0xf] %v907
        %1124 = vst [vmem:[#allocation2 + $0xa0] sm:$0xf] %v921
        %1125 = vst [vmem:[#allocation2 + $0xc4] sm:$0xf] %v931
        %1126 = vst [vmem:[#allocation2 + $0xe8] sm:$0xf] %v945
        %1127 = vst [vmem:[#allocation2 + $0x10c] sm:$0xf] %v955
        %1128 = vst [vmem:[#allocation2 + $0x130] sm:$0xf] %v969
        %1129 = vst [vmem:[#allocation2 + $0x154] sm:$0xf] %v979
        %1130 = vst [vmem:[#allocation2 + $0x178] sm:$0xf] %v993
        %1131 = vst [vmem:[#allocation2 + $0x19c] sm:$0xf] %v1003
        %1132 = vst [vmem:[#allocation2 + $0x1c0] sm:$0xf] %v1017
        %1133 = vst [vmem:[#allocation2 + $0x1e4] sm:$0xf] %v1027
        %1134 = vst [vmem:[#allocation2 + $0x208] sm:$0xf] %v1041
        %1135 = vst [vmem:[#allocation2 + $0x22c] sm:$0xf] %v1051
        %1136 = vst [vmem:[#allocation2 + $0x250] sm:$0xf] %v1065
        %1137 = vst [vmem:[#allocation2 + $0x274] sm:$0xf] %v1075
        %1138 = vst [vmem:[#allocation2 + $0x298] sm:$0xf] %v1089
        %1139 = vst [vmem:[#allocation2 + $0x2bc] sm:$0xf] %v1099
        %v1140 = vld [vmem:[%s789] sm:$0xe]
        %v1141 = vld [vmem:[%s789 + $0x4] sm:$0xf]
        %v1142 = vld [vmem:[%s789 + $0x8] sm:$0x1]
        %v1143 = vld [vmem:[%s789 + $0xc] sm:$0xe]
        %v1144 = vld [vmem:[%s789 + $0x10] sm:$0xf]
        %v1145 = vld [vmem:[%s789 + $0x14] sm:$0x1]
        %v1146 = vld [vmem:[%s789 + $0x18] sm:$0xe]
        %v1147 = vld [vmem:[%s789 + $0x1c] sm:$0xf]
        %v1148 = vld [vmem:[%s789 + $0x20] sm:$0x1]
        %v1149 = vld [vmem:[%s789 + $0x24] sm:$0xe]
        %v1150 = vld [vmem:[%s789 + $0x28] sm:$0xf]
        %v1151 = vld [vmem:[%s789 + $0x2c] sm:$0x1]
        %v1152 = vld [vmem:[%s789 + $0x30] sm:$0xe]
        %v1153 = vld [vmem:[%s789 + $0x34] sm:$0xf]
        %v1154 = vld [vmem:[%s789 + $0x38] sm:$0x1]
        %v1155 = vld [vmem:[%s789 + $0x3c] sm:$0xe]
        %v1156 = vld [vmem:[%s789 + $0x40] sm:$0xf]
        %v1157 = vld [vmem:[%s789 + $0x44] sm:$0x1]
        %v1158 = vld [vmem:[%s789 + $0x48] sm:$0xe]
        %v1159 = vld [vmem:[%s789 + $0x4c] sm:$0xf]
        %v1160 = vld [vmem:[%s789 + $0x50] sm:$0x1]
        %v1161 = vld [vmem:[%s789 + $0x54] sm:$0xe]
        %v1162 = vld [vmem:[%s789 + $0x58] sm:$0xf]
        %v1163 = vld [vmem:[%s789 + $0x5c] sm:$0x1]
        %v1164 = vld [vmem:[%s789 + $0x60] sm:$0xe]
        %v1165 = vld [vmem:[%s789 + $0x64] sm:$0xf]
        %v1166 = vld [vmem:[%s789 + $0x68] sm:$0x1]
        %v1167 = vld [vmem:[%s789 + $0x6c] sm:$0xe]
        %v1168 = vld [vmem:[%s789 + $0x70] sm:$0xf]
        %v1169 = vld [vmem:[%s789 + $0x74] sm:$0x1]
        %v1200 = vrot.slane %v1140, 5
        %v1201 = vrot.slane %v1200, 4
        %v1202 = vrot.slane %v1141, 5
        %v1203 = vsel %vm675, %v1201, %v1202
        %v1204 = vrot.slane %v1202, 4
        %v1205 = vrot.slane %v1142, 5
        %v1206 = vsel %vm675, %v1204, %v1205
        %v1207 = vrot.slane %v1143, 5
        %v1208 = vrot.slane %v1207, 4
        %v1209 = vrot.slane %v1144, 5
        %v1210 = vsel %vm675, %v1208, %v1209
        %v1211 = vrot.slane %v1209, 4
        %v1212 = vrot.slane %v1145, 5
        %v1213 = vsel %vm675, %v1211, %v1212
        %v1214 = vrot.slane %v1146, 5
        %v1215 = vrot.slane %v1214, 4
        %v1216 = vrot.slane %v1147, 5
        %v1217 = vsel %vm675, %v1215, %v1216
        %v1218 = vrot.slane %v1216, 4
        %v1219 = vrot.slane %v1148, 5
        %v1220 = vsel %vm675, %v1218, %v1219
        %v1221 = vrot.slane %v1149, 5
        %v1222 = vrot.slane %v1221, 4
        %v1223 = vrot.slane %v1150, 5
        %v1224 = vsel %vm675, %v1222, %v1223
        %v1225 = vrot.slane %v1223, 4
        %v1226 = vrot.slane %v1151, 5
        %v1227 = vsel %vm675, %v1225, %v1226
        %v1228 = vrot.slane %v1152, 5
        %v1229 = vrot.slane %v1228, 4
        %v1230 = vrot.slane %v1153, 5
        %v1231 = vsel %vm675, %v1229, %v1230
        %v1232 = vrot.slane %v1230, 4
        %v1233 = vrot.slane %v1154, 5
        %v1234 = vsel %vm675, %v1232, %v1233
        %v1235 = vrot.slane %v1155, 5
        %v1236 = vrot.slane %v1235, 4
        %v1237 = vrot.slane %v1156, 5
        %v1238 = vsel %vm675, %v1236, %v1237
        %v1239 = vrot.slane %v1237, 4
        %v1240 = vrot.slane %v1157, 5
        %v1241 = vsel %vm675, %v1239, %v1240
        %v1242 = vrot.slane %v1158, 5
        %v1243 = vrot.slane %v1242, 4
        %v1244 = vrot.slane %v1159, 5
        %v1245 = vsel %vm675, %v1243, %v1244
        %v1246 = vrot.slane %v1244, 4
        %v1247 = vrot.slane %v1160, 5
        %v1248 = vsel %vm675, %v1246, %v1247
        %v1249 = vrot.slane %v1161, 5
        %v1250 = vrot.slane %v1249, 4
        %v1251 = vrot.slane %v1162, 5
        %v1252 = vsel %vm675, %v1250, %v1251
        %v1253 = vrot.slane %v1251, 4
        %v1254 = vrot.slane %v1163, 5
        %v1255 = vsel %vm675, %v1253, %v1254
        %v1256 = vrot.slane %v1164, 5
        %v1257 = vrot.slane %v1256, 4
        %v1258 = vrot.slane %v1165, 5
        %v1259 = vsel %vm675, %v1257, %v1258
        %v1260 = vrot.slane %v1258, 4
        %v1261 = vrot.slane %v1166, 5
        %v1262 = vsel %vm675, %v1260, %v1261
        %v1263 = vrot.slane %v1167, 5
        %v1264 = vrot.slane %v1263, 4
        %v1265 = vrot.slane %v1168, 5
        %v1266 = vsel %vm675, %v1264, %v1265
        %v1267 = vrot.slane %v1265, 4
        %v1268 = vrot.slane %v1169, 5
        %v1269 = vsel %vm675, %v1267, %v1268
        %1290 = vst [vmem:[#allocation2 + $0x14] sm:$0xf] %v1203
        %1291 = vst [vmem:[#allocation2 + $0x38] sm:$0xf] %v1206
        %1292 = vst [vmem:[#allocation2 + $0x5c] sm:$0xf] %v1210
        %1293 = vst [vmem:[#allocation2 + $0x80] sm:$0xf] %v1213
        %1294 = vst [vmem:[#allocation2 + $0xa4] sm:$0xf] %v1217
        %1295 = vst [vmem:[#allocation2 + $0xc8] sm:$0xf] %v1220
        %1296 = vst [vmem:[#allocation2 + $0xec] sm:$0xf] %v1224
        %1297 = vst [vmem:[#allocation2 + $0x110] sm:$0xf] %v1227
        %1298 = vst [vmem:[#allocation2 + $0x134] sm:$0xf] %v1231
        %1299 = vst [vmem:[#allocation2 + $0x158] sm:$0xf] %v1234
        %1300 = vst [vmem:[#allocation2 + $0x17c] sm:$0xf] %v1238
        %1301 = vst [vmem:[#allocation2 + $0x1a0] sm:$0xf] %v1241
        %1302 = vst [vmem:[#allocation2 + $0x1c4] sm:$0xf] %v1245
        %1303 = vst [vmem:[#allocation2 + $0x1e8] sm:$0xf] %v1248
        %1304 = vst [vmem:[#allocation2 + $0x20c] sm:$0xf] %v1252
        %1305 = vst [vmem:[#allocation2 + $0x230] sm:$0xf] %v1255
        %1306 = vst [vmem:[#allocation2 + $0x254] sm:$0xf] %v1259
        %1307 = vst [vmem:[#allocation2 + $0x278] sm:$0xf] %v1262
        %1308 = vst [vmem:[#allocation2 + $0x29c] sm:$0xf] %v1266
        %1309 = vst [vmem:[#allocation2 + $0x2c0] sm:$0xf] %v1269
        %s1310 = sadd.s32 %s256, 2
        %s1311 = smul.u32 %s1310, 3
        %s1312 = smul.addr %s1311, 4
        %s1313 = scalar_lea.vmem %s253, %s1312
        %v1314 = vld [vmem:[%s1313] sm:$0xf]
        %v1315 = vld [vmem:[%s1313 + $0x4] sm:$0xf]
        %v1316 = vld [vmem:[%s1313 + $0xc] sm:$0xf]
        %v1317 = vld [vmem:[%s1313 + $0x10] sm:$0xf]
        %v1318 = vld [vmem:[%s1313 + $0x18] sm:$0xf]
        %v1319 = vld [vmem:[%s1313 + $0x1c] sm:$0xf]
        %v1320 = vld [vmem:[%s1313 + $0x24] sm:$0xf]
        %v1321 = vld [vmem:[%s1313 + $0x28] sm:$0xf]
        %v1322 = vld [vmem:[%s1313 + $0x30] sm:$0xf]
        %v1323 = vld [vmem:[%s1313 + $0x34] sm:$0xf]
        %v1324 = vld [vmem:[%s1313 + $0x3c] sm:$0xf]
        %v1325 = vld [vmem:[%s1313 + $0x40] sm:$0xf]
        %v1326 = vld [vmem:[%s1313 + $0x48] sm:$0xf]
        %v1327 = vld [vmem:[%s1313 + $0x4c] sm:$0xf]
        %v1328 = vld [vmem:[%s1313 + $0x54] sm:$0xf]
        %v1329 = vld [vmem:[%s1313 + $0x58] sm:$0xf]
        %v1330 = vld [vmem:[%s1313 + $0x60] sm:$0xf]
        %v1331 = vld [vmem:[%s1313 + $0x64] sm:$0xf]
        %v1332 = vld [vmem:[%s1313 + $0x6c] sm:$0xf]
        %v1333 = vld [vmem:[%s1313 + $0x70] sm:$0xf]
        %1334 = vst [vmem:[#allocation2 + $0x18] sm:$0xf] %v1314
        %1335 = vst [vmem:[#allocation2 + $0x3c] sm:$0xf] %v1315
        %1336 = vst [vmem:[#allocation2 + $0x60] sm:$0xf] %v1316
        %1337 = vst [vmem:[#allocation2 + $0x84] sm:$0xf] %v1317
        %1338 = vst [vmem:[#allocation2 + $0xa8] sm:$0xf] %v1318
        %1339 = vst [vmem:[#allocation2 + $0xcc] sm:$0xf] %v1319
        %1340 = vst [vmem:[#allocation2 + $0xf0] sm:$0xf] %v1320
        %1341 = vst [vmem:[#allocation2 + $0x114] sm:$0xf] %v1321
        %1342 = vst [vmem:[#allocation2 + $0x138] sm:$0xf] %v1322
        %1343 = vst [vmem:[#allocation2 + $0x15c] sm:$0xf] %v1323
        %1344 = vst [vmem:[#allocation2 + $0x180] sm:$0xf] %v1324
        %1345 = vst [vmem:[#allocation2 + $0x1a4] sm:$0xf] %v1325
        %1346 = vst [vmem:[#allocation2 + $0x1c8] sm:$0xf] %v1326
        %1347 = vst [vmem:[#allocation2 + $0x1ec] sm:$0xf] %v1327
        %1348 = vst [vmem:[#allocation2 + $0x210] sm:$0xf] %v1328
        %1349 = vst [vmem:[#allocation2 + $0x234] sm:$0xf] %v1329
        %1350 = vst [vmem:[#allocation2 + $0x258] sm:$0xf] %v1330
        %1351 = vst [vmem:[#allocation2 + $0x27c] sm:$0xf] %v1331
        %1352 = vst [vmem:[#allocation2 + $0x2a0] sm:$0xf] %v1332
        %1353 = vst [vmem:[#allocation2 + $0x2c4] sm:$0xf] %v1333
        %v1354 = vld [vmem:[%s1313] sm:$0xf]
        %v1355 = vld [vmem:[%s1313 + $0x4] sm:$0xf]
        %v1356 = vld [vmem:[%s1313 + $0x8] sm:$0x1]
        %v1357 = vld [vmem:[%s1313 + $0xc] sm:$0xf]
        %v1358 = vld [vmem:[%s1313 + $0x10] sm:$0xf]
        %v1359 = vld [vmem:[%s1313 + $0x14] sm:$0x1]
        %v1360 = vld [vmem:[%s1313 + $0x18] sm:$0xf]
        %v1361 = vld [vmem:[%s1313 + $0x1c] sm:$0xf]
        %v1362 = vld [vmem:[%s1313 + $0x20] sm:$0x1]
        %v1363 = vld [vmem:[%s1313 + $0x24] sm:$0xf]
        %v1364 = vld [vmem:[%s1313 + $0x28] sm:$0xf]
        %v1365 = vld [vmem:[%s1313 + $0x2c] sm:$0x1]
        %v1366 = vld [vmem:[%s1313 + $0x30] sm:$0xf]
        %v1367 = vld [vmem:[%s1313 + $0x34] sm:$0xf]
        %v1368 = vld [vmem:[%s1313 + $0x38] sm:$0x1]
        %v1369 = vld [vmem:[%s1313 + $0x3c] sm:$0xf]
        %v1370 = vld [vmem:[%s1313 + $0x40] sm:$0xf]
        %v1371 = vld [vmem:[%s1313 + $0x44] sm:$0x1]
        %v1372 = vld [vmem:[%s1313 + $0x48] sm:$0xf]
        %v1373 = vld [vmem:[%s1313 + $0x4c] sm:$0xf]
        %v1374 = vld [vmem:[%s1313 + $0x50] sm:$0x1]
        %v1375 = vld [vmem:[%s1313 + $0x54] sm:$0xf]
        %v1376 = vld [vmem:[%s1313 + $0x58] sm:$0xf]
        %v1377 = vld [vmem:[%s1313 + $0x5c] sm:$0x1]
        %v1378 = vld [vmem:[%s1313 + $0x60] sm:$0xf]
        %v1379 = vld [vmem:[%s1313 + $0x64] sm:$0xf]
        %v1380 = vld [vmem:[%s1313 + $0x68] sm:$0x1]
        %v1381 = vld [vmem:[%s1313 + $0x6c] sm:$0xf]
        %v1382 = vld [vmem:[%s1313 + $0x70] sm:$0xf]
        %v1383 = vld [vmem:[%s1313 + $0x74] sm:$0x1]
        %v1385 = vshrl.u32 %v1354, 16
        %v1387 = vrot.slane %v1385, 4
        %v1388 = vshll.u32 %v1354, 16
        %v1390 = vrot.slane %v1388, 5
        %v1391 = vor.u32 %v1387, %v1390
        %v1392 = vrot.slane %v1391, 4
        %v1394 = vshll.u32 %v1355, 16
        %v1396 = vrot.slane %v1394, 5
        %v1397 = vsel %vm332, %v1392, %v1396
        %v1398 = vshrl.u32 %v1355, 16
        %v1400 = vrot.slane %v1398, 4
        %v1401 = vor.u32 %v1400, %v1396
        %v1402 = vrot.slane %v1401, 4
        %v1404 = vshll.u32 %v1356, 16
        %v1406 = vrot.slane %v1404, 5
        %v1407 = vsel %vm332, %v1402, %v1406
        %v1409 = vshrl.u32 %v1357, 16
        %v1411 = vrot.slane %v1409, 4
        %v1412 = vshll.u32 %v1357, 16
        %v1414 = vrot.slane %v1412, 5
        %v1415 = vor.u32 %v1411, %v1414
        %v1416 = vrot.slane %v1415, 4
        %v1418 = vshll.u32 %v1358, 16
        %v1420 = vrot.slane %v1418, 5
        %v1421 = vsel %vm332, %v1416, %v1420
        %v1422 = vshrl.u32 %v1358, 16
        %v1424 = vrot.slane %v1422, 4
        %v1425 = vor.u32 %v1424, %v1420
        %v1426 = vrot.slane %v1425, 4
        %v1428 = vshll.u32 %v1359, 16
        %v1430 = vrot.slane %v1428, 5
        %v1431 = vsel %vm332, %v1426, %v1430
        %v1433 = vshrl.u32 %v1360, 16
        %v1435 = vrot.slane %v1433, 4
        %v1436 = vshll.u32 %v1360, 16
        %v1438 = vrot.slane %v1436, 5
        %v1439 = vor.u32 %v1435, %v1438
        %v1440 = vrot.slane %v1439, 4
        %v1442 = vshll.u32 %v1361, 16
        %v1444 = vrot.slane %v1442, 5
        %v1445 = vsel %vm332, %v1440, %v1444
        %v1446 = vshrl.u32 %v1361, 16
        %v1448 = vrot.slane %v1446, 4
        %v1449 = vor.u32 %v1448, %v1444
        %v1450 = vrot.slane %v1449, 4
        %v1452 = vshll.u32 %v1362, 16
        %v1454 = vrot.slane %v1452, 5
        %v1455 = vsel %vm332, %v1450, %v1454
        %v1457 = vshrl.u32 %v1363, 16
        %v1459 = vrot.slane %v1457, 4
        %v1460 = vshll.u32 %v1363, 16
        %v1462 = vrot.slane %v1460, 5
        %v1463 = vor.u32 %v1459, %v1462
        %v1464 = vrot.slane %v1463, 4
        %v1466 = vshll.u32 %v1364, 16
        %v1468 = vrot.slane %v1466, 5
        %v1469 = vsel %vm332, %v1464, %v1468
        %v1470 = vshrl.u32 %v1364, 16
        %v1472 = vrot.slane %v1470, 4
        %v1473 = vor.u32 %v1472, %v1468
        %v1474 = vrot.slane %v1473, 4
        %v1476 = vshll.u32 %v1365, 16
        %v1478 = vrot.slane %v1476, 5
        %v1479 = vsel %vm332, %v1474, %v1478
        %v1481 = vshrl.u32 %v1366, 16
        %v1483 = vrot.slane %v1481, 4
        %v1484 = vshll.u32 %v1366, 16
        %v1486 = vrot.slane %v1484, 5
        %v1487 = vor.u32 %v1483, %v1486
        %v1488 = vrot.slane %v1487, 4
        %v1490 = vshll.u32 %v1367, 16
        %v1492 = vrot.slane %v1490, 5
        %v1493 = vsel %vm332, %v1488, %v1492
        %v1494 = vshrl.u32 %v1367, 16
        %v1496 = vrot.slane %v1494, 4
        %v1497 = vor.u32 %v1496, %v1492
        %v1498 = vrot.slane %v1497, 4
        %v1500 = vshll.u32 %v1368, 16
        %v1502 = vrot.slane %v1500, 5
        %v1503 = vsel %vm332, %v1498, %v1502
        %v1505 = vshrl.u32 %v1369, 16
        %v1507 = vrot.slane %v1505, 4
        %v1508 = vshll.u32 %v1369, 16
        %v1510 = vrot.slane %v1508, 5
        %v1511 = vor.u32 %v1507, %v1510
        %v1512 = vrot.slane %v1511, 4
        %v1514 = vshll.u32 %v1370, 16
        %v1516 = vrot.slane %v1514, 5
        %v1517 = vsel %vm332, %v1512, %v1516
        %v1518 = vshrl.u32 %v1370, 16
        %v1520 = vrot.slane %v1518, 4
        %v1521 = vor.u32 %v1520, %v1516
        %v1522 = vrot.slane %v1521, 4
        %v1524 = vshll.u32 %v1371, 16
        %v1526 = vrot.slane %v1524, 5
        %v1527 = vsel %vm332, %v1522, %v1526
        %v1529 = vshrl.u32 %v1372, 16
        %v1531 = vrot.slane %v1529, 4
        %v1532 = vshll.u32 %v1372, 16
        %v1534 = vrot.slane %v1532, 5
        %v1535 = vor.u32 %v1531, %v1534
        %v1536 = vrot.slane %v1535, 4
        %v1538 = vshll.u32 %v1373, 16
        %v1540 = vrot.slane %v1538, 5
        %v1541 = vsel %vm332, %v1536, %v1540
        %v1542 = vshrl.u32 %v1373, 16
        %v1544 = vrot.slane %v1542, 4
        %v1545 = vor.u32 %v1544, %v1540
        %v1546 = vrot.slane %v1545, 4
        %v1548 = vshll.u32 %v1374, 16
        %v1550 = vrot.slane %v1548, 5
        %v1551 = vsel %vm332, %v1546, %v1550
        %v1553 = vshrl.u32 %v1375, 16
        %v1555 = vrot.slane %v1553, 4
        %v1556 = vshll.u32 %v1375, 16
        %v1558 = vrot.slane %v1556, 5
        %v1559 = vor.u32 %v1555, %v1558
        %v1560 = vrot.slane %v1559, 4
        %v1562 = vshll.u32 %v1376, 16
        %v1564 = vrot.slane %v1562, 5
        %v1565 = vsel %vm332, %v1560, %v1564
        %v1566 = vshrl.u32 %v1376, 16
        %v1568 = vrot.slane %v1566, 4
        %v1569 = vor.u32 %v1568, %v1564
        %v1570 = vrot.slane %v1569, 4
        %v1572 = vshll.u32 %v1377, 16
        %v1574 = vrot.slane %v1572, 5
        %v1575 = vsel %vm332, %v1570, %v1574
        %v1577 = vshrl.u32 %v1378, 16
        %v1579 = vrot.slane %v1577, 4
        %v1580 = vshll.u32 %v1378, 16
        %v1582 = vrot.slane %v1580, 5
        %v1583 = vor.u32 %v1579, %v1582
        %v1584 = vrot.slane %v1583, 4
        %v1586 = vshll.u32 %v1379, 16
        %v1588 = vrot.slane %v1586, 5
        %v1589 = vsel %vm332, %v1584, %v1588
        %v1590 = vshrl.u32 %v1379, 16
        %v1592 = vrot.slane %v1590, 4
        %v1593 = vor.u32 %v1592, %v1588
        %v1594 = vrot.slane %v1593, 4
        %v1596 = vshll.u32 %v1380, 16
        %v1598 = vrot.slane %v1596, 5
        %v1599 = vsel %vm332, %v1594, %v1598
        %v1601 = vshrl.u32 %v1381, 16
        %v1603 = vrot.slane %v1601, 4
        %v1604 = vshll.u32 %v1381, 16
        %v1606 = vrot.slane %v1604, 5
        %v1607 = vor.u32 %v1603, %v1606
        %v1608 = vrot.slane %v1607, 4
        %v1610 = vshll.u32 %v1382, 16
        %v1612 = vrot.slane %v1610, 5
        %v1613 = vsel %vm332, %v1608, %v1612
        %v1614 = vshrl.u32 %v1382, 16
        %v1616 = vrot.slane %v1614, 4
        %v1617 = vor.u32 %v1616, %v1612
        %v1618 = vrot.slane %v1617, 4
        %v1620 = vshll.u32 %v1383, 16
        %v1622 = vrot.slane %v1620, 5
        %v1623 = vsel %vm332, %v1618, %v1622
        %1644 = vst [vmem:[#allocation2 + $0x1c] sm:$0xf] %v1397
        %1645 = vst [vmem:[#allocation2 + $0x40] sm:$0xf] %v1407
        %1646 = vst [vmem:[#allocation2 + $0x64] sm:$0xf] %v1421
        %1647 = vst [vmem:[#allocation2 + $0x88] sm:$0xf] %v1431
        %1648 = vst [vmem:[#allocation2 + $0xac] sm:$0xf] %v1445
        %1649 = vst [vmem:[#allocation2 + $0xd0] sm:$0xf] %v1455
        %1650 = vst [vmem:[#allocation2 + $0xf4] sm:$0xf] %v1469
        %1651 = vst [vmem:[#allocation2 + $0x118] sm:$0xf] %v1479
        %1652 = vst [vmem:[#allocation2 + $0x13c] sm:$0xf] %v1493
        %1653 = vst [vmem:[#allocation2 + $0x160] sm:$0xf] %v1503
        %1654 = vst [vmem:[#allocation2 + $0x184] sm:$0xf] %v1517
        %1655 = vst [vmem:[#allocation2 + $0x1a8] sm:$0xf] %v1527
        %1656 = vst [vmem:[#allocation2 + $0x1cc] sm:$0xf] %v1541
        %1657 = vst [vmem:[#allocation2 + $0x1f0] sm:$0xf] %v1551
        %1658 = vst [vmem:[#allocation2 + $0x214] sm:$0xf] %v1565
        %1659 = vst [vmem:[#allocation2 + $0x238] sm:$0xf] %v1575
        %1660 = vst [vmem:[#allocation2 + $0x25c] sm:$0xf] %v1589
        %1661 = vst [vmem:[#allocation2 + $0x280] sm:$0xf] %v1599
        %1662 = vst [vmem:[#allocation2 + $0x2a4] sm:$0xf] %v1613
        %1663 = vst [vmem:[#allocation2 + $0x2c8] sm:$0xf] %v1623
        %v1664 = vld [vmem:[%s1313] sm:$0xe]
        %v1665 = vld [vmem:[%s1313 + $0x4] sm:$0xf]
        %v1666 = vld [vmem:[%s1313 + $0x8] sm:$0x1]
        %v1667 = vld [vmem:[%s1313 + $0xc] sm:$0xe]
        %v1668 = vld [vmem:[%s1313 + $0x10] sm:$0xf]
        %v1669 = vld [vmem:[%s1313 + $0x14] sm:$0x1]
        %v1670 = vld [vmem:[%s1313 + $0x18] sm:$0xe]
        %v1671 = vld [vmem:[%s1313 + $0x1c] sm:$0xf]
        %v1672 = vld [vmem:[%s1313 + $0x20] sm:$0x1]
        %v1673 = vld [vmem:[%s1313 + $0x24] sm:$0xe]
        %v1674 = vld [vmem:[%s1313 + $0x28] sm:$0xf]
        %v1675 = vld [vmem:[%s1313 + $0x2c] sm:$0x1]
        %v1676 = vld [vmem:[%s1313 + $0x30] sm:$0xe]
        %v1677 = vld [vmem:[%s1313 + $0x34] sm:$0xf]
        %v1678 = vld [vmem:[%s1313 + $0x38] sm:$0x1]
        %v1679 = vld [vmem:[%s1313 + $0x3c] sm:$0xe]
        %v1680 = vld [vmem:[%s1313 + $0x40] sm:$0xf]
        %v1681 = vld [vmem:[%s1313 + $0x44] sm:$0x1]
        %v1682 = vld [vmem:[%s1313 + $0x48] sm:$0xe]
        %v1683 = vld [vmem:[%s1313 + $0x4c] sm:$0xf]
        %v1684 = vld [vmem:[%s1313 + $0x50] sm:$0x1]
        %v1685 = vld [vmem:[%s1313 + $0x54] sm:$0xe]
        %v1686 = vld [vmem:[%s1313 + $0x58] sm:$0xf]
        %v1687 = vld [vmem:[%s1313 + $0x5c] sm:$0x1]
        %v1688 = vld [vmem:[%s1313 + $0x60] sm:$0xe]
        %v1689 = vld [vmem:[%s1313 + $0x64] sm:$0xf]
        %v1690 = vld [vmem:[%s1313 + $0x68] sm:$0x1]
        %v1691 = vld [vmem:[%s1313 + $0x6c] sm:$0xe]
        %v1692 = vld [vmem:[%s1313 + $0x70] sm:$0xf]
        %v1693 = vld [vmem:[%s1313 + $0x74] sm:$0x1]
        %v1724 = vrot.slane %v1664, 5
        %v1725 = vrot.slane %v1724, 4
        %v1726 = vrot.slane %v1665, 5
        %v1727 = vsel %vm675, %v1725, %v1726
        %v1728 = vrot.slane %v1726, 4
        %v1729 = vrot.slane %v1666, 5
        %v1730 = vsel %vm675, %v1728, %v1729
        %v1731 = vrot.slane %v1667, 5
        %v1732 = vrot.slane %v1731, 4
        %v1733 = vrot.slane %v1668, 5
        %v1734 = vsel %vm675, %v1732, %v1733
        %v1735 = vrot.slane %v1733, 4
        %v1736 = vrot.slane %v1669, 5
        %v1737 = vsel %vm675, %v1735, %v1736
        %v1738 = vrot.slane %v1670, 5
        %v1739 = vrot.slane %v1738, 4
        %v1740 = vrot.slane %v1671, 5
        %v1741 = vsel %vm675, %v1739, %v1740
        %v1742 = vrot.slane %v1740, 4
        %v1743 = vrot.slane %v1672, 5
        %v1744 = vsel %vm675, %v1742, %v1743
        %v1745 = vrot.slane %v1673, 5
        %v1746 = vrot.slane %v1745, 4
        %v1747 = vrot.slane %v1674, 5
        %v1748 = vsel %vm675, %v1746, %v1747
        %v1749 = vrot.slane %v1747, 4
        %v1750 = vrot.slane %v1675, 5
        %v1751 = vsel %vm675, %v1749, %v1750
        %v1752 = vrot.slane %v1676, 5
        %v1753 = vrot.slane %v1752, 4
        %v1754 = vrot.slane %v1677, 5
        %v1755 = vsel %vm675, %v1753, %v1754
        %v1756 = vrot.slane %v1754, 4
        %v1757 = vrot.slane %v1678, 5
        %v1758 = vsel %vm675, %v1756, %v1757
        %v1759 = vrot.slane %v1679, 5
        %v1760 = vrot.slane %v1759, 4
        %v1761 = vrot.slane %v1680, 5
        %v1762 = vsel %vm675, %v1760, %v1761
        %v1763 = vrot.slane %v1761, 4
        %v1764 = vrot.slane %v1681, 5
        %v1765 = vsel %vm675, %v1763, %v1764
        %v1766 = vrot.slane %v1682, 5
        %v1767 = vrot.slane %v1766, 4
        %v1768 = vrot.slane %v1683, 5
        %v1769 = vsel %vm675, %v1767, %v1768
        %v1770 = vrot.slane %v1768, 4
        %v1771 = vrot.slane %v1684, 5
        %v1772 = vsel %vm675, %v1770, %v1771
        %v1773 = vrot.slane %v1685, 5
        %v1774 = vrot.slane %v1773, 4
        %v1775 = vrot.slane %v1686, 5
        %v1776 = vsel %vm675, %v1774, %v1775
        %v1777 = vrot.slane %v1775, 4
        %v1778 = vrot.slane %v1687, 5
        %v1779 = vsel %vm675, %v1777, %v1778
        %v1780 = vrot.slane %v1688, 5
        %v1781 = vrot.slane %v1780, 4
        %v1782 = vrot.slane %v1689, 5
        %v1783 = vsel %vm675, %v1781, %v1782
        %v1784 = vrot.slane %v1782, 4
        %v1785 = vrot.slane %v1690, 5
        %v1786 = vsel %vm675, %v1784, %v1785
        %v1787 = vrot.slane %v1691, 5
        %v1788 = vrot.slane %v1787, 4
        %v1789 = vrot.slane %v1692, 5
        %v1790 = vsel %vm675, %v1788, %v1789
        %v1791 = vrot.slane %v1789, 4
        %v1792 = vrot.slane %v1693, 5
        %v1793 = vsel %vm675, %v1791, %v1792
        %1814 = vst [vmem:[#allocation2 + $0x20] sm:$0xf] %v1727
        %1815 = vst [vmem:[#allocation2 + $0x44] sm:$0xf] %v1730
        %1816 = vst [vmem:[#allocation2 + $0x68] sm:$0xf] %v1734
        %1817 = vst [vmem:[#allocation2 + $0x8c] sm:$0xf] %v1737
        %1818 = vst [vmem:[#allocation2 + $0xb0] sm:$0xf] %v1741
        %1819 = vst [vmem:[#allocation2 + $0xd4] sm:$0xf] %v1744
        %1820 = vst [vmem:[#allocation2 + $0xf8] sm:$0xf] %v1748
        %1821 = vst [vmem:[#allocation2 + $0x11c] sm:$0xf] %v1751
        %1822 = vst [vmem:[#allocation2 + $0x140] sm:$0xf] %v1755
        %1823 = vst [vmem:[#allocation2 + $0x164] sm:$0xf] %v1758
        %1824 = vst [vmem:[#allocation2 + $0x188] sm:$0xf] %v1762
        %1825 = vst [vmem:[#allocation2 + $0x1ac] sm:$0xf] %v1765
        %1826 = vst [vmem:[#allocation2 + $0x1d0] sm:$0xf] %v1769
        %1827 = vst [vmem:[#allocation2 + $0x1f4] sm:$0xf] %v1772
        %1828 = vst [vmem:[#allocation2 + $0x218] sm:$0xf] %v1776
        %1829 = vst [vmem:[#allocation2 + $0x23c] sm:$0xf] %v1779
        %1830 = vst [vmem:[#allocation2 + $0x260] sm:$0xf] %v1783
        %1831 = vst [vmem:[#allocation2 + $0x284] sm:$0xf] %v1786
        %1832 = vst [vmem:[#allocation2 + $0x2a8] sm:$0xf] %v1790
        %1833 = vst [vmem:[#allocation2 + $0x2cc] sm:$0xf] %v1793
        %v1834 = vld [vmem:[#allocation2] sm:$0xff]
        %v1835 = vld [vmem:[#allocation2 + $0x8] sm:$0xff]
        %v1836 = vld [vmem:[#allocation2 + $0x10] sm:$0xff]
        %v1837 = vld [vmem:[#allocation2 + $0x18] sm:$0xff]
        %v1838 = vld [vmem:[#allocation2 + $0x20] sm:$0xf]
        %v1839 = vld [vmem:[#allocation2 + $0x24] sm:$0xff]
        %v1840 = vld [vmem:[#allocation2 + $0x2c] sm:$0xff]
        %v1841 = vld [vmem:[#allocation2 + $0x34] sm:$0xff]
        %v1842 = vld [vmem:[#allocation2 + $0x3c] sm:$0xff]
        %v1843 = vld [vmem:[#allocation2 + $0x44] sm:$0xf]
        %v1844 = vld [vmem:[#allocation2 + $0x48] sm:$0xff]
        %v1845 = vld [vmem:[#allocation2 + $0x50] sm:$0xff]
        %v1846 = vld [vmem:[#allocation2 + $0x58] sm:$0xff]
        %v1847 = vld [vmem:[#allocation2 + $0x60] sm:$0xff]
        %v1848 = vld [vmem:[#allocation2 + $0x68] sm:$0xf]
        %v1849 = vld [vmem:[#allocation2 + $0x6c] sm:$0xff]
        %v1850 = vld [vmem:[#allocation2 + $0x74] sm:$0xff]
        %v1851 = vld [vmem:[#allocation2 + $0x7c] sm:$0xff]
        %v1852 = vld [vmem:[#allocation2 + $0x84] sm:$0xff]
        %v1853 = vld [vmem:[#allocation2 + $0x8c] sm:$0xf]
        %v1854 = vld [vmem:[#allocation2 + $0x90] sm:$0xff]
        %v1855 = vld [vmem:[#allocation2 + $0x98] sm:$0xff]
        %v1856 = vld [vmem:[#allocation2 + $0xa0] sm:$0xff]
        %v1857 = vld [vmem:[#allocation2 + $0xa8] sm:$0xff]
        %v1858 = vld [vmem:[#allocation2 + $0xb0] sm:$0xf]
        %v1859 = vld [vmem:[#allocation2 + $0xb4] sm:$0xff]
        %v1860 = vld [vmem:[#allocation2 + $0xbc] sm:$0xff]
        %v1861 = vld [vmem:[#allocation2 + $0xc4] sm:$0xff]
        %v1862 = vld [vmem:[#allocation2 + $0xcc] sm:$0xff]
        %v1863 = vld [vmem:[#allocation2 + $0xd4] sm:$0xf]
        %v1864 = vld [vmem:[#allocation2 + $0xd8] sm:$0xff]
        %v1865 = vld [vmem:[#allocation2 + $0xe0] sm:$0xff]
        %v1866 = vld [vmem:[#allocation2 + $0xe8] sm:$0xff]
        %v1867 = vld [vmem:[#allocation2 + $0xf0] sm:$0xff]
        %v1868 = vld [vmem:[#allocation2 + $0xf8] sm:$0xf]
        %v1869 = vld [vmem:[#allocation2 + $0xfc] sm:$0xff]
        %v1870 = vld [vmem:[#allocation2 + $0x104] sm:$0xff]
        %v1871 = vld [vmem:[#allocation2 + $0x10c] sm:$0xff]
        %v1872 = vld [vmem:[#allocation2 + $0x114] sm:$0xff]
        %v1873 = vld [vmem:[#allocation2 + $0x11c] sm:$0xf]
        %v1874 = vld [vmem:[#allocation2 + $0x120] sm:$0xff]
        %v1875 = vld [vmem:[#allocation2 + $0x128] sm:$0xff]
        %v1876 = vld [vmem:[#allocation2 + $0x130] sm:$0xff]
        %v1877 = vld [vmem:[#allocation2 + $0x138] sm:$0xff]
        %v1878 = vld [vmem:[#allocation2 + $0x140] sm:$0xf]
        %v1879 = vld [vmem:[#allocation2 + $0x144] sm:$0xff]
        %v1880 = vld [vmem:[#allocation2 + $0x14c] sm:$0xff]
        %v1881 = vld [vmem:[#allocation2 + $0x154] sm:$0xff]
        %v1882 = vld [vmem:[#allocation2 + $0x15c] sm:$0xff]
        %v1883 = vld [vmem:[#allocation2 + $0x164] sm:$0xf]
        %v1884 = vld [vmem:[#allocation2 + $0x168] sm:$0xff]
        %v1885 = vld [vmem:[#allocation2 + $0x170] sm:$0xff]
        %v1886 = vld [vmem:[#allocation2 + $0x178] sm:$0xff]
        %v1887 = vld [vmem:[#allocation2 + $0x180] sm:$0xff]
        %v1888 = vld [vmem:[#allocation2 + $0x188] sm:$0xf]
        %v1889 = vld [vmem:[#allocation2 + $0x18c] sm:$0xff]
        %v1890 = vld [vmem:[#allocation2 + $0x194] sm:$0xff]
        %v1891 = vld [vmem:[#allocation2 + $0x19c] sm:$0xff]
        %v1892 = vld [vmem:[#allocation2 + $0x1a4] sm:$0xff]
        %v1893 = vld [vmem:[#allocation2 + $0x1ac] sm:$0xf]
        %v1894 = vld [vmem:[#allocation2 + $0x1b0] sm:$0xff]
        %v1895 = vld [vmem:[#allocation2 + $0x1b8] sm:$0xff]
        %v1896 = vld [vmem:[#allocation2 + $0x1c0] sm:$0xff]
        %v1897 = vld [vmem:[#allocation2 + $0x1c8] sm:$0xff]
        %v1898 = vld [vmem:[#allocation2 + $0x1d0] sm:$0xf]
        %v1899 = vld [vmem:[#allocation2 + $0x1d4] sm:$0xff]
        %v1900 = vld [vmem:[#allocation2 + $0x1dc] sm:$0xff]
        %v1901 = vld [vmem:[#allocation2 + $0x1e4] sm:$0xff]
        %v1902 = vld [vmem:[#allocation2 + $0x1ec] sm:$0xff]
        %v1903 = vld [vmem:[#allocation2 + $0x1f4] sm:$0xf]
        %v1904 = vld [vmem:[#allocation2 + $0x1f8] sm:$0xff]
        %v1905 = vld [vmem:[#allocation2 + $0x200] sm:$0xff]
        %v1906 = vld [vmem:[#allocation2 + $0x208] sm:$0xff]
        %v1907 = vld [vmem:[#allocation2 + $0x210] sm:$0xff]
        %v1908 = vld [vmem:[#allocation2 + $0x218] sm:$0xf]
        %v1909 = vld [vmem:[#allocation2 + $0x21c] sm:$0xff]
        %v1910 = vld [vmem:[#allocation2 + $0x224] sm:$0xff]
        %v1911 = vld [vmem:[#allocation2 + $0x22c] sm:$0xff]
        %v1912 = vld [vmem:[#allocation2 + $0x234] sm:$0xff]
        %v1913 = vld [vmem:[#allocation2 + $0x23c] sm:$0xf]
        %v1914 = vld [vmem:[#allocation2 + $0x240] sm:$0xff]
        %v1915 = vld [vmem:[#allocation2 + $0x248] sm:$0xff]
        %v1916 = vld [vmem:[#allocation2 + $0x250] sm:$0xff]
        %v1917 = vld [vmem:[#allocation2 + $0x258] sm:$0xff]
        %v1918 = vld [vmem:[#allocation2 + $0x260] sm:$0xf]
        %v1919 = vld [vmem:[#allocation2 + $0x264] sm:$0xff]
        %v1920 = vld [vmem:[#allocation2 + $0x26c] sm:$0xff]
        %v1921 = vld [vmem:[#allocation2 + $0x274] sm:$0xff]
        %v1922 = vld [vmem:[#allocation2 + $0x27c] sm:$0xff]
        %v1923 = vld [vmem:[#allocation2 + $0x284] sm:$0xf]
        %v1924 = vld [vmem:[#allocation2 + $0x288] sm:$0xff]
        %v1925 = vld [vmem:[#allocation2 + $0x290] sm:$0xff]
        %v1926 = vld [vmem:[#allocation2 + $0x298] sm:$0xff]
        %v1927 = vld [vmem:[#allocation2 + $0x2a0] sm:$0xff]
        %v1928 = vld [vmem:[#allocation2 + $0x2a8] sm:$0xf]
        %v1929 = vld [vmem:[#allocation2 + $0x2ac] sm:$0xff]
        %v1930 = vld [vmem:[#allocation2 + $0x2b4] sm:$0xff]
        %v1931 = vld [vmem:[#allocation2 + $0x2bc] sm:$0xff]
        %v1932 = vld [vmem:[#allocation2 + $0x2c4] sm:$0xff]
        %v1933 = vld [vmem:[#allocation2 + $0x2cc] sm:$0xf]
        %v1934 = vld [vmem:[%s1] sm:$0xf]
        %v1935 = vld [vmem:[%s1 + $0x4] sm:$0xf]
        %v1936 = vld [vmem:[%s1 + $0x8] sm:$0xf]
        %v1937 = vld [vmem:[%s1 + $0xc] sm:$0xf]
        %v1938 = vld [vmem:[%s1 + $0x10] sm:$0xf]
        %v1939 = vld [vmem:[%s1 + $0x14] sm:$0xf]
        %v1940 = vld [vmem:[%s1 + $0x18] sm:$0xf]
        %v1941 = vld [vmem:[%s1 + $0x1c] sm:$0xf]
        %v1942 = vld [vmem:[%s1 + $0x20] sm:$0xf]
        %v1943 = vld [vmem:[%s1 + $0x24] sm:$0xf]
        %v1944 = vld [vmem:[%s1 + $0x28] sm:$0xf]
        %v1945 = vld [vmem:[%s1 + $0x2c] sm:$0xf]
        %v1946 = vld [vmem:[%s1 + $0x30] sm:$0xf]
        %v1947 = vld [vmem:[%s1 + $0x34] sm:$0xf]
        %v1948 = vld [vmem:[%s1 + $0x38] sm:$0xf]
        %v1949 = vld [vmem:[%s1 + $0x3c] sm:$0xf]
        %v1950 = vld [vmem:[%s1 + $0x40] sm:$0xf]
        %v1951 = vld [vmem:[%s1 + $0x44] sm:$0xf]
        %v1952 = vld [vmem:[%s1 + $0x48] sm:$0xf]
        %v1953 = vld [vmem:[%s1 + $0x4c] sm:$0xf]
        %v1954 = vld [vmem:[%s1 + $0x50] sm:$0xf]
        %v1955 = vld [vmem:[%s1 + $0x54] sm:$0xf]
        %v1956 = vld [vmem:[%s1 + $0x58] sm:$0xf]
        %v1957 = vld [vmem:[%s1 + $0x5c] sm:$0xf]
        %v1958 = vld [vmem:[%s1 + $0x60] sm:$0xf]
        %v1959 = vld [vmem:[%s1 + $0x64] sm:$0xf]
        %v1960 = vld [vmem:[%s1 + $0x68] sm:$0xf]
        %v1961 = vld [vmem:[%s1 + $0x6c] sm:$0xf]
        %v1962 = vld [vmem:[%s1 + $0x70] sm:$0xf]
        %v1963 = vld [vmem:[%s1 + $0x74] sm:$0xf]
        %v1964 = vld [vmem:[%s1 + $0x78] sm:$0xf]
        %v1965 = vld [vmem:[%s1 + $0x7c] sm:$0xf]
        %v1966 = vld [vmem:[%s1 + $0x80] sm:$0xf]
        %v1967 = vld [vmem:[%s1 + $0x84] sm:$0xf]
        %v1968 = vld [vmem:[%s1 + $0x88] sm:$0xf]
        %v1969 = vld [vmem:[%s1 + $0x8c] sm:$0xf]
        %v1970 = vld [vmem:[%s1 + $0x90] sm:$0xf]
        %v1971 = vld [vmem:[%s1 + $0x94] sm:$0xf]
        %v1972 = vld [vmem:[%s1 + $0x98] sm:$0xf]
        %v1973 = vld [vmem:[%s1 + $0x9c] sm:$0xf]
        %v1974 = vld [vmem:[%s1 + $0xa0] sm:$0xf]
        %v1975 = vld [vmem:[%s1 + $0xa4] sm:$0xf]
        %v1976 = vld [vmem:[%s1 + $0xa8] sm:$0xf]
        %v1977 = vld [vmem:[%s1 + $0xac] sm:$0xf]
        %v1978 = vld [vmem:[%s1 + $0xb0] sm:$0xf]
        %v1979 = vld [vmem:[%s1 + $0xb4] sm:$0xf]
        %v1980 = vld [vmem:[%s1 + $0xb8] sm:$0xf]
        %v1981 = vld [vmem:[%s1 + $0xbc] sm:$0xf]
        %v1982 = vld [vmem:[%s1 + $0xc0] sm:$0xf]
        %v1983 = vld [vmem:[%s1 + $0xc4] sm:$0xf]
        %v1984 = vld [vmem:[%s1 + $0xc8] sm:$0xf]
        %v1985 = vld [vmem:[%s1 + $0xcc] sm:$0xf]
        %v1986 = vld [vmem:[%s1 + $0xd0] sm:$0xf]
        %v1987 = vld [vmem:[%s1 + $0xd4] sm:$0xf]
        %v1988 = vld [vmem:[%s1 + $0xd8] sm:$0xf]
        %v1989 = vld [vmem:[%s1 + $0xdc] sm:$0xf]
        %v1990 = vld [vmem:[%s1 + $0xe0] sm:$0xf]
        %v1991 = vld [vmem:[%s1 + $0xe4] sm:$0xf]
        %v1992 = vld [vmem:[%s1 + $0xe8] sm:$0xf]
        %v1993 = vld [vmem:[%s1 + $0xec] sm:$0xf]
        %v1994 = vld [vmem:[%s1 + $0xf0] sm:$0xf]
        %v1995 = vld [vmem:[%s1 + $0xf4] sm:$0xf]
        %v1996 = vld [vmem:[%s1 + $0xf8] sm:$0xf]
        %v1997 = vld [vmem:[%s1 + $0xfc] sm:$0xf]
        %v1998 = vld [vmem:[%s1 + $0x100] sm:$0xf]
        %v1999 = vld [vmem:[%s1 + $0x104] sm:$0xf]
        %v2000 = vld [vmem:[%s1 + $0x108] sm:$0xf]
        %v2001 = vld [vmem:[%s1 + $0x10c] sm:$0xf]
        %v2002 = vld [vmem:[%s1 + $0x110] sm:$0xf]
        %v2003 = vld [vmem:[%s1 + $0x114] sm:$0xf]
        %v2004 = vld [vmem:[%s1 + $0x118] sm:$0xf]
        %v2005 = vld [vmem:[%s1 + $0x11c] sm:$0xf]
        %v2006 = vld [vmem:[%s1 + $0x120] sm:$0xf]
        %v2007 = vld [vmem:[%s1 + $0x124] sm:$0xf]
        %v2008 = vld [vmem:[%s1 + $0x128] sm:$0xf]
        %v2009 = vld [vmem:[%s1 + $0x12c] sm:$0xf]
        %v2010 = vld [vmem:[%s1 + $0x130] sm:$0xf]
        %v2011 = vld [vmem:[%s1 + $0x134] sm:$0xf]
        %v2012 = vld [vmem:[%s1 + $0x138] sm:$0xf]
        %v2013 = vld [vmem:[%s1 + $0x13c] sm:$0xf]
        %v2014 = vld [vmem:[%s1 + $0x140] sm:$0xf]
        %v2015 = vld [vmem:[%s1 + $0x144] sm:$0xf]
        %v2016 = vld [vmem:[%s1 + $0x148] sm:$0xf]
        %v2017 = vld [vmem:[%s1 + $0x14c] sm:$0xf]
        %v2018 = vld [vmem:[%s1 + $0x150] sm:$0xf]
        %v2019 = vld [vmem:[%s1 + $0x154] sm:$0xf]
        %v2020 = vld [vmem:[%s1 + $0x158] sm:$0xf]
        %v2021 = vld [vmem:[%s1 + $0x15c] sm:$0xf]
        %v2022 = vld [vmem:[%s1 + $0x160] sm:$0xf]
        %v2023 = vld [vmem:[%s1 + $0x164] sm:$0xf]
        %v2024 = vld [vmem:[%s1 + $0x168] sm:$0xf]
        %v2025 = vld [vmem:[%s1 + $0x16c] sm:$0xf]
        %v2026 = vld [vmem:[%s1 + $0x170] sm:$0xf]
        %v2027 = vld [vmem:[%s1 + $0x174] sm:$0xf]
        %v2028 = vld [vmem:[%s1 + $0x178] sm:$0xf]
        %v2029 = vld [vmem:[%s1 + $0x17c] sm:$0xf]
        %v2030 = vld [vmem:[%s1 + $0x180] sm:$0xf]
        %v2031 = vld [vmem:[%s1 + $0x184] sm:$0xf]
        %v2032 = vld [vmem:[%s1 + $0x188] sm:$0xf]
        %v2033 = vld [vmem:[%s1 + $0x18c] sm:$0xf]
        %v2034 = vld [vmem:[%s1 + $0x190] sm:$0xf]
        %v2035 = vld [vmem:[%s1 + $0x194] sm:$0xf]
        %v2036 = vld [vmem:[%s1 + $0x198] sm:$0xf]
        %v2037 = vld [vmem:[%s1 + $0x19c] sm:$0xf]
        %v2038 = vld [vmem:[%s1 + $0x1a0] sm:$0xf]
        %v2039 = vld [vmem:[%s1 + $0x1a4] sm:$0xf]
        %v2040 = vld [vmem:[%s1 + $0x1a8] sm:$0xf]
        %v2041 = vld [vmem:[%s1 + $0x1ac] sm:$0xf]
        %v2042 = vld [vmem:[%s1 + $0x1b0] sm:$0xf]
        %v2043 = vld [vmem:[%s1 + $0x1b4] sm:$0xf]
        %v2044 = vld [vmem:[%s1 + $0x1b8] sm:$0xf]
        %v2045 = vld [vmem:[%s1 + $0x1bc] sm:$0xf]
        %v2046 = vld [vmem:[%s1 + $0x1c0] sm:$0xf]
        %v2047 = vld [vmem:[%s1 + $0x1c4] sm:$0xf]
        %v2048 = vld [vmem:[%s1 + $0x1c8] sm:$0xf]
        %v2049 = vld [vmem:[%s1 + $0x1cc] sm:$0xf]
        %v2050 = vld [vmem:[%s1 + $0x1d0] sm:$0xf]
        %v2051 = vld [vmem:[%s1 + $0x1d4] sm:$0xf]
        %v2052 = vld [vmem:[%s1 + $0x1d8] sm:$0xf]
        %v2053 = vld [vmem:[%s1 + $0x1dc] sm:$0xf]
        %v2054 = vld [vmem:[%s1 + $0x1e0] sm:$0xf]
        %v2055 = vld [vmem:[%s1 + $0x1e4] sm:$0xf]
        %v2056 = vld [vmem:[%s1 + $0x1e8] sm:$0xf]
        %v2057 = vld [vmem:[%s1 + $0x1ec] sm:$0xf]
        %v2058 = vld [vmem:[%s1 + $0x1f0] sm:$0xf]
        %v2059 = vld [vmem:[%s1 + $0x1f4] sm:$0xf]
        %v2060 = vld [vmem:[%s1 + $0x1f8] sm:$0xf]
        %v2061 = vld [vmem:[%s1 + $0x1fc] sm:$0xf]
        %v2062 = vld [vmem:[%s1 + $0x200] sm:$0xf]
        %v2063 = vld [vmem:[%s1 + $0x204] sm:$0xf]
        %v2064 = vld [vmem:[%s1 + $0x208] sm:$0xf]
        %v2065 = vld [vmem:[%s1 + $0x20c] sm:$0xf]
        %v2066 = vld [vmem:[%s1 + $0x210] sm:$0xf]
        %v2067 = vld [vmem:[%s1 + $0x214] sm:$0xf]
        %v2068 = vld [vmem:[%s1 + $0x218] sm:$0xf]
        %v2069 = vld [vmem:[%s1 + $0x21c] sm:$0xf]
        %v2070 = vld [vmem:[%s1 + $0x220] sm:$0xf]
        %v2071 = vld [vmem:[%s1 + $0x224] sm:$0xf]
        %v2072 = vld [vmem:[%s1 + $0x228] sm:$0xf]
        %v2073 = vld [vmem:[%s1 + $0x22c] sm:$0xf]
        %v2074 = vld [vmem:[%s1 + $0x230] sm:$0xf]
        %v2075 = vld [vmem:[%s1 + $0x234] sm:$0xf]
        %v2076 = vld [vmem:[%s1 + $0x238] sm:$0xf]
        %v2077 = vld [vmem:[%s1 + $0x23c] sm:$0xf]
        %v2078 = vld [vmem:[%s3] sm:$0x1]
        %v2080 = vperm.slane %v2078, 0
        %v2182 = vunpack.c.l.b16 %v1834
        %v2183 = vunpack.c.h.b16 %v1834
        %v2184 = vunpack.c.l.b16 %v1835
        %v2185 = vunpack.c.h.b16 %v1835
        %v2186 = vunpack.c.l.b16 %v1836
        %v2187 = vunpack.c.h.b16 %v1836
        %v2188 = vunpack.c.l.b16 %v1837
        %v2189 = vunpack.c.h.b16 %v1837
        %v2190 = vunpack.c.l.b16 %v1838
        %v2191 = vunpack.c.l.b16 %v1839
        %v2192 = vunpack.c.h.b16 %v1839
        %v2193 = vunpack.c.l.b16 %v1840
        %v2194 = vunpack.c.h.b16 %v1840
        %v2195 = vunpack.c.l.b16 %v1841
        %v2196 = vunpack.c.h.b16 %v1841
        %v2197 = vunpack.c.l.b16 %v1842
        %v2198 = vunpack.c.h.b16 %v1842
        %v2199 = vunpack.c.l.b16 %v1843
        %v2200 = vunpack.c.l.b16 %v1844
        %v2201 = vunpack.c.h.b16 %v1844
        %v2202 = vunpack.c.l.b16 %v1845
        %v2203 = vunpack.c.h.b16 %v1845
        %v2204 = vunpack.c.l.b16 %v1846
        %v2205 = vunpack.c.h.b16 %v1846
        %v2206 = vunpack.c.l.b16 %v1847
        %v2207 = vunpack.c.h.b16 %v1847
        %v2208 = vunpack.c.l.b16 %v1848
        %v2209 = vunpack.c.l.b16 %v1849
        %v2210 = vunpack.c.h.b16 %v1849
        %v2211 = vunpack.c.l.b16 %v1850
        %v2212 = vunpack.c.h.b16 %v1850
        %v2213 = vunpack.c.l.b16 %v1851
        %v2214 = vunpack.c.h.b16 %v1851
        %v2215 = vunpack.c.l.b16 %v1852
        %v2216 = vunpack.c.h.b16 %v1852
        %v2217 = vunpack.c.l.b16 %v1853
        %v2218 = vunpack.c.l.b16 %v1854
        %v2219 = vunpack.c.h.b16 %v1854
        %v2220 = vunpack.c.l.b16 %v1855
        %v2221 = vunpack.c.h.b16 %v1855
        %v2222 = vunpack.c.l.b16 %v1856
        %v2223 = vunpack.c.h.b16 %v1856
        %v2224 = vunpack.c.l.b16 %v1857
        %v2225 = vunpack.c.h.b16 %v1857
        %v2226 = vunpack.c.l.b16 %v1858
        %v2227 = vunpack.c.l.b16 %v1859
        %v2228 = vunpack.c.h.b16 %v1859
        %v2229 = vunpack.c.l.b16 %v1860
        %v2230 = vunpack.c.h.b16 %v1860
        %v2231 = vunpack.c.l.b16 %v1861
        %v2232 = vunpack.c.h.b16 %v1861
        %v2233 = vunpack.c.l.b16 %v1862
        %v2234 = vunpack.c.h.b16 %v1862
        %v2235 = vunpack.c.l.b16 %v1863
        %v2236 = vunpack.c.l.b16 %v1864
        %v2237 = vunpack.c.h.b16 %v1864
        %v2238 = vunpack.c.l.b16 %v1865
        %v2239 = vunpack.c.h.b16 %v1865
        %v2240 = vunpack.c.l.b16 %v1866
        %v2241 = vunpack.c.h.b16 %v1866
        %v2242 = vunpack.c.l.b16 %v1867
        %v2243 = vunpack.c.h.b16 %v1867
        %v2244 = vunpack.c.l.b16 %v1868
        %v2245 = vunpack.c.l.b16 %v1869
        %v2246 = vunpack.c.h.b16 %v1869
        %v2247 = vunpack.c.l.b16 %v1870
        %v2248 = vunpack.c.h.b16 %v1870
        %v2249 = vunpack.c.l.b16 %v1871
        %v2250 = vunpack.c.h.b16 %v1871
        %v2251 = vunpack.c.l.b16 %v1872
        %v2252 = vunpack.c.h.b16 %v1872
        %v2253 = vunpack.c.l.b16 %v1873
        %v2254 = vunpack.c.l.b16 %v1874
        %v2255 = vunpack.c.h.b16 %v1874
        %v2256 = vunpack.c.l.b16 %v1875
        %v2257 = vunpack.c.h.b16 %v1875
        %v2258 = vunpack.c.l.b16 %v1876
        %v2259 = vunpack.c.h.b16 %v1876
        %v2260 = vunpack.c.l.b16 %v1877
        %v2261 = vunpack.c.h.b16 %v1877
        %v2262 = vunpack.c.l.b16 %v1878
        %v2263 = vunpack.c.l.b16 %v1879
        %v2264 = vunpack.c.h.b16 %v1879
        %v2265 = vunpack.c.l.b16 %v1880
        %v2266 = vunpack.c.h.b16 %v1880
        %v2267 = vunpack.c.l.b16 %v1881
        %v2268 = vunpack.c.h.b16 %v1881
        %v2269 = vunpack.c.l.b16 %v1882
        %v2270 = vunpack.c.h.b16 %v1882
        %v2271 = vunpack.c.l.b16 %v1883
        %v2272 = vunpack.c.l.b16 %v1884
        %v2273 = vunpack.c.h.b16 %v1884
        %v2274 = vunpack.c.l.b16 %v1885
        %v2275 = vunpack.c.h.b16 %v1885
        %v2276 = vunpack.c.l.b16 %v1886
        %v2277 = vunpack.c.h.b16 %v1886
        %v2278 = vunpack.c.l.b16 %v1887
        %v2279 = vunpack.c.h.b16 %v1887
        %v2280 = vunpack.c.l.b16 %v1888
        %v2281 = vunpack.c.l.b16 %v1889
        %v2282 = vunpack.c.h.b16 %v1889
        %v2283 = vunpack.c.l.b16 %v1890
        %v2284 = vunpack.c.h.b16 %v1890
        %v2285 = vunpack.c.l.b16 %v1891
        %v2286 = vunpack.c.h.b16 %v1891
        %v2287 = vunpack.c.l.b16 %v1892
        %v2288 = vunpack.c.h.b16 %v1892
        %v2289 = vunpack.c.l.b16 %v1893
        %v2290 = vunpack.c.l.b16 %v1894
        %v2291 = vunpack.c.h.b16 %v1894
        %v2292 = vunpack.c.l.b16 %v1895
        %v2293 = vunpack.c.h.b16 %v1895
        %v2294 = vunpack.c.l.b16 %v1896
        %v2295 = vunpack.c.h.b16 %v1896
        %v2296 = vunpack.c.l.b16 %v1897
        %v2297 = vunpack.c.h.b16 %v1897
        %v2298 = vunpack.c.l.b16 %v1898
        %v2299 = vunpack.c.l.b16 %v1899
        %v2300 = vunpack.c.h.b16 %v1899
        %v2301 = vunpack.c.l.b16 %v1900
        %v2302 = vunpack.c.h.b16 %v1900
        %v2303 = vunpack.c.l.b16 %v1901
        %v2304 = vunpack.c.h.b16 %v1901
        %v2305 = vunpack.c.l.b16 %v1902
        %v2306 = vunpack.c.h.b16 %v1902
        %v2307 = vunpack.c.l.b16 %v1903
        %v2308 = vunpack.c.l.b16 %v1904
        %v2309 = vunpack.c.h.b16 %v1904
        %v2310 = vunpack.c.l.b16 %v1905
        %v2311 = vunpack.c.h.b16 %v1905
        %v2312 = vunpack.c.l.b16 %v1906
        %v2313 = vunpack.c.h.b16 %v1906
        %v2314 = vunpack.c.l.b16 %v1907
        %v2315 = vunpack.c.h.b16 %v1907
        %v2316 = vunpack.c.l.b16 %v1908
        %v2317 = vunpack.c.l.b16 %v1909
        %v2318 = vunpack.c.h.b16 %v1909
        %v2319 = vunpack.c.l.b16 %v1910
        %v2320 = vunpack.c.h.b16 %v1910
        %v2321 = vunpack.c.l.b16 %v1911
        %v2322 = vunpack.c.h.b16 %v1911
        %v2323 = vunpack.c.l.b16 %v1912
        %v2324 = vunpack.c.h.b16 %v1912
        %v2325 = vunpack.c.l.b16 %v1913
        %v2326 = vunpack.c.l.b16 %v1914
        %v2327 = vunpack.c.h.b16 %v1914
        %v2328 = vunpack.c.l.b16 %v1915
        %v2329 = vunpack.c.h.b16 %v1915
        %v2330 = vunpack.c.l.b16 %v1916
        %v2331 = vunpack.c.h.b16 %v1916
        %v2332 = vunpack.c.l.b16 %v1917
        %v2333 = vunpack.c.h.b16 %v1917
        %v2334 = vunpack.c.l.b16 %v1918
        %v2335 = vunpack.c.l.b16 %v1919
        %v2336 = vunpack.c.h.b16 %v1919
        %v2337 = vunpack.c.l.b16 %v1920
        %v2338 = vunpack.c.h.b16 %v1920
        %v2339 = vunpack.c.l.b16 %v1921
        %v2340 = vunpack.c.h.b16 %v1921
        %v2341 = vunpack.c.l.b16 %v1922
        %v2342 = vunpack.c.h.b16 %v1922
        %v2343 = vunpack.c.l.b16 %v1923
        %v2344 = vunpack.c.l.b16 %v1924
        %v2345 = vunpack.c.h.b16 %v1924
        %v2346 = vunpack.c.l.b16 %v1925
        %v2347 = vunpack.c.h.b16 %v1925
        %v2348 = vunpack.c.l.b16 %v1926
        %v2349 = vunpack.c.h.b16 %v1926
        %v2350 = vunpack.c.l.b16 %v1927
        %v2351 = vunpack.c.h.b16 %v1927
        %v2352 = vunpack.c.l.b16 %v1928
        %v2353 = vunpack.c.l.b16 %v1929
        %v2354 = vunpack.c.h.b16 %v1929
        %v2355 = vunpack.c.l.b16 %v1930
        %v2356 = vunpack.c.h.b16 %v1930
        %v2357 = vunpack.c.l.b16 %v1931
        %v2358 = vunpack.c.h.b16 %v1931
        %v2359 = vunpack.c.l.b16 %v1932
        %v2360 = vunpack.c.h.b16 %v1932
        %v2361 = vunpack.c.l.b16 %v1933
        %v2362 = vpack.c.b16 %v2191, %v2182
        %v2363 = vpack.c.b16 %v2192, %v2183
        %v2364 = vpack.c.b16 %v2193, %v2184
        %v2365 = vpack.c.b16 %v2194, %v2185
        %v2366 = vpack.c.b16 %v2195, %v2186
        %v2367 = vpack.c.b16 %v2196, %v2187
        %v2368 = vpack.c.b16 %v2197, %v2188
        %v2369 = vpack.c.b16 %v2198, %v2189
        %v2370 = vpack.c.b16 %v2199, %v2190
        %v2371 = vpack.c.b16 %v2209, %v2200
        %v2372 = vpack.c.b16 %v2210, %v2201
        %v2373 = vpack.c.b16 %v2211, %v2202
        %v2374 = vpack.c.b16 %v2212, %v2203
        %v2375 = vpack.c.b16 %v2213, %v2204
        %v2376 = vpack.c.b16 %v2214, %v2205
        %v2377 = vpack.c.b16 %v2215, %v2206
        %v2378 = vpack.c.b16 %v2216, %v2207
        %v2379 = vpack.c.b16 %v2217, %v2208
        %v2380 = vpack.c.b16 %v2227, %v2218
        %v2381 = vpack.c.b16 %v2228, %v2219
        %v2382 = vpack.c.b16 %v2229, %v2220
        %v2383 = vpack.c.b16 %v2230, %v2221
        %v2384 = vpack.c.b16 %v2231, %v2222
        %v2385 = vpack.c.b16 %v2232, %v2223
        %v2386 = vpack.c.b16 %v2233, %v2224
        %v2387 = vpack.c.b16 %v2234, %v2225
        %v2388 = vpack.c.b16 %v2235, %v2226
        %v2389 = vpack.c.b16 %v2245, %v2236
        %v2390 = vpack.c.b16 %v2246, %v2237
        %v2391 = vpack.c.b16 %v2247, %v2238
        %v2392 = vpack.c.b16 %v2248, %v2239
        %v2393 = vpack.c.b16 %v2249, %v2240
        %v2394 = vpack.c.b16 %v2250, %v2241
        %v2395 = vpack.c.b16 %v2251, %v2242
        %v2396 = vpack.c.b16 %v2252, %v2243
        %v2397 = vpack.c.b16 %v2253, %v2244
        %v2398 = vpack.c.b16 %v2263, %v2254
        %v2399 = vpack.c.b16 %v2264, %v2255
        %v2400 = vpack.c.b16 %v2265, %v2256
        %v2401 = vpack.c.b16 %v2266, %v2257
        %v2402 = vpack.c.b16 %v2267, %v2258
        %v2403 = vpack.c.b16 %v2268, %v2259
        %v2404 = vpack.c.b16 %v2269, %v2260
        %v2405 = vpack.c.b16 %v2270, %v2261
        %v2406 = vpack.c.b16 %v2271, %v2262
        %v2407 = vpack.c.b16 %v2281, %v2272
        %v2408 = vpack.c.b16 %v2282, %v2273
        %v2409 = vpack.c.b16 %v2283, %v2274
        %v2410 = vpack.c.b16 %v2284, %v2275
        %v2411 = vpack.c.b16 %v2285, %v2276
        %v2412 = vpack.c.b16 %v2286, %v2277
        %v2413 = vpack.c.b16 %v2287, %v2278
        %v2414 = vpack.c.b16 %v2288, %v2279
        %v2415 = vpack.c.b16 %v2289, %v2280
        %v2416 = vpack.c.b16 %v2299, %v2290
        %v2417 = vpack.c.b16 %v2300, %v2291
        %v2418 = vpack.c.b16 %v2301, %v2292
        %v2419 = vpack.c.b16 %v2302, %v2293
        %v2420 = vpack.c.b16 %v2303, %v2294
        %v2421 = vpack.c.b16 %v2304, %v2295
        %v2422 = vpack.c.b16 %v2305, %v2296
        %v2423 = vpack.c.b16 %v2306, %v2297
        %v2424 = vpack.c.b16 %v2307, %v2298
        %v2425 = vpack.c.b16 %v2317, %v2308
        %v2426 = vpack.c.b16 %v2318, %v2309
        %v2427 = vpack.c.b16 %v2319, %v2310
        %v2428 = vpack.c.b16 %v2320, %v2311
        %v2429 = vpack.c.b16 %v2321, %v2312
        %v2430 = vpack.c.b16 %v2322, %v2313
        %v2431 = vpack.c.b16 %v2323, %v2314
        %v2432 = vpack.c.b16 %v2324, %v2315
        %v2433 = vpack.c.b16 %v2325, %v2316
        %v2434 = vpack.c.b16 %v2335, %v2326
        %v2435 = vpack.c.b16 %v2336, %v2327
        %v2436 = vpack.c.b16 %v2337, %v2328
        %v2437 = vpack.c.b16 %v2338, %v2329
        %v2438 = vpack.c.b16 %v2339, %v2330
        %v2439 = vpack.c.b16 %v2340, %v2331
        %v2440 = vpack.c.b16 %v2341, %v2332
        %v2441 = vpack.c.b16 %v2342, %v2333
        %v2442 = vpack.c.b16 %v2343, %v2334
        %v2443 = vpack.c.b16 %v2353, %v2344
        %v2444 = vpack.c.b16 %v2354, %v2345
        %v2445 = vpack.c.b16 %v2355, %v2346
        %v2446 = vpack.c.b16 %v2356, %v2347
        %v2447 = vpack.c.b16 %v2357, %v2348
        %v2448 = vpack.c.b16 %v2358, %v2349
        %v2449 = vpack.c.b16 %v2359, %v2350
        %v2450 = vpack.c.b16 %v2360, %v2351
        %v2451 = vpack.c.b16 %v2361, %v2352
        %v2686 = vunpack.c.l.b16 %v1934
        %v2687 = vunpack.c.l.b16 %v1935
        %v2688 = vunpack.c.l.b16 %v1936
        %v2689 = vunpack.c.l.b16 %v1937
        %v2690 = vunpack.c.l.b16 %v1938
        %v2691 = vunpack.c.l.b16 %v1939
        %v2692 = vunpack.c.l.b16 %v1940
        %v2693 = vunpack.c.l.b16 %v1941
        %v2694 = vunpack.c.l.b16 %v1942
        %v2695 = vunpack.c.l.b16 %v1943
        %v2696 = vunpack.c.l.b16 %v1944
        %v2697 = vunpack.c.l.b16 %v1945
        %v2698 = vunpack.c.l.b16 %v1946
        %v2699 = vunpack.c.l.b16 %v1947
        %v2700 = vunpack.c.l.b16 %v1948
        %v2701 = vunpack.c.l.b16 %v1949
        %v2702 = vunpack.c.l.b16 %v1950
        %v2703 = vunpack.c.l.b16 %v1951
        %v2704 = vunpack.c.l.b16 %v1952
        %v2705 = vunpack.c.l.b16 %v1953
        %v2706 = vunpack.c.l.b16 %v1954
        %v2707 = vunpack.c.l.b16 %v1955
        %v2708 = vunpack.c.l.b16 %v1956
        %v2709 = vunpack.c.l.b16 %v1957
        %v2710 = vunpack.c.l.b16 %v1958
        %v2711 = vunpack.c.l.b16 %v1959
        %v2712 = vunpack.c.l.b16 %v1960
        %v2713 = vunpack.c.l.b16 %v1961
        %v2714 = vunpack.c.l.b16 %v1962
        %v2715 = vunpack.c.l.b16 %v1963
        %v2716 = vunpack.c.l.b16 %v1964
        %v2717 = vunpack.c.l.b16 %v1965
        %v2718 = vunpack.c.l.b16 %v1966
        %v2719 = vunpack.c.l.b16 %v1967
        %v2720 = vunpack.c.l.b16 %v1968
        %v2721 = vunpack.c.l.b16 %v1969
        %v2722 = vunpack.c.l.b16 %v1970
        %v2723 = vunpack.c.l.b16 %v1971
        %v2724 = vunpack.c.l.b16 %v1972
        %v2725 = vunpack.c.l.b16 %v1973
        %v2726 = vunpack.c.l.b16 %v1974
        %v2727 = vunpack.c.l.b16 %v1975
        %v2728 = vunpack.c.l.b16 %v1976
        %v2729 = vunpack.c.l.b16 %v1977
        %v2730 = vunpack.c.l.b16 %v1978
        %v2731 = vunpack.c.l.b16 %v1979
        %v2732 = vunpack.c.l.b16 %v1980
        %v2733 = vunpack.c.l.b16 %v1981
        %v2734 = vunpack.c.l.b16 %v1982
        %v2735 = vunpack.c.l.b16 %v1983
        %v2736 = vunpack.c.l.b16 %v1984
        %v2737 = vunpack.c.l.b16 %v1985
        %v2738 = vunpack.c.l.b16 %v1986
        %v2739 = vunpack.c.l.b16 %v1987
        %v2740 = vunpack.c.l.b16 %v1988
        %v2741 = vunpack.c.l.b16 %v1989
        %v2742 = vunpack.c.l.b16 %v1990
        %v2743 = vunpack.c.l.b16 %v1991
        %v2744 = vunpack.c.l.b16 %v1992
        %v2745 = vunpack.c.l.b16 %v1993
        %v2746 = vunpack.c.l.b16 %v1994
        %v2747 = vunpack.c.l.b16 %v1995
        %v2748 = vunpack.c.l.b16 %v1996
        %v2749 = vunpack.c.l.b16 %v1997
        %v2750 = vunpack.c.l.b16 %v1998
        %v2751 = vunpack.c.l.b16 %v1999
        %v2752 = vunpack.c.l.b16 %v2000
        %v2753 = vunpack.c.l.b16 %v2001
        %v2754 = vunpack.c.l.b16 %v2002
        %v2755 = vunpack.c.l.b16 %v2003
        %v2756 = vunpack.c.l.b16 %v2004
        %v2757 = vunpack.c.l.b16 %v2005
        %v2758 = vunpack.c.l.b16 %v2006
        %v2759 = vunpack.c.l.b16 %v2007
        %v2760 = vunpack.c.l.b16 %v2008
        %v2761 = vunpack.c.l.b16 %v2009
        %v2762 = vunpack.c.l.b16 %v2010
        %v2763 = vunpack.c.l.b16 %v2011
        %v2764 = vunpack.c.l.b16 %v2012
        %v2765 = vunpack.c.l.b16 %v2013
        %v2766 = vunpack.c.l.b16 %v2014
        %v2767 = vunpack.c.l.b16 %v2015
        %v2768 = vunpack.c.l.b16 %v2016
        %v2769 = vunpack.c.l.b16 %v2017
        %v2770 = vunpack.c.l.b16 %v2018
        %v2771 = vunpack.c.l.b16 %v2019
        %v2772 = vunpack.c.l.b16 %v2020
        %v2773 = vunpack.c.l.b16 %v2021
        %v2774 = vunpack.c.l.b16 %v2022
        %v2775 = vunpack.c.l.b16 %v2023
        %v2776 = vunpack.c.l.b16 %v2024
        %v2777 = vunpack.c.l.b16 %v2025
        %v2778 = vunpack.c.l.b16 %v2026
        %v2779 = vunpack.c.l.b16 %v2027
        %v2780 = vunpack.c.l.b16 %v2028
        %v2781 = vunpack.c.l.b16 %v2029
        %v2782 = vunpack.c.l.b16 %v2030
        %v2783 = vunpack.c.l.b16 %v2031
        %v2784 = vunpack.c.l.b16 %v2032
        %v2785 = vunpack.c.l.b16 %v2033
        %v2786 = vunpack.c.l.b16 %v2034
        %v2787 = vunpack.c.l.b16 %v2035
        %v2788 = vunpack.c.l.b16 %v2036
        %v2789 = vunpack.c.l.b16 %v2037
        %v2790 = vunpack.c.l.b16 %v2038
        %v2791 = vunpack.c.l.b16 %v2039
        %v2792 = vunpack.c.l.b16 %v2040
        %v2793 = vunpack.c.l.b16 %v2041
        %v2794 = vunpack.c.l.b16 %v2042
        %v2795 = vunpack.c.l.b16 %v2043
        %v2796 = vunpack.c.l.b16 %v2044
        %v2797 = vunpack.c.l.b16 %v2045
        %v2798 = vunpack.c.l.b16 %v2046
        %v2799 = vunpack.c.l.b16 %v2047
        %v2800 = vunpack.c.l.b16 %v2048
        %v2801 = vunpack.c.l.b16 %v2049
        %v2802 = vunpack.c.l.b16 %v2050
        %v2803 = vunpack.c.l.b16 %v2051
        %v2804 = vunpack.c.l.b16 %v2052
        %v2805 = vunpack.c.l.b16 %v2053
        %v2806 = vunpack.c.l.b16 %v2054
        %v2807 = vunpack.c.l.b16 %v2055
        %v2808 = vunpack.c.l.b16 %v2056
        %v2809 = vunpack.c.l.b16 %v2057
        %v2810 = vunpack.c.l.b16 %v2058
        %v2811 = vunpack.c.l.b16 %v2059
        %v2812 = vunpack.c.l.b16 %v2060
        %v2813 = vunpack.c.l.b16 %v2061
        %v2814 = vunpack.c.l.b16 %v2062
        %v2815 = vunpack.c.l.b16 %v2063
        %v2816 = vunpack.c.l.b16 %v2064
        %v2817 = vunpack.c.l.b16 %v2065
        %v2818 = vunpack.c.l.b16 %v2066
        %v2819 = vunpack.c.l.b16 %v2067
        %v2820 = vunpack.c.l.b16 %v2068
        %v2821 = vunpack.c.l.b16 %v2069
        %v2822 = vunpack.c.l.b16 %v2070
        %v2823 = vunpack.c.l.b16 %v2071
        %v2824 = vunpack.c.l.b16 %v2072
        %v2825 = vunpack.c.l.b16 %v2073
        %v2826 = vunpack.c.l.b16 %v2074
        %v2827 = vunpack.c.l.b16 %v2075
        %v2828 = vunpack.c.l.b16 %v2076
        %v2829 = vunpack.c.l.b16 %v2077
        %v2830 = vpack.c.b16 %v2687, %v2686
        %v2831 = vpack.c.b16 %v2689, %v2688
        %v2832 = vpack.c.b16 %v2691, %v2690
        %v2833 = vpack.c.b16 %v2693, %v2692
        %v2834 = vpack.c.b16 %v2695, %v2694
        %v2835 = vpack.c.b16 %v2697, %v2696
        %v2836 = vpack.c.b16 %v2699, %v2698
        %v2837 = vpack.c.b16 %v2701, %v2700
        %v2838 = vpack.c.b16 %v2703, %v2702
        %v2839 = vpack.c.b16 %v2705, %v2704
        %v2840 = vpack.c.b16 %v2707, %v2706
        %v2841 = vpack.c.b16 %v2709, %v2708
        %v2842 = vpack.c.b16 %v2711, %v2710
        %v2843 = vpack.c.b16 %v2713, %v2712
        %v2844 = vpack.c.b16 %v2715, %v2714
        %v2845 = vpack.c.b16 %v2717, %v2716
        %v2846 = vpack.c.b16 %v2719, %v2718
        %v2847 = vpack.c.b16 %v2721, %v2720
        %v2848 = vpack.c.b16 %v2723, %v2722
        %v2849 = vpack.c.b16 %v2725, %v2724
        %v2850 = vpack.c.b16 %v2727, %v2726
        %v2851 = vpack.c.b16 %v2729, %v2728
        %v2852 = vpack.c.b16 %v2731, %v2730
        %v2853 = vpack.c.b16 %v2733, %v2732
        %v2854 = vpack.c.b16 %v2735, %v2734
        %v2855 = vpack.c.b16 %v2737, %v2736
        %v2856 = vpack.c.b16 %v2739, %v2738
        %v2857 = vpack.c.b16 %v2741, %v2740
        %v2858 = vpack.c.b16 %v2743, %v2742
        %v2859 = vpack.c.b16 %v2745, %v2744
        %v2860 = vpack.c.b16 %v2747, %v2746
        %v2861 = vpack.c.b16 %v2749, %v2748
        %v2862 = vpack.c.b16 %v2751, %v2750
        %v2863 = vpack.c.b16 %v2753, %v2752
        %v2864 = vpack.c.b16 %v2755, %v2754
        %v2865 = vpack.c.b16 %v2757, %v2756
        %v2866 = vpack.c.b16 %v2759, %v2758
        %v2867 = vpack.c.b16 %v2761, %v2760
        %v2868 = vpack.c.b16 %v2763, %v2762
        %v2869 = vpack.c.b16 %v2765, %v2764
        %v2870 = vpack.c.b16 %v2767, %v2766
        %v2871 = vpack.c.b16 %v2769, %v2768
        %v2872 = vpack.c.b16 %v2771, %v2770
        %v2873 = vpack.c.b16 %v2773, %v2772
        %v2874 = vpack.c.b16 %v2775, %v2774
        %v2875 = vpack.c.b16 %v2777, %v2776
        %v2876 = vpack.c.b16 %v2779, %v2778
        %v2877 = vpack.c.b16 %v2781, %v2780
        %v2878 = vpack.c.b16 %v2783, %v2782
        %v2879 = vpack.c.b16 %v2785, %v2784
        %v2880 = vpack.c.b16 %v2787, %v2786
        %v2881 = vpack.c.b16 %v2789, %v2788
        %v2882 = vpack.c.b16 %v2791, %v2790
        %v2883 = vpack.c.b16 %v2793, %v2792
        %v2884 = vpack.c.b16 %v2795, %v2794
        %v2885 = vpack.c.b16 %v2797, %v2796
        %v2886 = vpack.c.b16 %v2799, %v2798
        %v2887 = vpack.c.b16 %v2801, %v2800
        %v2888 = vpack.c.b16 %v2803, %v2802
        %v2889 = vpack.c.b16 %v2805, %v2804
        %v2890 = vpack.c.b16 %v2807, %v2806
        %v2891 = vpack.c.b16 %v2809, %v2808
        %v2892 = vpack.c.b16 %v2811, %v2810
        %v2893 = vpack.c.b16 %v2813, %v2812
        %v2894 = vpack.c.b16 %v2815, %v2814
        %v2895 = vpack.c.b16 %v2817, %v2816
        %v2896 = vpack.c.b16 %v2819, %v2818
        %v2897 = vpack.c.b16 %v2821, %v2820
        %v2898 = vpack.c.b16 %v2823, %v2822
        %v2899 = vpack.c.b16 %v2825, %v2824
        %v2900 = vpack.c.b16 %v2827, %v2826
        %v2901 = vpack.c.b16 %v2829, %v2828
        %2974 = vmatpush.bf16.msra.mxu0 %v2837
        %2975 = vmatpush.bf16.msra.mxu0 %v2836
        %2976 = vmatpush.bf16.msra.mxu0 %v2835
        %2977 = vmatpush.bf16.msra.mxu0 %v2834
        %2978 = vmatpush.bf16.msra.mxu0 %v2833
        %2979 = vmatpush.bf16.msra.mxu0 %v2832
        %2980 = vmatpush.bf16.msra.mxu0 %v2831
        %2981 = vmatpush.bf16.msra.mxu0 %v2830
        %2982 = vmatmul.bf16.gmra.mxu0 %v2362
        %v2983 = vpop.f32.mrf.mxu0
        %v2984 = vadd.f32 %v2080, %v2983
        %v2985 = vpop.f32.mrf.mxu0
        %v2986 = vadd.f32 %v2080, %v2985
        %2987 = vmatmul.bf16.gmra.mxu0 %v2371
        %v2988 = vpop.f32.mrf.mxu0
        %v2989 = vadd.f32 %v2080, %v2988
        %v2990 = vpop.f32.mrf.mxu0
        %v2991 = vadd.f32 %v2080, %v2990
        %2992 = vmatmul.bf16.gmra.mxu0 %v2380
        %v2993 = vpop.f32.mrf.mxu0
        %v2994 = vadd.f32 %v2080, %v2993
        %v2995 = vpop.f32.mrf.mxu0
        %v2996 = vadd.f32 %v2080, %v2995
        %2997 = vmatmul.bf16.gmra.mxu0 %v2389
        %v2998 = vpop.f32.mrf.mxu0
        %v2999 = vadd.f32 %v2080, %v2998
        %v3000 = vpop.f32.mrf.mxu0
        %v3001 = vadd.f32 %v2080, %v3000
        %3002 = vmatmul.bf16.gmra.mxu0 %v2398
        %v3003 = vpop.f32.mrf.mxu0
        %v3004 = vadd.f32 %v2080, %v3003
        %v3005 = vpop.f32.mrf.mxu0
        %v3006 = vadd.f32 %v2080, %v3005
        %3007 = vmatmul.bf16.gmra.mxu0 %v2407
        %v3008 = vpop.f32.mrf.mxu0
        %v3009 = vadd.f32 %v2080, %v3008
        %v3010 = vpop.f32.mrf.mxu0
        %v3011 = vadd.f32 %v2080, %v3010
        %3012 = vmatmul.bf16.gmra.mxu0 %v2416
        %v3013 = vpop.f32.mrf.mxu0
        %v3014 = vadd.f32 %v2080, %v3013
        %v3015 = vpop.f32.mrf.mxu0
        %v3016 = vadd.f32 %v2080, %v3015
        %3017 = vmatmul.bf16.gmra.mxu0 %v2425
        %v3018 = vpop.f32.mrf.mxu0
        %v3019 = vadd.f32 %v2080, %v3018
        %v3020 = vpop.f32.mrf.mxu0
        %v3021 = vadd.f32 %v2080, %v3020
        %3022 = vmatmul.bf16.gmra.mxu0 %v2434
        %v3023 = vpop.f32.mrf.mxu0
        %v3024 = vadd.f32 %v2080, %v3023
        %v3025 = vpop.f32.mrf.mxu0
        %v3026 = vadd.f32 %v2080, %v3025
        %3027 = vmatmul.bf16.gmra.mxu0 %v2443
        %v3028 = vpop.f32.mrf.mxu0
        %v3029 = vadd.f32 %v2080, %v3028
        %v3030 = vpop.f32.mrf.mxu0
        %v3031 = vadd.f32 %v2080, %v3030
        %3032 = vdwg.mxu0
        %3033 = vmatpush.bf16.msra.mxu0 %v2845
        %3034 = vmatpush.bf16.msra.mxu0 %v2844
        %3035 = vmatpush.bf16.msra.mxu0 %v2843
        %3036 = vmatpush.bf16.msra.mxu0 %v2842
        %3037 = vmatpush.bf16.msra.mxu0 %v2841
        %3038 = vmatpush.bf16.msra.mxu0 %v2840
        %3039 = vmatpush.bf16.msra.mxu0 %v2839
        %3040 = vmatpush.bf16.msra.mxu0 %v2838
        %3041 = vmatmul.bf16.gmra.mxu0 %v2363
        %v3042 = vpop.f32.mrf.mxu0
        %v3043 = vadd.f32 %v2984, %v3042
        %v3044 = vpop.f32.mrf.mxu0
        %v3045 = vadd.f32 %v2986, %v3044
        %3046 = vmatmul.bf16.gmra.mxu0 %v2372
        %v3047 = vpop.f32.mrf.mxu0
        %v3048 = vadd.f32 %v2989, %v3047
        %v3049 = vpop.f32.mrf.mxu0
        %v3050 = vadd.f32 %v2991, %v3049
        %3051 = vmatmul.bf16.gmra.mxu0 %v2381
        %v3052 = vpop.f32.mrf.mxu0
        %v3053 = vadd.f32 %v2994, %v3052
        %v3054 = vpop.f32.mrf.mxu0
        %v3055 = vadd.f32 %v2996, %v3054
        %3056 = vmatmul.bf16.gmra.mxu0 %v2390
        %v3057 = vpop.f32.mrf.mxu0
        %v3058 = vadd.f32 %v2999, %v3057
        %v3059 = vpop.f32.mrf.mxu0
        %v3060 = vadd.f32 %v3001, %v3059
        %3061 = vmatmul.bf16.gmra.mxu0 %v2399
        %v3062 = vpop.f32.mrf.mxu0
        %v3063 = vadd.f32 %v3004, %v3062
        %v3064 = vpop.f32.mrf.mxu0
        %v3065 = vadd.f32 %v3006, %v3064
        %3066 = vmatmul.bf16.gmra.mxu0 %v2408
        %v3067 = vpop.f32.mrf.mxu0
        %v3068 = vadd.f32 %v3009, %v3067
        %v3069 = vpop.f32.mrf.mxu0
        %v3070 = vadd.f32 %v3011, %v3069
        %3071 = vmatmul.bf16.gmra.mxu0 %v2417
        %v3072 = vpop.f32.mrf.mxu0
        %v3073 = vadd.f32 %v3014, %v3072
        %v3074 = vpop.f32.mrf.mxu0
        %v3075 = vadd.f32 %v3016, %v3074
        %3076 = vmatmul.bf16.gmra.mxu0 %v2426
        %v3077 = vpop.f32.mrf.mxu0
        %v3078 = vadd.f32 %v3019, %v3077
        %v3079 = vpop.f32.mrf.mxu0
        %v3080 = vadd.f32 %v3021, %v3079
        %3081 = vmatmul.bf16.gmra.mxu0 %v2435
        %v3082 = vpop.f32.mrf.mxu0
        %v3083 = vadd.f32 %v3024, %v3082
        %v3084 = vpop.f32.mrf.mxu0
        %v3085 = vadd.f32 %v3026, %v3084
        %3086 = vmatmul.bf16.gmra.mxu0 %v2444
        %v3087 = vpop.f32.mrf.mxu0
        %v3088 = vadd.f32 %v3029, %v3087
        %v3089 = vpop.f32.mrf.mxu0
        %v3090 = vadd.f32 %v3031, %v3089
        %3091 = vdwg.mxu0
        %3092 = vmatpush.bf16.msra.mxu0 %v2853
        %3093 = vmatpush.bf16.msra.mxu0 %v2852
        %3094 = vmatpush.bf16.msra.mxu0 %v2851
        %3095 = vmatpush.bf16.msra.mxu0 %v2850
        %3096 = vmatpush.bf16.msra.mxu0 %v2849
        %3097 = vmatpush.bf16.msra.mxu0 %v2848
        %3098 = vmatpush.bf16.msra.mxu0 %v2847
        %3099 = vmatpush.bf16.msra.mxu0 %v2846
        %3100 = vmatmul.bf16.gmra.mxu0 %v2364
        %v3101 = vpop.f32.mrf.mxu0
        %v3102 = vadd.f32 %v3043, %v3101
        %v3103 = vpop.f32.mrf.mxu0
        %v3104 = vadd.f32 %v3045, %v3103
        %3105 = vmatmul.bf16.gmra.mxu0 %v2373
        %v3106 = vpop.f32.mrf.mxu0
        %v3107 = vadd.f32 %v3048, %v3106
        %v3108 = vpop.f32.mrf.mxu0
        %v3109 = vadd.f32 %v3050, %v3108
        %3110 = vmatmul.bf16.gmra.mxu0 %v2382
        %v3111 = vpop.f32.mrf.mxu0
        %v3112 = vadd.f32 %v3053, %v3111
        %v3113 = vpop.f32.mrf.mxu0
        %v3114 = vadd.f32 %v3055, %v3113
        %3115 = vmatmul.bf16.gmra.mxu0 %v2391
        %v3116 = vpop.f32.mrf.mxu0
        %v3117 = vadd.f32 %v3058, %v3116
        %v3118 = vpop.f32.mrf.mxu0
        %v3119 = vadd.f32 %v3060, %v3118
        %3120 = vmatmul.bf16.gmra.mxu0 %v2400
        %v3121 = vpop.f32.mrf.mxu0
        %v3122 = vadd.f32 %v3063, %v3121
        %v3123 = vpop.f32.mrf.mxu0
        %v3124 = vadd.f32 %v3065, %v3123
        %3125 = vmatmul.bf16.gmra.mxu0 %v2409
        %v3126 = vpop.f32.mrf.mxu0
        %v3127 = vadd.f32 %v3068, %v3126
        %v3128 = vpop.f32.mrf.mxu0
        %v3129 = vadd.f32 %v3070, %v3128
        %3130 = vmatmul.bf16.gmra.mxu0 %v2418
        %v3131 = vpop.f32.mrf.mxu0
        %v3132 = vadd.f32 %v3073, %v3131
        %v3133 = vpop.f32.mrf.mxu0
        %v3134 = vadd.f32 %v3075, %v3133
        %3135 = vmatmul.bf16.gmra.mxu0 %v2427
        %v3136 = vpop.f32.mrf.mxu0
        %v3137 = vadd.f32 %v3078, %v3136
        %v3138 = vpop.f32.mrf.mxu0
        %v3139 = vadd.f32 %v3080, %v3138
        %3140 = vmatmul.bf16.gmra.mxu0 %v2436
        %v3141 = vpop.f32.mrf.mxu0
        %v3142 = vadd.f32 %v3083, %v3141
        %v3143 = vpop.f32.mrf.mxu0
        %v3144 = vadd.f32 %v3085, %v3143
        %3145 = vmatmul.bf16.gmra.mxu0 %v2445
        %v3146 = vpop.f32.mrf.mxu0
        %v3147 = vadd.f32 %v3088, %v3146
        %v3148 = vpop.f32.mrf.mxu0
        %v3149 = vadd.f32 %v3090, %v3148
        %3150 = vdwg.mxu0
        %3151 = vmatpush.bf16.msra.mxu0 %v2861
        %3152 = vmatpush.bf16.msra.mxu0 %v2860
        %3153 = vmatpush.bf16.msra.mxu0 %v2859
        %3154 = vmatpush.bf16.msra.mxu0 %v2858
        %3155 = vmatpush.bf16.msra.mxu0 %v2857
        %3156 = vmatpush.bf16.msra.mxu0 %v2856
        %3157 = vmatpush.bf16.msra.mxu0 %v2855
        %3158 = vmatpush.bf16.msra.mxu0 %v2854
        %3159 = vmatmul.bf16.gmra.mxu0 %v2365
        %v3160 = vpop.f32.mrf.mxu0
        %v3161 = vadd.f32 %v3102, %v3160
        %v3162 = vpop.f32.mrf.mxu0
        %v3163 = vadd.f32 %v3104, %v3162
        %3164 = vmatmul.bf16.gmra.mxu0 %v2374
        %v3165 = vpop.f32.mrf.mxu0
        %v3166 = vadd.f32 %v3107, %v3165
        %v3167 = vpop.f32.mrf.mxu0
        %v3168 = vadd.f32 %v3109, %v3167
        %3169 = vmatmul.bf16.gmra.mxu0 %v2383
        %v3170 = vpop.f32.mrf.mxu0
        %v3171 = vadd.f32 %v3112, %v3170
        %v3172 = vpop.f32.mrf.mxu0
        %v3173 = vadd.f32 %v3114, %v3172
        %3174 = vmatmul.bf16.gmra.mxu0 %v2392
        %v3175 = vpop.f32.mrf.mxu0
        %v3176 = vadd.f32 %v3117, %v3175
        %v3177 = vpop.f32.mrf.mxu0
        %v3178 = vadd.f32 %v3119, %v3177
        %3179 = vmatmul.bf16.gmra.mxu0 %v2401
        %v3180 = vpop.f32.mrf.mxu0
        %v3181 = vadd.f32 %v3122, %v3180
        %v3182 = vpop.f32.mrf.mxu0
        %v3183 = vadd.f32 %v3124, %v3182
        %3184 = vmatmul.bf16.gmra.mxu0 %v2410
        %v3185 = vpop.f32.mrf.mxu0
        %v3186 = vadd.f32 %v3127, %v3185
        %v3187 = vpop.f32.mrf.mxu0
        %v3188 = vadd.f32 %v3129, %v3187
        %3189 = vmatmul.bf16.gmra.mxu0 %v2419
        %v3190 = vpop.f32.mrf.mxu0
        %v3191 = vadd.f32 %v3132, %v3190
        %v3192 = vpop.f32.mrf.mxu0
        %v3193 = vadd.f32 %v3134, %v3192
        %3194 = vmatmul.bf16.gmra.mxu0 %v2428
        %v3195 = vpop.f32.mrf.mxu0
        %v3196 = vadd.f32 %v3137, %v3195
        %v3197 = vpop.f32.mrf.mxu0
        %v3198 = vadd.f32 %v3139, %v3197
        %3199 = vmatmul.bf16.gmra.mxu0 %v2437
        %v3200 = vpop.f32.mrf.mxu0
        %v3201 = vadd.f32 %v3142, %v3200
        %v3202 = vpop.f32.mrf.mxu0
        %v3203 = vadd.f32 %v3144, %v3202
        %3204 = vmatmul.bf16.gmra.mxu0 %v2446
        %v3205 = vpop.f32.mrf.mxu0
        %v3206 = vadd.f32 %v3147, %v3205
        %v3207 = vpop.f32.mrf.mxu0
        %v3208 = vadd.f32 %v3149, %v3207
        %3209 = vdwg.mxu0
        %3210 = vmatpush.bf16.msra.mxu0 %v2869
        %3211 = vmatpush.bf16.msra.mxu0 %v2868
        %3212 = vmatpush.bf16.msra.mxu0 %v2867
        %3213 = vmatpush.bf16.msra.mxu0 %v2866
        %3214 = vmatpush.bf16.msra.mxu0 %v2865
        %3215 = vmatpush.bf16.msra.mxu0 %v2864
        %3216 = vmatpush.bf16.msra.mxu0 %v2863
        %3217 = vmatpush.bf16.msra.mxu0 %v2862
        %3218 = vmatmul.bf16.gmra.mxu0 %v2366
        %v3219 = vpop.f32.mrf.mxu0
        %v3220 = vadd.f32 %v3161, %v3219
        %v3221 = vpop.f32.mrf.mxu0
        %v3222 = vadd.f32 %v3163, %v3221
        %3223 = vmatmul.bf16.gmra.mxu0 %v2375
        %v3224 = vpop.f32.mrf.mxu0
        %v3225 = vadd.f32 %v3166, %v3224
        %v3226 = vpop.f32.mrf.mxu0
        %v3227 = vadd.f32 %v3168, %v3226
        %3228 = vmatmul.bf16.gmra.mxu0 %v2384
        %v3229 = vpop.f32.mrf.mxu0
        %v3230 = vadd.f32 %v3171, %v3229
        %v3231 = vpop.f32.mrf.mxu0
        %v3232 = vadd.f32 %v3173, %v3231
        %3233 = vmatmul.bf16.gmra.mxu0 %v2393
        %v3234 = vpop.f32.mrf.mxu0
        %v3235 = vadd.f32 %v3176, %v3234
        %v3236 = vpop.f32.mrf.mxu0
        %v3237 = vadd.f32 %v3178, %v3236
        %3238 = vmatmul.bf16.gmra.mxu0 %v2402
        %v3239 = vpop.f32.mrf.mxu0
        %v3240 = vadd.f32 %v3181, %v3239
        %v3241 = vpop.f32.mrf.mxu0
        %v3242 = vadd.f32 %v3183, %v3241
        %3243 = vmatmul.bf16.gmra.mxu0 %v2411
        %v3244 = vpop.f32.mrf.mxu0
        %v3245 = vadd.f32 %v3186, %v3244
        %v3246 = vpop.f32.mrf.mxu0
        %v3247 = vadd.f32 %v3188, %v3246
        %3248 = vmatmul.bf16.gmra.mxu0 %v2420
        %v3249 = vpop.f32.mrf.mxu0
        %v3250 = vadd.f32 %v3191, %v3249
        %v3251 = vpop.f32.mrf.mxu0
        %v3252 = vadd.f32 %v3193, %v3251
        %3253 = vmatmul.bf16.gmra.mxu0 %v2429
        %v3254 = vpop.f32.mrf.mxu0
        %v3255 = vadd.f32 %v3196, %v3254
        %v3256 = vpop.f32.mrf.mxu0
        %v3257 = vadd.f32 %v3198, %v3256
        %3258 = vmatmul.bf16.gmra.mxu0 %v2438
        %v3259 = vpop.f32.mrf.mxu0
        %v3260 = vadd.f32 %v3201, %v3259
        %v3261 = vpop.f32.mrf.mxu0
        %v3262 = vadd.f32 %v3203, %v3261
        %3263 = vmatmul.bf16.gmra.mxu0 %v2447
        %v3264 = vpop.f32.mrf.mxu0
        %v3265 = vadd.f32 %v3206, %v3264
        %v3266 = vpop.f32.mrf.mxu0
        %v3267 = vadd.f32 %v3208, %v3266
        %3268 = vdwg.mxu0
        %3269 = vmatpush.bf16.msra.mxu0 %v2877
        %3270 = vmatpush.bf16.msra.mxu0 %v2876
        %3271 = vmatpush.bf16.msra.mxu0 %v2875
        %3272 = vmatpush.bf16.msra.mxu0 %v2874
        %3273 = vmatpush.bf16.msra.mxu0 %v2873
        %3274 = vmatpush.bf16.msra.mxu0 %v2872
        %3275 = vmatpush.bf16.msra.mxu0 %v2871
        %3276 = vmatpush.bf16.msra.mxu0 %v2870
        %3277 = vmatmul.bf16.gmra.mxu0 %v2367
        %v3278 = vpop.f32.mrf.mxu0
        %v3279 = vadd.f32 %v3220, %v3278
        %v3280 = vpop.f32.mrf.mxu0
        %v3281 = vadd.f32 %v3222, %v3280
        %3282 = vmatmul.bf16.gmra.mxu0 %v2376
        %v3283 = vpop.f32.mrf.mxu0
        %v3284 = vadd.f32 %v3225, %v3283
        %v3285 = vpop.f32.mrf.mxu0
        %v3286 = vadd.f32 %v3227, %v3285
        %3287 = vmatmul.bf16.gmra.mxu0 %v2385
        %v3288 = vpop.f32.mrf.mxu0
        %v3289 = vadd.f32 %v3230, %v3288
        %v3290 = vpop.f32.mrf.mxu0
        %v3291 = vadd.f32 %v3232, %v3290
        %3292 = vmatmul.bf16.gmra.mxu0 %v2394
        %v3293 = vpop.f32.mrf.mxu0
        %v3294 = vadd.f32 %v3235, %v3293
        %v3295 = vpop.f32.mrf.mxu0
        %v3296 = vadd.f32 %v3237, %v3295
        %3297 = vmatmul.bf16.gmra.mxu0 %v2403
        %v3298 = vpop.f32.mrf.mxu0
        %v3299 = vadd.f32 %v3240, %v3298
        %v3300 = vpop.f32.mrf.mxu0
        %v3301 = vadd.f32 %v3242, %v3300
        %3302 = vmatmul.bf16.gmra.mxu0 %v2412
        %v3303 = vpop.f32.mrf.mxu0
        %v3304 = vadd.f32 %v3245, %v3303
        %v3305 = vpop.f32.mrf.mxu0
        %v3306 = vadd.f32 %v3247, %v3305
        %3307 = vmatmul.bf16.gmra.mxu0 %v2421
        %v3308 = vpop.f32.mrf.mxu0
        %v3309 = vadd.f32 %v3250, %v3308
        %v3310 = vpop.f32.mrf.mxu0
        %v3311 = vadd.f32 %v3252, %v3310
        %3312 = vmatmul.bf16.gmra.mxu0 %v2430
        %v3313 = vpop.f32.mrf.mxu0
        %v3314 = vadd.f32 %v3255, %v3313
        %v3315 = vpop.f32.mrf.mxu0
        %v3316 = vadd.f32 %v3257, %v3315
        %3317 = vmatmul.bf16.gmra.mxu0 %v2439
        %v3318 = vpop.f32.mrf.mxu0
        %v3319 = vadd.f32 %v3260, %v3318
        %v3320 = vpop.f32.mrf.mxu0
        %v3321 = vadd.f32 %v3262, %v3320
        %3322 = vmatmul.bf16.gmra.mxu0 %v2448
        %v3323 = vpop.f32.mrf.mxu0
        %v3324 = vadd.f32 %v3265, %v3323
        %v3325 = vpop.f32.mrf.mxu0
        %v3326 = vadd.f32 %v3267, %v3325
        %3327 = vdwg.mxu0
        %3328 = vmatpush.bf16.msra.mxu0 %v2885
        %3329 = vmatpush.bf16.msra.mxu0 %v2884
        %3330 = vmatpush.bf16.msra.mxu0 %v2883
        %3331 = vmatpush.bf16.msra.mxu0 %v2882
        %3332 = vmatpush.bf16.msra.mxu0 %v2881
        %3333 = vmatpush.bf16.msra.mxu0 %v2880
        %3334 = vmatpush.bf16.msra.mxu0 %v2879
        %3335 = vmatpush.bf16.msra.mxu0 %v2878
        %3336 = vmatmul.bf16.gmra.mxu0 %v2368
        %v3337 = vpop.f32.mrf.mxu0
        %v3338 = vadd.f32 %v3279, %v3337
        %v3339 = vpop.f32.mrf.mxu0
        %v3340 = vadd.f32 %v3281, %v3339
        %3341 = vmatmul.bf16.gmra.mxu0 %v2377
        %v3342 = vpop.f32.mrf.mxu0
        %v3343 = vadd.f32 %v3284, %v3342
        %v3344 = vpop.f32.mrf.mxu0
        %v3345 = vadd.f32 %v3286, %v3344
        %3346 = vmatmul.bf16.gmra.mxu0 %v2386
        %v3347 = vpop.f32.mrf.mxu0
        %v3348 = vadd.f32 %v3289, %v3347
        %v3349 = vpop.f32.mrf.mxu0
        %v3350 = vadd.f32 %v3291, %v3349
        %3351 = vmatmul.bf16.gmra.mxu0 %v2395
        %v3352 = vpop.f32.mrf.mxu0
        %v3353 = vadd.f32 %v3294, %v3352
        %v3354 = vpop.f32.mrf.mxu0
        %v3355 = vadd.f32 %v3296, %v3354
        %3356 = vmatmul.bf16.gmra.mxu0 %v2404
        %v3357 = vpop.f32.mrf.mxu0
        %v3358 = vadd.f32 %v3299, %v3357
        %v3359 = vpop.f32.mrf.mxu0
        %v3360 = vadd.f32 %v3301, %v3359
        %3361 = vmatmul.bf16.gmra.mxu0 %v2413
        %v3362 = vpop.f32.mrf.mxu0
        %v3363 = vadd.f32 %v3304, %v3362
        %v3364 = vpop.f32.mrf.mxu0
        %v3365 = vadd.f32 %v3306, %v3364
        %3366 = vmatmul.bf16.gmra.mxu0 %v2422
        %v3367 = vpop.f32.mrf.mxu0
        %v3368 = vadd.f32 %v3309, %v3367
        %v3369 = vpop.f32.mrf.mxu0
        %v3370 = vadd.f32 %v3311, %v3369
        %3371 = vmatmul.bf16.gmra.mxu0 %v2431
        %v3372 = vpop.f32.mrf.mxu0
        %v3373 = vadd.f32 %v3314, %v3372
        %v3374 = vpop.f32.mrf.mxu0
        %v3375 = vadd.f32 %v3316, %v3374
        %3376 = vmatmul.bf16.gmra.mxu0 %v2440
        %v3377 = vpop.f32.mrf.mxu0
        %v3378 = vadd.f32 %v3319, %v3377
        %v3379 = vpop.f32.mrf.mxu0
        %v3380 = vadd.f32 %v3321, %v3379
        %3381 = vmatmul.bf16.gmra.mxu0 %v2449
        %v3382 = vpop.f32.mrf.mxu0
        %v3383 = vadd.f32 %v3324, %v3382
        %v3384 = vpop.f32.mrf.mxu0
        %v3385 = vadd.f32 %v3326, %v3384
        %3386 = vdwg.mxu0
        %3387 = vmatpush.bf16.msra.mxu0 %v2893
        %3388 = vmatpush.bf16.msra.mxu0 %v2892
        %3389 = vmatpush.bf16.msra.mxu0 %v2891
        %3390 = vmatpush.bf16.msra.mxu0 %v2890
        %3391 = vmatpush.bf16.msra.mxu0 %v2889
        %3392 = vmatpush.bf16.msra.mxu0 %v2888
        %3393 = vmatpush.bf16.msra.mxu0 %v2887
        %3394 = vmatpush.bf16.msra.mxu0 %v2886
        %3395 = vmatmul.bf16.gmra.mxu0 %v2369
        %v3396 = vpop.f32.mrf.mxu0
        %v3397 = vadd.f32 %v3338, %v3396
        %v3398 = vpop.f32.mrf.mxu0
        %v3399 = vadd.f32 %v3340, %v3398
        %3400 = vmatmul.bf16.gmra.mxu0 %v2378
        %v3401 = vpop.f32.mrf.mxu0
        %v3402 = vadd.f32 %v3343, %v3401
        %v3403 = vpop.f32.mrf.mxu0
        %v3404 = vadd.f32 %v3345, %v3403
        %3405 = vmatmul.bf16.gmra.mxu0 %v2387
        %v3406 = vpop.f32.mrf.mxu0
        %v3407 = vadd.f32 %v3348, %v3406
        %v3408 = vpop.f32.mrf.mxu0
        %v3409 = vadd.f32 %v3350, %v3408
        %3410 = vmatmul.bf16.gmra.mxu0 %v2396
        %v3411 = vpop.f32.mrf.mxu0
        %v3412 = vadd.f32 %v3353, %v3411
        %v3413 = vpop.f32.mrf.mxu0
        %v3414 = vadd.f32 %v3355, %v3413
        %3415 = vmatmul.bf16.gmra.mxu0 %v2405
        %v3416 = vpop.f32.mrf.mxu0
        %v3417 = vadd.f32 %v3358, %v3416
        %v3418 = vpop.f32.mrf.mxu0
        %v3419 = vadd.f32 %v3360, %v3418
        %3420 = vmatmul.bf16.gmra.mxu0 %v2414
        %v3421 = vpop.f32.mrf.mxu0
        %v3422 = vadd.f32 %v3363, %v3421
        %v3423 = vpop.f32.mrf.mxu0
        %v3424 = vadd.f32 %v3365, %v3423
        %3425 = vmatmul.bf16.gmra.mxu0 %v2423
        %v3426 = vpop.f32.mrf.mxu0
        %v3427 = vadd.f32 %v3368, %v3426
        %v3428 = vpop.f32.mrf.mxu0
        %v3429 = vadd.f32 %v3370, %v3428
        %3430 = vmatmul.bf16.gmra.mxu0 %v2432
        %v3431 = vpop.f32.mrf.mxu0
        %v3432 = vadd.f32 %v3373, %v3431
        %v3433 = vpop.f32.mrf.mxu0
        %v3434 = vadd.f32 %v3375, %v3433
        %3435 = vmatmul.bf16.gmra.mxu0 %v2441
        %v3436 = vpop.f32.mrf.mxu0
        %v3437 = vadd.f32 %v3378, %v3436
        %v3438 = vpop.f32.mrf.mxu0
        %v3439 = vadd.f32 %v3380, %v3438
        %3440 = vmatmul.bf16.gmra.mxu0 %v2450
        %v3441 = vpop.f32.mrf.mxu0
        %v3442 = vadd.f32 %v3383, %v3441
        %v3443 = vpop.f32.mrf.mxu0
        %v3444 = vadd.f32 %v3385, %v3443
        %3445 = vdwg.mxu0
        %3446 = vmatpush.bf16.msra.mxu0 %v2901
        %3447 = vmatpush.bf16.msra.mxu0 %v2900
        %3448 = vmatpush.bf16.msra.mxu0 %v2899
        %3449 = vmatpush.bf16.msra.mxu0 %v2898
        %3450 = vmatpush.bf16.msra.mxu0 %v2897
        %3451 = vmatpush.bf16.msra.mxu0 %v2896
        %3452 = vmatpush.bf16.msra.mxu0 %v2895
        %3453 = vmatpush.bf16.msra.mxu0 %v2894
        %3454 = vmatmul.bf16.gmra.mxu0 %v2370
        %v3455 = vpop.f32.mrf.mxu0
        %v3456 = vadd.f32 %v3397, %v3455
        %v3457 = vpop.f32.mrf.mxu0
        %v3458 = vadd.f32 %v3399, %v3457
        %3459 = vmatmul.bf16.gmra.mxu0 %v2379
        %v3460 = vpop.f32.mrf.mxu0
        %v3461 = vadd.f32 %v3402, %v3460
        %v3462 = vpop.f32.mrf.mxu0
        %v3463 = vadd.f32 %v3404, %v3462
        %3464 = vmatmul.bf16.gmra.mxu0 %v2388
        %v3465 = vpop.f32.mrf.mxu0
        %v3466 = vadd.f32 %v3407, %v3465
        %v3467 = vpop.f32.mrf.mxu0
        %v3468 = vadd.f32 %v3409, %v3467
        %3469 = vmatmul.bf16.gmra.mxu0 %v2397
        %v3470 = vpop.f32.mrf.mxu0
        %v3471 = vadd.f32 %v3412, %v3470
        %v3472 = vpop.f32.mrf.mxu0
        %v3473 = vadd.f32 %v3414, %v3472
        %3474 = vmatmul.bf16.gmra.mxu0 %v2406
        %v3475 = vpop.f32.mrf.mxu0
        %v3476 = vadd.f32 %v3417, %v3475
        %v3477 = vpop.f32.mrf.mxu0
        %v3478 = vadd.f32 %v3419, %v3477
        %3479 = vmatmul.bf16.gmra.mxu0 %v2415
        %v3480 = vpop.f32.mrf.mxu0
        %v3481 = vadd.f32 %v3422, %v3480
        %v3482 = vpop.f32.mrf.mxu0
        %v3483 = vadd.f32 %v3424, %v3482
        %3484 = vmatmul.bf16.gmra.mxu0 %v2424
        %v3485 = vpop.f32.mrf.mxu0
        %v3486 = vadd.f32 %v3427, %v3485
        %v3487 = vpop.f32.mrf.mxu0
        %v3488 = vadd.f32 %v3429, %v3487
        %3489 = vmatmul.bf16.gmra.mxu0 %v2433
        %v3490 = vpop.f32.mrf.mxu0
        %v3491 = vadd.f32 %v3432, %v3490
        %v3492 = vpop.f32.mrf.mxu0
        %v3493 = vadd.f32 %v3434, %v3492
        %3494 = vmatmul.bf16.gmra.mxu0 %v2442
        %v3495 = vpop.f32.mrf.mxu0
        %v3496 = vadd.f32 %v3437, %v3495
        %v3497 = vpop.f32.mrf.mxu0
        %v3498 = vadd.f32 %v3439, %v3497
        %3499 = vmatmul.bf16.gmra.mxu0 %v2451
        %v3500 = vpop.f32.mrf.mxu0
        %v3501 = vadd.f32 %v3442, %v3500
        %v3502 = vpop.f32.mrf.mxu0
        %v3503 = vadd.f32 %v3444, %v3502
        %3504 = vdwg.mxu0
        %v3505 = vmax.f32 %v3456, 0.0
        %v3506 = vmax.f32 %v3458, 0.0
        %v3507 = vmax.f32 %v3461, 0.0
        %v3508 = vmax.f32 %v3463, 0.0
        %v3509 = vmax.f32 %v3466, 0.0
        %v3510 = vmax.f32 %v3468, 0.0
        %v3511 = vmax.f32 %v3471, 0.0
        %v3512 = vmax.f32 %v3473, 0.0
        %v3513 = vmax.f32 %v3476, 0.0
        %v3514 = vmax.f32 %v3478, 0.0
        %v3515 = vmax.f32 %v3481, 0.0
        %v3516 = vmax.f32 %v3483, 0.0
        %v3517 = vmax.f32 %v3486, 0.0
        %v3518 = vmax.f32 %v3488, 0.0
        %v3519 = vmax.f32 %v3491, 0.0
        %v3520 = vmax.f32 %v3493, 0.0
        %v3521 = vmax.f32 %v3496, 0.0
        %v3522 = vmax.f32 %v3498, 0.0
        %v3523 = vmax.f32 %v3501, 0.0
        %v3524 = vmax.f32 %v3503, 0.0
        %v3525 = vpack.c.bf16 %v3505, %v3505
        %v3526 = vpack.c.bf16 %v3506, %v3506
        %v3527 = vpack.c.bf16 %v3507, %v3507
        %v3528 = vpack.c.bf16 %v3508, %v3508
        %v3529 = vpack.c.bf16 %v3509, %v3509
        %v3530 = vpack.c.bf16 %v3510, %v3510
        %v3531 = vpack.c.bf16 %v3511, %v3511
        %v3532 = vpack.c.bf16 %v3512, %v3512
        %v3533 = vpack.c.bf16 %v3513, %v3513
        %v3534 = vpack.c.bf16 %v3514, %v3514
        %v3535 = vpack.c.bf16 %v3515, %v3515
        %v3536 = vpack.c.bf16 %v3516, %v3516
        %v3537 = vpack.c.bf16 %v3517, %v3517
        %v3538 = vpack.c.bf16 %v3518, %v3518
        %v3539 = vpack.c.bf16 %v3519, %v3519
        %v3540 = vpack.c.bf16 %v3520, %v3520
        %v3541 = vpack.c.bf16 %v3521, %v3521
        %v3542 = vpack.c.bf16 %v3522, %v3522
        %v3543 = vpack.c.bf16 %v3523, %v3523
        %v3544 = vpack.c.bf16 %v3524, %v3524
        %vm3545 = vsmask.f32 256
        %vm3546 = vsmask.f32 4368
        %vm3547 = vmor %vm3545, %vm3546
        %v3549 = vshrl.u32 %v3525, 16
        %v3551 = vrot.slane %v3549, 7
        %v3552 = vshll.u32 %v3525, 16
        %v3554 = vor.u32 %v3551, %v3552
        %v3555 = vrot.slane %v3551, 4
        %v3557 = vshrl.u32 %v3526, 16
        %v3559 = vrot.slane %v3557, 7
        %v3560 = vshll.u32 %v3526, 16
        %v3562 = vor.u32 %v3559, %v3560
        %v3563 = vsel %vm3547, %v3555, %v3562
        %v3564 = vrot.slane %v3559, 4
        %v3566 = vshrl.u32 %v3527, 16
        %v3568 = vrot.slane %v3566, 7
        %v3569 = vshll.u32 %v3527, 16
        %v3571 = vor.u32 %v3568, %v3569
        %v3572 = vrot.slane %v3568, 4
        %v3574 = vshrl.u32 %v3528, 16
        %v3576 = vrot.slane %v3574, 7
        %v3577 = vshll.u32 %v3528, 16
        %v3579 = vor.u32 %v3576, %v3577
        %v3580 = vsel %vm3547, %v3572, %v3579
        %v3581 = vrot.slane %v3576, 4
        %v3583 = vshrl.u32 %v3529, 16
        %v3585 = vrot.slane %v3583, 7
        %v3586 = vshll.u32 %v3529, 16
        %v3588 = vor.u32 %v3585, %v3586
        %v3589 = vrot.slane %v3585, 4
        %v3591 = vshrl.u32 %v3530, 16
        %v3593 = vrot.slane %v3591, 7
        %v3594 = vshll.u32 %v3530, 16
        %v3596 = vor.u32 %v3593, %v3594
        %v3597 = vsel %vm3547, %v3589, %v3596
        %v3598 = vrot.slane %v3593, 4
        %v3600 = vshrl.u32 %v3531, 16
        %v3602 = vrot.slane %v3600, 7
        %v3603 = vshll.u32 %v3531, 16
        %v3605 = vor.u32 %v3602, %v3603
        %v3606 = vrot.slane %v3602, 4
        %v3608 = vshrl.u32 %v3532, 16
        %v3610 = vrot.slane %v3608, 7
        %v3611 = vshll.u32 %v3532, 16
        %v3613 = vor.u32 %v3610, %v3611
        %v3614 = vsel %vm3547, %v3606, %v3613
        %v3615 = vrot.slane %v3610, 4
        %v3617 = vshrl.u32 %v3533, 16
        %v3619 = vrot.slane %v3617, 7
        %v3620 = vshll.u32 %v3533, 16
        %v3622 = vor.u32 %v3619, %v3620
        %v3623 = vrot.slane %v3619, 4
        %v3625 = vshrl.u32 %v3534, 16
        %v3627 = vrot.slane %v3625, 7
        %v3628 = vshll.u32 %v3534, 16
        %v3630 = vor.u32 %v3627, %v3628
        %v3631 = vsel %vm3547, %v3623, %v3630
        %v3632 = vrot.slane %v3627, 4
        %v3634 = vshrl.u32 %v3535, 16
        %v3636 = vrot.slane %v3634, 7
        %v3637 = vshll.u32 %v3535, 16
        %v3639 = vor.u32 %v3636, %v3637
        %v3640 = vrot.slane %v3636, 4
        %v3642 = vshrl.u32 %v3536, 16
        %v3644 = vrot.slane %v3642, 7
        %v3645 = vshll.u32 %v3536, 16
        %v3647 = vor.u32 %v3644, %v3645
        %v3648 = vsel %vm3547, %v3640, %v3647
        %v3649 = vrot.slane %v3644, 4
        %v3651 = vshrl.u32 %v3537, 16
        %v3653 = vrot.slane %v3651, 7
        %v3654 = vshll.u32 %v3537, 16
        %v3656 = vor.u32 %v3653, %v3654
        %v3657 = vrot.slane %v3653, 4
        %v3659 = vshrl.u32 %v3538, 16
        %v3661 = vrot.slane %v3659, 7
        %v3662 = vshll.u32 %v3538, 16
        %v3664 = vor.u32 %v3661, %v3662
        %v3665 = vsel %vm3547, %v3657, %v3664
        %v3666 = vrot.slane %v3661, 4
        %v3668 = vshrl.u32 %v3539, 16
        %v3670 = vrot.slane %v3668, 7
        %v3671 = vshll.u32 %v3539, 16
        %v3673 = vor.u32 %v3670, %v3671
        %v3674 = vrot.slane %v3670, 4
        %v3676 = vshrl.u32 %v3540, 16
        %v3678 = vrot.slane %v3676, 7
        %v3679 = vshll.u32 %v3540, 16
        %v3681 = vor.u32 %v3678, %v3679
        %v3682 = vsel %vm3547, %v3674, %v3681
        %v3683 = vrot.slane %v3678, 4
        %v3685 = vshrl.u32 %v3541, 16
        %v3687 = vrot.slane %v3685, 7
        %v3688 = vshll.u32 %v3541, 16
        %v3690 = vor.u32 %v3687, %v3688
        %v3691 = vrot.slane %v3687, 4
        %v3693 = vshrl.u32 %v3542, 16
        %v3695 = vrot.slane %v3693, 7
        %v3696 = vshll.u32 %v3542, 16
        %v3698 = vor.u32 %v3695, %v3696
        %v3699 = vsel %vm3547, %v3691, %v3698
        %v3700 = vrot.slane %v3695, 4
        %v3702 = vshrl.u32 %v3543, 16
        %v3704 = vrot.slane %v3702, 7
        %v3705 = vshll.u32 %v3543, 16
        %v3707 = vor.u32 %v3704, %v3705
        %v3708 = vrot.slane %v3704, 4
        %v3710 = vshrl.u32 %v3544, 16
        %v3712 = vrot.slane %v3710, 7
        %v3713 = vshll.u32 %v3544, 16
        %v3715 = vor.u32 %v3712, %v3713
        %v3716 = vsel %vm3547, %v3708, %v3715
        %v3717 = vrot.slane %v3712, 4
        %vm3748 = vcmask 1043456
        %vm3749 = vsmask.f32 7938
        %vm3750 = vmand %vm3748, %vm3749
        %v3751 = vld [vmem:[#allocation3] sm:$0xf]
        %v3752 = vsel %vm3750, %v3554, %v3751
        %3753 = vst [vmem:[#allocation3] sm:$0xf] %v3752
        %3754 = vst [vmem:[#allocation3 + $0x4] sm:$0xf] %v3563
        %vm3755 = vcmask 1040384
        %vm3756 = vmand %vm3755, %vm3545
        %v3757 = vld [vmem:[#allocation3 + $0x8] sm:$0x1]
        %v3758 = vsel %vm3756, %v3564, %v3757
        %3759 = vst [vmem:[#allocation3 + $0x8] sm:$0x1] %v3758
        %v3760 = vld [vmem:[#allocation3 + $0xc] sm:$0xf]
        %v3761 = vsel %vm3750, %v3571, %v3760
        %3762 = vst [vmem:[#allocation3 + $0xc] sm:$0xf] %v3761
        %3763 = vst [vmem:[#allocation3 + $0x10] sm:$0xf] %v3580
        %v3764 = vld [vmem:[#allocation3 + $0x14] sm:$0x1]
        %v3765 = vsel %vm3756, %v3581, %v3764
        %3766 = vst [vmem:[#allocation3 + $0x14] sm:$0x1] %v3765
        %v3767 = vld [vmem:[#allocation3 + $0x18] sm:$0xf]
        %v3768 = vsel %vm3750, %v3588, %v3767
        %3769 = vst [vmem:[#allocation3 + $0x18] sm:$0xf] %v3768
        %3770 = vst [vmem:[#allocation3 + $0x1c] sm:$0xf] %v3597
        %v3771 = vld [vmem:[#allocation3 + $0x20] sm:$0x1]
        %v3772 = vsel %vm3756, %v3598, %v3771
        %3773 = vst [vmem:[#allocation3 + $0x20] sm:$0x1] %v3772
        %v3774 = vld [vmem:[#allocation3 + $0x24] sm:$0xf]
        %v3775 = vsel %vm3750, %v3605, %v3774
        %3776 = vst [vmem:[#allocation3 + $0x24] sm:$0xf] %v3775
        %3777 = vst [vmem:[#allocation3 + $0x28] sm:$0xf] %v3614
        %v3778 = vld [vmem:[#allocation3 + $0x2c] sm:$0x1]
        %v3779 = vsel %vm3756, %v3615, %v3778
        %3780 = vst [vmem:[#allocation3 + $0x2c] sm:$0x1] %v3779
        %v3781 = vld [vmem:[#allocation3 + $0x30] sm:$0xf]
        %v3782 = vsel %vm3750, %v3622, %v3781
        %3783 = vst [vmem:[#allocation3 + $0x30] sm:$0xf] %v3782
        %3784 = vst [vmem:[#allocation3 + $0x34] sm:$0xf] %v3631
        %v3785 = vld [vmem:[#allocation3 + $0x38] sm:$0x1]
        %v3786 = vsel %vm3756, %v3632, %v3785
        %3787 = vst [vmem:[#allocation3 + $0x38] sm:$0x1] %v3786
        %v3788 = vld [vmem:[#allocation3 + $0x3c] sm:$0xf]
        %v3789 = vsel %vm3750, %v3639, %v3788
        %3790 = vst [vmem:[#allocation3 + $0x3c] sm:$0xf] %v3789
        %3791 = vst [vmem:[#allocation3 + $0x40] sm:$0xf] %v3648
        %v3792 = vld [vmem:[#allocation3 + $0x44] sm:$0x1]
        %v3793 = vsel %vm3756, %v3649, %v3792
        %3794 = vst [vmem:[#allocation3 + $0x44] sm:$0x1] %v3793
        %v3795 = vld [vmem:[#allocation3 + $0x48] sm:$0xf]
        %v3796 = vsel %vm3750, %v3656, %v3795
        %3797 = vst [vmem:[#allocation3 + $0x48] sm:$0xf] %v3796
        %3798 = vst [vmem:[#allocation3 + $0x4c] sm:$0xf] %v3665
        %v3799 = vld [vmem:[#allocation3 + $0x50] sm:$0x1]
        %v3800 = vsel %vm3756, %v3666, %v3799
        %3801 = vst [vmem:[#allocation3 + $0x50] sm:$0x1] %v3800
        %v3802 = vld [vmem:[#allocation3 + $0x54] sm:$0xf]
        %v3803 = vsel %vm3750, %v3673, %v3802
        %3804 = vst [vmem:[#allocation3 + $0x54] sm:$0xf] %v3803
        %3805 = vst [vmem:[#allocation3 + $0x58] sm:$0xf] %v3682
        %v3806 = vld [vmem:[#allocation3 + $0x5c] sm:$0x1]
        %v3807 = vsel %vm3756, %v3683, %v3806
        %3808 = vst [vmem:[#allocation3 + $0x5c] sm:$0x1] %v3807
        %v3809 = vld [vmem:[#allocation3 + $0x60] sm:$0xf]
        %v3810 = vsel %vm3750, %v3690, %v3809
        %3811 = vst [vmem:[#allocation3 + $0x60] sm:$0xf] %v3810
        %3812 = vst [vmem:[#allocation3 + $0x64] sm:$0xf] %v3699
        %v3813 = vld [vmem:[#allocation3 + $0x68] sm:$0x1]
        %v3814 = vsel %vm3756, %v3700, %v3813
        %3815 = vst [vmem:[#allocation3 + $0x68] sm:$0x1] %v3814
        %v3816 = vld [vmem:[#allocation3 + $0x6c] sm:$0xf]
        %v3817 = vsel %vm3750, %v3707, %v3816
        %3818 = vst [vmem:[#allocation3 + $0x6c] sm:$0xf] %v3817
        %3819 = vst [vmem:[#allocation3 + $0x70] sm:$0xf] %v3716
        %v3820 = vld [vmem:[#allocation3 + $0x74] sm:$0x1]
        %v3821 = vsel %vm3756, %v3717, %v3820
        %3822 = vst [vmem:[#allocation3 + $0x74] sm:$0x1] %v3821
        %v3823 = vld [vmem:[#allocation3] sm:$0x1]
        %v3824 = vsel %vm3756, 0, %v3823
        %3825 = vst [vmem:[#allocation3] sm:$0x1] %v3824
        %v3826 = vld [vmem:[#allocation3 + $0xc] sm:$0x1]
        %v3827 = vsel %vm3756, 0, %v3826
        %3828 = vst [vmem:[#allocation3 + $0xc] sm:$0x1] %v3827
        %v3829 = vld [vmem:[#allocation3 + $0x18] sm:$0x1]
        %v3830 = vsel %vm3756, 0, %v3829
        %3831 = vst [vmem:[#allocation3 + $0x18] sm:$0x1] %v3830
        %v3832 = vld [vmem:[#allocation3 + $0x24] sm:$0x1]
        %v3833 = vsel %vm3756, 0, %v3832
        %3834 = vst [vmem:[#allocation3 + $0x24] sm:$0x1] %v3833
        %v3835 = vld [vmem:[#allocation3 + $0x30] sm:$0x1]
        %v3836 = vsel %vm3756, 0, %v3835
        %3837 = vst [vmem:[#allocation3 + $0x30] sm:$0x1] %v3836
        %v3838 = vld [vmem:[#allocation3 + $0x3c] sm:$0x1]
        %v3839 = vsel %vm3756, 0, %v3838
        %3840 = vst [vmem:[#allocation3 + $0x3c] sm:$0x1] %v3839
        %v3841 = vld [vmem:[#allocation3 + $0x48] sm:$0x1]
        %v3842 = vsel %vm3756, 0, %v3841
        %3843 = vst [vmem:[#allocation3 + $0x48] sm:$0x1] %v3842
        %v3844 = vld [vmem:[#allocation3 + $0x54] sm:$0x1]
        %v3845 = vsel %vm3756, 0, %v3844
        %3846 = vst [vmem:[#allocation3 + $0x54] sm:$0x1] %v3845
        %v3847 = vld [vmem:[#allocation3 + $0x60] sm:$0x1]
        %v3848 = vsel %vm3756, 0, %v3847
        %3849 = vst [vmem:[#allocation3 + $0x60] sm:$0x1] %v3848
        %v3850 = vld [vmem:[#allocation3 + $0x6c] sm:$0x1]
        %v3851 = vsel %vm3756, 0, %v3850
        %3852 = vst [vmem:[#allocation3 + $0x6c] sm:$0x1] %v3851
        %vm3853 = vmand %vm3755, %vm3749
        %v3854 = vld [vmem:[#allocation3 + $0x8] sm:$0x1]
        %v3855 = vsel %vm3853, 0, %v3854
        %3856 = vst [vmem:[#allocation3 + $0x8] sm:$0x1] %v3855
        %v3857 = vld [vmem:[#allocation3 + $0x14] sm:$0x1]
        %v3858 = vsel %vm3853, 0, %v3857
        %3859 = vst [vmem:[#allocation3 + $0x14] sm:$0x1] %v3858
        %v3860 = vld [vmem:[#allocation3 + $0x20] sm:$0x1]
        %v3861 = vsel %vm3853, 0, %v3860
        %3862 = vst [vmem:[#allocation3 + $0x20] sm:$0x1] %v3861
        %v3863 = vld [vmem:[#allocation3 + $0x2c] sm:$0x1]
        %v3864 = vsel %vm3853, 0, %v3863
        %3865 = vst [vmem:[#allocation3 + $0x2c] sm:$0x1] %v3864
        %v3866 = vld [vmem:[#allocation3 + $0x38] sm:$0x1]
        %v3867 = vsel %vm3853, 0, %v3866
        %3868 = vst [vmem:[#allocation3 + $0x38] sm:$0x1] %v3867
        %v3869 = vld [vmem:[#allocation3 + $0x44] sm:$0x1]
        %v3870 = vsel %vm3853, 0, %v3869
        %3871 = vst [vmem:[#allocation3 + $0x44] sm:$0x1] %v3870
        %v3872 = vld [vmem:[#allocation3 + $0x50] sm:$0x1]
        %v3873 = vsel %vm3853, 0, %v3872
        %3874 = vst [vmem:[#allocation3 + $0x50] sm:$0x1] %v3873
        %v3875 = vld [vmem:[#allocation3 + $0x5c] sm:$0x1]
        %v3876 = vsel %vm3853, 0, %v3875
        %3877 = vst [vmem:[#allocation3 + $0x5c] sm:$0x1] %v3876
        %v3878 = vld [vmem:[#allocation3 + $0x68] sm:$0x1]
        %v3879 = vsel %vm3853, 0, %v3878
        %3880 = vst [vmem:[#allocation3 + $0x68] sm:$0x1] %v3879
        %v3881 = vld [vmem:[#allocation3 + $0x74] sm:$0x1]
        %v3882 = vsel %vm3853, 0, %v3881
        %3883 = vst [vmem:[#allocation3 + $0x74] sm:$0x1] %v3882
        %p3884 = scmp.eq.s32.totalorder %s25, 0
        // Predicated region
        $region45: #{tpu_custom_call.1} parent=39 // pred_check
          %p3885 = pneg %p3884
        $region46: #{tpu_custom_call.1} parent=39 // pred_check_branch
          %3887 = sbr.rel (%p3885) target = $region48
        $region47: #{tpu_custom_call.1} parent=39 // pred_region
          %3888 = vst [vmem:[#allocation3] sm:$0xf] 0
          %3889 = vst [vmem:[#allocation3 + $0x4] sm:$0xf] 0
          %3890 = vst [vmem:[#allocation3 + $0x8] sm:$0x1] 0
        $region48: #{tpu_custom_call.1} parent=39 // pred_fallthru
          _
        %p3891 = scmp.eq.s32.totalorder %s25, 1
        // Predicated region
        $region49: #{tpu_custom_call.1} parent=39 // pred_check
          %p3892 = pneg %p3891
        $region50: #{tpu_custom_call.1} parent=39 // pred_check_branch
          %3894 = sbr.rel (%p3892) target = $region52
        $region51: #{tpu_custom_call.1} parent=39 // pred_region
          %s3895 = scalar_lea.vmem [#allocation3], 108
          %3896 = vst [vmem:[%s3895] sm:$0xf] 0
          %3897 = vst [vmem:[%s3895 + $0x4] sm:$0xf] 0
          %3898 = vst [vmem:[%s3895 + $0x8] sm:$0x1] 0
        $region52: #{tpu_custom_call.1} parent=39 // pred_fallthru
          _
        %v3899 = vld [vmem:[#allocation3] sm:$0xf]
        %v3900 = vld [vmem:[#allocation3 + $0x4] sm:$0xf]
        %v3901 = vld [vmem:[#allocation3 + $0xc] sm:$0xf]
        %v3902 = vld [vmem:[#allocation3 + $0x10] sm:$0xf]
        %v3903 = vld [vmem:[#allocation3 + $0x18] sm:$0xf]
        %v3904 = vld [vmem:[#allocation3 + $0x1c] sm:$0xf]
        %v3905 = vld [vmem:[#allocation3 + $0x24] sm:$0xf]
        %v3906 = vld [vmem:[#allocation3 + $0x28] sm:$0xf]
        %v3907 = vld [vmem:[#allocation3 + $0x30] sm:$0xf]
        %v3908 = vld [vmem:[#allocation3 + $0x34] sm:$0xf]
        %v3909 = vld [vmem:[#allocation3 + $0x3c] sm:$0xf]
        %v3910 = vld [vmem:[#allocation3 + $0x40] sm:$0xf]
        %v3911 = vld [vmem:[#allocation3 + $0x48] sm:$0xf]
        %v3912 = vld [vmem:[#allocation3 + $0x4c] sm:$0xf]
        %v3913 = vld [vmem:[#allocation3 + $0x54] sm:$0xf]
        %v3914 = vld [vmem:[#allocation3 + $0x58] sm:$0xf]
        %3915 = vst [vmem:[#allocation2] sm:$0xf] %v3899
        %3916 = vst [vmem:[#allocation2 + $0x24] sm:$0xf] %v3900
        %3917 = vst [vmem:[#allocation2 + $0x48] sm:$0xf] %v3901
        %3918 = vst [vmem:[#allocation2 + $0x6c] sm:$0xf] %v3902
        %3919 = vst [vmem:[#allocation2 + $0x90] sm:$0xf] %v3903
        %3920 = vst [vmem:[#allocation2 + $0xb4] sm:$0xf] %v3904
        %3921 = vst [vmem:[#allocation2 + $0xd8] sm:$0xf] %v3905
        %3922 = vst [vmem:[#allocation2 + $0xfc] sm:$0xf] %v3906
        %3923 = vst [vmem:[#allocation2 + $0x120] sm:$0xf] %v3907
        %3924 = vst [vmem:[#allocation2 + $0x144] sm:$0xf] %v3908
        %3925 = vst [vmem:[#allocation2 + $0x168] sm:$0xf] %v3909
        %3926 = vst [vmem:[#allocation2 + $0x18c] sm:$0xf] %v3910
        %3927 = vst [vmem:[#allocation2 + $0x1b0] sm:$0xf] %v3911
        %3928 = vst [vmem:[#allocation2 + $0x1d4] sm:$0xf] %v3912
        %3929 = vst [vmem:[#allocation2 + $0x1f8] sm:$0xf] %v3913
        %3930 = vst [vmem:[#allocation2 + $0x21c] sm:$0xf] %v3914
        %v3931 = vld [vmem:[#allocation3] sm:$0xf]
        %v3932 = vld [vmem:[#allocation3 + $0x4] sm:$0xf]
        %v3933 = vld [vmem:[#allocation3 + $0x8] sm:$0x1]
        %v3934 = vld [vmem:[#allocation3 + $0xc] sm:$0xf]
        %v3935 = vld [vmem:[#allocation3 + $0x10] sm:$0xf]
        %v3936 = vld [vmem:[#allocation3 + $0x14] sm:$0x1]
        %v3937 = vld [vmem:[#allocation3 + $0x18] sm:$0xf]
        %v3938 = vld [vmem:[#allocation3 + $0x1c] sm:$0xf]
        %v3939 = vld [vmem:[#allocation3 + $0x20] sm:$0x1]
        %v3940 = vld [vmem:[#allocation3 + $0x24] sm:$0xf]
        %v3941 = vld [vmem:[#allocation3 + $0x28] sm:$0xf]
        %v3942 = vld [vmem:[#allocation3 + $0x2c] sm:$0x1]
        %v3943 = vld [vmem:[#allocation3 + $0x30] sm:$0xf]
        %v3944 = vld [vmem:[#allocation3 + $0x34] sm:$0xf]
        %v3945 = vld [vmem:[#allocation3 + $0x38] sm:$0x1]
        %v3946 = vld [vmem:[#allocation3 + $0x3c] sm:$0xf]
        %v3947 = vld [vmem:[#allocation3 + $0x40] sm:$0xf]
        %v3948 = vld [vmem:[#allocation3 + $0x44] sm:$0x1]
        %v3949 = vld [vmem:[#allocation3 + $0x48] sm:$0xf]
        %v3950 = vld [vmem:[#allocation3 + $0x4c] sm:$0xf]
        %v3951 = vld [vmem:[#allocation3 + $0x50] sm:$0x1]
        %v3952 = vld [vmem:[#allocation3 + $0x54] sm:$0xf]
        %v3953 = vld [vmem:[#allocation3 + $0x58] sm:$0xf]
        %v3954 = vld [vmem:[#allocation3 + $0x5c] sm:$0x1]
        %v3956 = vshrl.u32 %v3931, 16
        %v3958 = vrot.slane %v3956, 4
        %v3959 = vshll.u32 %v3931, 16
        %v3961 = vrot.slane %v3959, 5
        %v3962 = vor.u32 %v3958, %v3961
        %v3963 = vrot.slane %v3962, 4
        %v3965 = vshll.u32 %v3932, 16
        %v3967 = vrot.slane %v3965, 5
        %v3968 = vsel %vm332, %v3963, %v3967
        %v3969 = vshrl.u32 %v3932, 16
        %v3971 = vrot.slane %v3969, 4
        %v3972 = vor.u32 %v3971, %v3967
        %v3973 = vrot.slane %v3972, 4
        %v3975 = vshll.u32 %v3933, 16
        %v3977 = vrot.slane %v3975, 5
        %v3978 = vsel %vm332, %v3973, %v3977
        %v3980 = vshrl.u32 %v3934, 16
        %v3982 = vrot.slane %v3980, 4
        %v3983 = vshll.u32 %v3934, 16
        %v3985 = vrot.slane %v3983, 5
        %v3986 = vor.u32 %v3982, %v3985
        %v3987 = vrot.slane %v3986, 4
        %v3989 = vshll.u32 %v3935, 16
        %v3991 = vrot.slane %v3989, 5
        %v3992 = vsel %vm332, %v3987, %v3991
        %v3993 = vshrl.u32 %v3935, 16
        %v3995 = vrot.slane %v3993, 4
        %v3996 = vor.u32 %v3995, %v3991
        %v3997 = vrot.slane %v3996, 4
        %v3999 = vshll.u32 %v3936, 16
        %v4001 = vrot.slane %v3999, 5
        %v4002 = vsel %vm332, %v3997, %v4001
        %v4004 = vshrl.u32 %v3937, 16
        %v4006 = vrot.slane %v4004, 4
        %v4007 = vshll.u32 %v3937, 16
        %v4009 = vrot.slane %v4007, 5
        %v4010 = vor.u32 %v4006, %v4009
        %v4011 = vrot.slane %v4010, 4
        %v4013 = vshll.u32 %v3938, 16
        %v4015 = vrot.slane %v4013, 5
        %v4016 = vsel %vm332, %v4011, %v4015
        %v4017 = vshrl.u32 %v3938, 16
        %v4019 = vrot.slane %v4017, 4
        %v4020 = vor.u32 %v4019, %v4015
        %v4021 = vrot.slane %v4020, 4
        %v4023 = vshll.u32 %v3939, 16
        %v4025 = vrot.slane %v4023, 5
        %v4026 = vsel %vm332, %v4021, %v4025
        %v4028 = vshrl.u32 %v3940, 16
        %v4030 = vrot.slane %v4028, 4
        %v4031 = vshll.u32 %v3940, 16
        %v4033 = vrot.slane %v4031, 5
        %v4034 = vor.u32 %v4030, %v4033
        %v4035 = vrot.slane %v4034, 4
        %v4037 = vshll.u32 %v3941, 16
        %v4039 = vrot.slane %v4037, 5
        %v4040 = vsel %vm332, %v4035, %v4039
        %v4041 = vshrl.u32 %v3941, 16
        %v4043 = vrot.slane %v4041, 4
        %v4044 = vor.u32 %v4043, %v4039
        %v4045 = vrot.slane %v4044, 4
        %v4047 = vshll.u32 %v3942, 16
        %v4049 = vrot.slane %v4047, 5
        %v4050 = vsel %vm332, %v4045, %v4049
        %v4052 = vshrl.u32 %v3943, 16
        %v4054 = vrot.slane %v4052, 4
        %v4055 = vshll.u32 %v3943, 16
        %v4057 = vrot.slane %v4055, 5
        %v4058 = vor.u32 %v4054, %v4057
        %v4059 = vrot.slane %v4058, 4
        %v4061 = vshll.u32 %v3944, 16
        %v4063 = vrot.slane %v4061, 5
        %v4064 = vsel %vm332, %v4059, %v4063
        %v4065 = vshrl.u32 %v3944, 16
        %v4067 = vrot.slane %v4065, 4
        %v4068 = vor.u32 %v4067, %v4063
        %v4069 = vrot.slane %v4068, 4
        %v4071 = vshll.u32 %v3945, 16
        %v4073 = vrot.slane %v4071, 5
        %v4074 = vsel %vm332, %v4069, %v4073
        %v4076 = vshrl.u32 %v3946, 16
        %v4078 = vrot.slane %v4076, 4
        %v4079 = vshll.u32 %v3946, 16
        %v4081 = vrot.slane %v4079, 5
        %v4082 = vor.u32 %v4078, %v4081
        %v4083 = vrot.slane %v4082, 4
        %v4085 = vshll.u32 %v3947, 16
        %v4087 = vrot.slane %v4085, 5
        %v4088 = vsel %vm332, %v4083, %v4087
        %v4089 = vshrl.u32 %v3947, 16
        %v4091 = vrot.slane %v4089, 4
        %v4092 = vor.u32 %v4091, %v4087
        %v4093 = vrot.slane %v4092, 4
        %v4095 = vshll.u32 %v3948, 16
        %v4097 = vrot.slane %v4095, 5
        %v4098 = vsel %vm332, %v4093, %v4097
        %v4100 = vshrl.u32 %v3949, 16
        %v4102 = vrot.slane %v4100, 4
        %v4103 = vshll.u32 %v3949, 16
        %v4105 = vrot.slane %v4103, 5
        %v4106 = vor.u32 %v4102, %v4105
        %v4107 = vrot.slane %v4106, 4
        %v4109 = vshll.u32 %v3950, 16
        %v4111 = vrot.slane %v4109, 5
        %v4112 = vsel %vm332, %v4107, %v4111
        %v4113 = vshrl.u32 %v3950, 16
        %v4115 = vrot.slane %v4113, 4
        %v4116 = vor.u32 %v4115, %v4111
        %v4117 = vrot.slane %v4116, 4
        %v4119 = vshll.u32 %v3951, 16
        %v4121 = vrot.slane %v4119, 5
        %v4122 = vsel %vm332, %v4117, %v4121
        %v4124 = vshrl.u32 %v3952, 16
        %v4126 = vrot.slane %v4124, 4
        %v4127 = vshll.u32 %v3952, 16
        %v4129 = vrot.slane %v4127, 5
        %v4130 = vor.u32 %v4126, %v4129
        %v4131 = vrot.slane %v4130, 4
        %v4133 = vshll.u32 %v3953, 16
        %v4135 = vrot.slane %v4133, 5
        %v4136 = vsel %vm332, %v4131, %v4135
        %v4137 = vshrl.u32 %v3953, 16
        %v4139 = vrot.slane %v4137, 4
        %v4140 = vor.u32 %v4139, %v4135
        %v4141 = vrot.slane %v4140, 4
        %v4143 = vshll.u32 %v3954, 16
        %v4145 = vrot.slane %v4143, 5
        %v4146 = vsel %vm332, %v4141, %v4145
        %4163 = vst [vmem:[#allocation2 + $0x4] sm:$0xf] %v3968
        %4164 = vst [vmem:[#allocation2 + $0x28] sm:$0xf] %v3978
        %4165 = vst [vmem:[#allocation2 + $0x4c] sm:$0xf] %v3992
        %4166 = vst [vmem:[#allocation2 + $0x70] sm:$0xf] %v4002
        %4167 = vst [vmem:[#allocation2 + $0x94] sm:$0xf] %v4016
        %4168 = vst [vmem:[#allocation2 + $0xb8] sm:$0xf] %v4026
        %4169 = vst [vmem:[#allocation2 + $0xdc] sm:$0xf] %v4040
        %4170 = vst [vmem:[#allocation2 + $0x100] sm:$0xf] %v4050
        %4171 = vst [vmem:[#allocation2 + $0x124] sm:$0xf] %v4064
        %4172 = vst [vmem:[#allocation2 + $0x148] sm:$0xf] %v4074
        %4173 = vst [vmem:[#allocation2 + $0x16c] sm:$0xf] %v4088
        %4174 = vst [vmem:[#allocation2 + $0x190] sm:$0xf] %v4098
        %4175 = vst [vmem:[#allocation2 + $0x1b4] sm:$0xf] %v4112
        %4176 = vst [vmem:[#allocation2 + $0x1d8] sm:$0xf] %v4122
        %4177 = vst [vmem:[#allocation2 + $0x1fc] sm:$0xf] %v4136
        %4178 = vst [vmem:[#allocation2 + $0x220] sm:$0xf] %v4146
        %v4179 = vld [vmem:[#allocation3] sm:$0xe]
        %v4180 = vld [vmem:[#allocation3 + $0x4] sm:$0xf]
        %v4181 = vld [vmem:[#allocation3 + $0x8] sm:$0x1]
        %v4182 = vld [vmem:[#allocation3 + $0xc] sm:$0xe]
        %v4183 = vld [vmem:[#allocation3 + $0x10] sm:$0xf]
        %v4184 = vld [vmem:[#allocation3 + $0x14] sm:$0x1]
        %v4185 = vld [vmem:[#allocation3 + $0x18] sm:$0xe]
        %v4186 = vld [vmem:[#allocation3 + $0x1c] sm:$0xf]
        %v4187 = vld [vmem:[#allocation3 + $0x20] sm:$0x1]
        %v4188 = vld [vmem:[#allocation3 + $0x24] sm:$0xe]
        %v4189 = vld [vmem:[#allocation3 + $0x28] sm:$0xf]
        %v4190 = vld [vmem:[#allocation3 + $0x2c] sm:$0x1]
        %v4191 = vld [vmem:[#allocation3 + $0x30] sm:$0xe]
        %v4192 = vld [vmem:[#allocation3 + $0x34] sm:$0xf]
        %v4193 = vld [vmem:[#allocation3 + $0x38] sm:$0x1]
        %v4194 = vld [vmem:[#allocation3 + $0x3c] sm:$0xe]
        %v4195 = vld [vmem:[#allocation3 + $0x40] sm:$0xf]
        %v4196 = vld [vmem:[#allocation3 + $0x44] sm:$0x1]
        %v4197 = vld [vmem:[#allocation3 + $0x48] sm:$0xe]
        %v4198 = vld [vmem:[#allocation3 + $0x4c] sm:$0xf]
        %v4199 = vld [vmem:[#allocation3 + $0x50] sm:$0x1]
        %v4200 = vld [vmem:[#allocation3 + $0x54] sm:$0xe]
        %v4201 = vld [vmem:[#allocation3 + $0x58] sm:$0xf]
        %v4202 = vld [vmem:[#allocation3 + $0x5c] sm:$0x1]
        %v4227 = vrot.slane %v4179, 5
        %v4228 = vrot.slane %v4227, 4
        %v4229 = vrot.slane %v4180, 5
        %v4230 = vsel %vm675, %v4228, %v4229
        %v4231 = vrot.slane %v4229, 4
        %v4232 = vrot.slane %v4181, 5
        %v4233 = vsel %vm675, %v4231, %v4232
        %v4234 = vrot.slane %v4182, 5
        %v4235 = vrot.slane %v4234, 4
        %v4236 = vrot.slane %v4183, 5
        %v4237 = vsel %vm675, %v4235, %v4236
        %v4238 = vrot.slane %v4236, 4
        %v4239 = vrot.slane %v4184, 5
        %v4240 = vsel %vm675, %v4238, %v4239
        %v4241 = vrot.slane %v4185, 5
        %v4242 = vrot.slane %v4241, 4
        %v4243 = vrot.slane %v4186, 5
        %v4244 = vsel %vm675, %v4242, %v4243
        %v4245 = vrot.slane %v4243, 4
        %v4246 = vrot.slane %v4187, 5
        %v4247 = vsel %vm675, %v4245, %v4246
        %v4248 = vrot.slane %v4188, 5
        %v4249 = vrot.slane %v4248, 4
        %v4250 = vrot.slane %v4189, 5
        %v4251 = vsel %vm675, %v4249, %v4250
        %v4252 = vrot.slane %v4250, 4
        %v4253 = vrot.slane %v4190, 5
        %v4254 = vsel %vm675, %v4252, %v4253
        %v4255 = vrot.slane %v4191, 5
        %v4256 = vrot.slane %v4255, 4
        %v4257 = vrot.slane %v4192, 5
        %v4258 = vsel %vm675, %v4256, %v4257
        %v4259 = vrot.slane %v4257, 4
        %v4260 = vrot.slane %v4193, 5
        %v4261 = vsel %vm675, %v4259, %v4260
        %v4262 = vrot.slane %v4194, 5
        %v4263 = vrot.slane %v4262, 4
        %v4264 = vrot.slane %v4195, 5
        %v4265 = vsel %vm675, %v4263, %v4264
        %v4266 = vrot.slane %v4264, 4
        %v4267 = vrot.slane %v4196, 5
        %v4268 = vsel %vm675, %v4266, %v4267
        %v4269 = vrot.slane %v4197, 5
        %v4270 = vrot.slane %v4269, 4
        %v4271 = vrot.slane %v4198, 5
        %v4272 = vsel %vm675, %v4270, %v4271
        %v4273 = vrot.slane %v4271, 4
        %v4274 = vrot.slane %v4199, 5
        %v4275 = vsel %vm675, %v4273, %v4274
        %v4276 = vrot.slane %v4200, 5
        %v4277 = vrot.slane %v4276, 4
        %v4278 = vrot.slane %v4201, 5
        %v4279 = vsel %vm675, %v4277, %v4278
        %v4280 = vrot.slane %v4278, 4
        %v4281 = vrot.slane %v4202, 5
        %v4282 = vsel %vm675, %v4280, %v4281
        %4299 = vst [vmem:[#allocation2 + $0x8] sm:$0xf] %v4230
        %4300 = vst [vmem:[#allocation2 + $0x2c] sm:$0xf] %v4233
        %4301 = vst [vmem:[#allocation2 + $0x50] sm:$0xf] %v4237
        %4302 = vst [vmem:[#allocation2 + $0x74] sm:$0xf] %v4240
        %4303 = vst [vmem:[#allocation2 + $0x98] sm:$0xf] %v4244
        %4304 = vst [vmem:[#allocation2 + $0xbc] sm:$0xf] %v4247
        %4305 = vst [vmem:[#allocation2 + $0xe0] sm:$0xf] %v4251
        %4306 = vst [vmem:[#allocation2 + $0x104] sm:$0xf] %v4254
        %4307 = vst [vmem:[#allocation2 + $0x128] sm:$0xf] %v4258
        %4308 = vst [vmem:[#allocation2 + $0x14c] sm:$0xf] %v4261
        %4309 = vst [vmem:[#allocation2 + $0x170] sm:$0xf] %v4265
        %4310 = vst [vmem:[#allocation2 + $0x194] sm:$0xf] %v4268
        %4311 = vst [vmem:[#allocation2 + $0x1b8] sm:$0xf] %v4272
        %4312 = vst [vmem:[#allocation2 + $0x1dc] sm:$0xf] %v4275
        %4313 = vst [vmem:[#allocation2 + $0x200] sm:$0xf] %v4279
        %4314 = vst [vmem:[#allocation2 + $0x224] sm:$0xf] %v4282
        %s4315 = scalar_lea.vmem [#allocation3], 12
        %v4316 = vld [vmem:[%s4315] sm:$0xf]
        %v4317 = vld [vmem:[%s4315 + $0x4] sm:$0xf]
        %v4318 = vld [vmem:[%s4315 + $0xc] sm:$0xf]
        %v4319 = vld [vmem:[%s4315 + $0x10] sm:$0xf]
        %v4320 = vld [vmem:[%s4315 + $0x18] sm:$0xf]
        %v4321 = vld [vmem:[%s4315 + $0x1c] sm:$0xf]
        %v4322 = vld [vmem:[%s4315 + $0x24] sm:$0xf]
        %v4323 = vld [vmem:[%s4315 + $0x28] sm:$0xf]
        %v4324 = vld [vmem:[%s4315 + $0x30] sm:$0xf]
        %v4325 = vld [vmem:[%s4315 + $0x34] sm:$0xf]
        %v4326 = vld [vmem:[%s4315 + $0x3c] sm:$0xf]
        %v4327 = vld [vmem:[%s4315 + $0x40] sm:$0xf]
        %v4328 = vld [vmem:[%s4315 + $0x48] sm:$0xf]
        %v4329 = vld [vmem:[%s4315 + $0x4c] sm:$0xf]
        %v4330 = vld [vmem:[%s4315 + $0x54] sm:$0xf]
        %v4331 = vld [vmem:[%s4315 + $0x58] sm:$0xf]
        %4332 = vst [vmem:[#allocation2 + $0xc] sm:$0xf] %v4316
        %4333 = vst [vmem:[#allocation2 + $0x30] sm:$0xf] %v4317
        %4334 = vst [vmem:[#allocation2 + $0x54] sm:$0xf] %v4318
        %4335 = vst [vmem:[#allocation2 + $0x78] sm:$0xf] %v4319
        %4336 = vst [vmem:[#allocation2 + $0x9c] sm:$0xf] %v4320
        %4337 = vst [vmem:[#allocation2 + $0xc0] sm:$0xf] %v4321
        %4338 = vst [vmem:[#allocation2 + $0xe4] sm:$0xf] %v4322
        %4339 = vst [vmem:[#allocation2 + $0x108] sm:$0xf] %v4323
        %4340 = vst [vmem:[#allocation2 + $0x12c] sm:$0xf] %v4324
        %4341 = vst [vmem:[#allocation2 + $0x150] sm:$0xf] %v4325
        %4342 = vst [vmem:[#allocation2 + $0x174] sm:$0xf] %v4326
        %4343 = vst [vmem:[#allocation2 + $0x198] sm:$0xf] %v4327
        %4344 = vst [vmem:[#allocation2 + $0x1bc] sm:$0xf] %v4328
        %4345 = vst [vmem:[#allocation2 + $0x1e0] sm:$0xf] %v4329
        %4346 = vst [vmem:[#allocation2 + $0x204] sm:$0xf] %v4330
        %4347 = vst [vmem:[#allocation2 + $0x228] sm:$0xf] %v4331
        %v4348 = vld [vmem:[%s4315] sm:$0xf]
        %v4349 = vld [vmem:[%s4315 + $0x4] sm:$0xf]
        %v4350 = vld [vmem:[%s4315 + $0x8] sm:$0x1]
        %v4351 = vld [vmem:[%s4315 + $0xc] sm:$0xf]
        %v4352 = vld [vmem:[%s4315 + $0x10] sm:$0xf]
        %v4353 = vld [vmem:[%s4315 + $0x14] sm:$0x1]
        %v4354 = vld [vmem:[%s4315 + $0x18] sm:$0xf]
        %v4355 = vld [vmem:[%s4315 + $0x1c] sm:$0xf]
        %v4356 = vld [vmem:[%s4315 + $0x20] sm:$0x1]
        %v4357 = vld [vmem:[%s4315 + $0x24] sm:$0xf]
        %v4358 = vld [vmem:[%s4315 + $0x28] sm:$0xf]
        %v4359 = vld [vmem:[%s4315 + $0x2c] sm:$0x1]
        %v4360 = vld [vmem:[%s4315 + $0x30] sm:$0xf]
        %v4361 = vld [vmem:[%s4315 + $0x34] sm:$0xf]
        %v4362 = vld [vmem:[%s4315 + $0x38] sm:$0x1]
        %v4363 = vld [vmem:[%s4315 + $0x3c] sm:$0xf]
        %v4364 = vld [vmem:[%s4315 + $0x40] sm:$0xf]
        %v4365 = vld [vmem:[%s4315 + $0x44] sm:$0x1]
        %v4366 = vld [vmem:[%s4315 + $0x48] sm:$0xf]
        %v4367 = vld [vmem:[%s4315 + $0x4c] sm:$0xf]
        %v4368 = vld [vmem:[%s4315 + $0x50] sm:$0x1]
        %v4369 = vld [vmem:[%s4315 + $0x54] sm:$0xf]
        %v4370 = vld [vmem:[%s4315 + $0x58] sm:$0xf]
        %v4371 = vld [vmem:[%s4315 + $0x5c] sm:$0x1]
        %v4373 = vshrl.u32 %v4348, 16
        %v4375 = vrot.slane %v4373, 4
        %v4376 = vshll.u32 %v4348, 16
        %v4378 = vrot.slane %v4376, 5
        %v4379 = vor.u32 %v4375, %v4378
        %v4380 = vrot.slane %v4379, 4
        %v4382 = vshll.u32 %v4349, 16
        %v4384 = vrot.slane %v4382, 5
        %v4385 = vsel %vm332, %v4380, %v4384
        %v4386 = vshrl.u32 %v4349, 16
        %v4388 = vrot.slane %v4386, 4
        %v4389 = vor.u32 %v4388, %v4384
        %v4390 = vrot.slane %v4389, 4
        %v4392 = vshll.u32 %v4350, 16
        %v4394 = vrot.slane %v4392, 5
        %v4395 = vsel %vm332, %v4390, %v4394
        %v4397 = vshrl.u32 %v4351, 16
        %v4399 = vrot.slane %v4397, 4
        %v4400 = vshll.u32 %v4351, 16
        %v4402 = vrot.slane %v4400, 5
        %v4403 = vor.u32 %v4399, %v4402
        %v4404 = vrot.slane %v4403, 4
        %v4406 = vshll.u32 %v4352, 16
        %v4408 = vrot.slane %v4406, 5
        %v4409 = vsel %vm332, %v4404, %v4408
        %v4410 = vshrl.u32 %v4352, 16
        %v4412 = vrot.slane %v4410, 4
        %v4413 = vor.u32 %v4412, %v4408
        %v4414 = vrot.slane %v4413, 4
        %v4416 = vshll.u32 %v4353, 16
        %v4418 = vrot.slane %v4416, 5
        %v4419 = vsel %vm332, %v4414, %v4418
        %v4421 = vshrl.u32 %v4354, 16
        %v4423 = vrot.slane %v4421, 4
        %v4424 = vshll.u32 %v4354, 16
        %v4426 = vrot.slane %v4424, 5
        %v4427 = vor.u32 %v4423, %v4426
        %v4428 = vrot.slane %v4427, 4
        %v4430 = vshll.u32 %v4355, 16
        %v4432 = vrot.slane %v4430, 5
        %v4433 = vsel %vm332, %v4428, %v4432
        %v4434 = vshrl.u32 %v4355, 16
        %v4436 = vrot.slane %v4434, 4
        %v4437 = vor.u32 %v4436, %v4432
        %v4438 = vrot.slane %v4437, 4
        %v4440 = vshll.u32 %v4356, 16
        %v4442 = vrot.slane %v4440, 5
        %v4443 = vsel %vm332, %v4438, %v4442
        %v4445 = vshrl.u32 %v4357, 16
        %v4447 = vrot.slane %v4445, 4
        %v4448 = vshll.u32 %v4357, 16
        %v4450 = vrot.slane %v4448, 5
        %v4451 = vor.u32 %v4447, %v4450
        %v4452 = vrot.slane %v4451, 4
        %v4454 = vshll.u32 %v4358, 16
        %v4456 = vrot.slane %v4454, 5
        %v4457 = vsel %vm332, %v4452, %v4456
        %v4458 = vshrl.u32 %v4358, 16
        %v4460 = vrot.slane %v4458, 4
        %v4461 = vor.u32 %v4460, %v4456
        %v4462 = vrot.slane %v4461, 4
        %v4464 = vshll.u32 %v4359, 16
        %v4466 = vrot.slane %v4464, 5
        %v4467 = vsel %vm332, %v4462, %v4466
        %v4469 = vshrl.u32 %v4360, 16
        %v4471 = vrot.slane %v4469, 4
        %v4472 = vshll.u32 %v4360, 16
        %v4474 = vrot.slane %v4472, 5
        %v4475 = vor.u32 %v4471, %v4474
        %v4476 = vrot.slane %v4475, 4
        %v4478 = vshll.u32 %v4361, 16
        %v4480 = vrot.slane %v4478, 5
        %v4481 = vsel %vm332, %v4476, %v4480
        %v4482 = vshrl.u32 %v4361, 16
        %v4484 = vrot.slane %v4482, 4
        %v4485 = vor.u32 %v4484, %v4480
        %v4486 = vrot.slane %v4485, 4
        %v4488 = vshll.u32 %v4362, 16
        %v4490 = vrot.slane %v4488, 5
        %v4491 = vsel %vm332, %v4486, %v4490
        %v4493 = vshrl.u32 %v4363, 16
        %v4495 = vrot.slane %v4493, 4
        %v4496 = vshll.u32 %v4363, 16
        %v4498 = vrot.slane %v4496, 5
        %v4499 = vor.u32 %v4495, %v4498
        %v4500 = vrot.slane %v4499, 4
        %v4502 = vshll.u32 %v4364, 16
        %v4504 = vrot.slane %v4502, 5
        %v4505 = vsel %vm332, %v4500, %v4504
        %v4506 = vshrl.u32 %v4364, 16
        %v4508 = vrot.slane %v4506, 4
        %v4509 = vor.u32 %v4508, %v4504
        %v4510 = vrot.slane %v4509, 4
        %v4512 = vshll.u32 %v4365, 16
        %v4514 = vrot.slane %v4512, 5
        %v4515 = vsel %vm332, %v4510, %v4514
        %v4517 = vshrl.u32 %v4366, 16
        %v4519 = vrot.slane %v4517, 4
        %v4520 = vshll.u32 %v4366, 16
        %v4522 = vrot.slane %v4520, 5
        %v4523 = vor.u32 %v4519, %v4522
        %v4524 = vrot.slane %v4523, 4
        %v4526 = vshll.u32 %v4367, 16
        %v4528 = vrot.slane %v4526, 5
        %v4529 = vsel %vm332, %v4524, %v4528
        %v4530 = vshrl.u32 %v4367, 16
        %v4532 = vrot.slane %v4530, 4
        %v4533 = vor.u32 %v4532, %v4528
        %v4534 = vrot.slane %v4533, 4
        %v4536 = vshll.u32 %v4368, 16
        %v4538 = vrot.slane %v4536, 5
        %v4539 = vsel %vm332, %v4534, %v4538
        %v4541 = vshrl.u32 %v4369, 16
        %v4543 = vrot.slane %v4541, 4
        %v4544 = vshll.u32 %v4369, 16
        %v4546 = vrot.slane %v4544, 5
        %v4547 = vor.u32 %v4543, %v4546
        %v4548 = vrot.slane %v4547, 4
        %v4550 = vshll.u32 %v4370, 16
        %v4552 = vrot.slane %v4550, 5
        %v4553 = vsel %vm332, %v4548, %v4552
        %v4554 = vshrl.u32 %v4370, 16
        %v4556 = vrot.slane %v4554, 4
        %v4557 = vor.u32 %v4556, %v4552
        %v4558 = vrot.slane %v4557, 4
        %v4560 = vshll.u32 %v4371, 16
        %v4562 = vrot.slane %v4560, 5
        %v4563 = vsel %vm332, %v4558, %v4562
        %4580 = vst [vmem:[#allocation2 + $0x10] sm:$0xf] %v4385
        %4581 = vst [vmem:[#allocation2 + $0x34] sm:$0xf] %v4395
        %4582 = vst [vmem:[#allocation2 + $0x58] sm:$0xf] %v4409
        %4583 = vst [vmem:[#allocation2 + $0x7c] sm:$0xf] %v4419
        %4584 = vst [vmem:[#allocation2 + $0xa0] sm:$0xf] %v4433
        %4585 = vst [vmem:[#allocation2 + $0xc4] sm:$0xf] %v4443
        %4586 = vst [vmem:[#allocation2 + $0xe8] sm:$0xf] %v4457
        %4587 = vst [vmem:[#allocation2 + $0x10c] sm:$0xf] %v4467
        %4588 = vst [vmem:[#allocation2 + $0x130] sm:$0xf] %v4481
        %4589 = vst [vmem:[#allocation2 + $0x154] sm:$0xf] %v4491
        %4590 = vst [vmem:[#allocation2 + $0x178] sm:$0xf] %v4505
        %4591 = vst [vmem:[#allocation2 + $0x19c] sm:$0xf] %v4515
        %4592 = vst [vmem:[#allocation2 + $0x1c0] sm:$0xf] %v4529
        %4593 = vst [vmem:[#allocation2 + $0x1e4] sm:$0xf] %v4539
        %4594 = vst [vmem:[#allocation2 + $0x208] sm:$0xf] %v4553
        %4595 = vst [vmem:[#allocation2 + $0x22c] sm:$0xf] %v4563
        %v4596 = vld [vmem:[%s4315] sm:$0xe]
        %v4597 = vld [vmem:[%s4315 + $0x4] sm:$0xf]
        %v4598 = vld [vmem:[%s4315 + $0x8] sm:$0x1]
        %v4599 = vld [vmem:[%s4315 + $0xc] sm:$0xe]
        %v4600 = vld [vmem:[%s4315 + $0x10] sm:$0xf]
        %v4601 = vld [vmem:[%s4315 + $0x14] sm:$0x1]
        %v4602 = vld [vmem:[%s4315 + $0x18] sm:$0xe]
        %v4603 = vld [vmem:[%s4315 + $0x1c] sm:$0xf]
        %v4604 = vld [vmem:[%s4315 + $0x20] sm:$0x1]
        %v4605 = vld [vmem:[%s4315 + $0x24] sm:$0xe]
        %v4606 = vld [vmem:[%s4315 + $0x28] sm:$0xf]
        %v4607 = vld [vmem:[%s4315 + $0x2c] sm:$0x1]
        %v4608 = vld [vmem:[%s4315 + $0x30] sm:$0xe]
        %v4609 = vld [vmem:[%s4315 + $0x34] sm:$0xf]
        %v4610 = vld [vmem:[%s4315 + $0x38] sm:$0x1]
        %v4611 = vld [vmem:[%s4315 + $0x3c] sm:$0xe]
        %v4612 = vld [vmem:[%s4315 + $0x40] sm:$0xf]
        %v4613 = vld [vmem:[%s4315 + $0x44] sm:$0x1]
        %v4614 = vld [vmem:[%s4315 + $0x48] sm:$0xe]
        %v4615 = vld [vmem:[%s4315 + $0x4c] sm:$0xf]
        %v4616 = vld [vmem:[%s4315 + $0x50] sm:$0x1]
        %v4617 = vld [vmem:[%s4315 + $0x54] sm:$0xe]
        %v4618 = vld [vmem:[%s4315 + $0x58] sm:$0xf]
        %v4619 = vld [vmem:[%s4315 + $0x5c] sm:$0x1]
        %v4644 = vrot.slane %v4596, 5
        %v4645 = vrot.slane %v4644, 4
        %v4646 = vrot.slane %v4597, 5
        %v4647 = vsel %vm675, %v4645, %v4646
        %v4648 = vrot.slane %v4646, 4
        %v4649 = vrot.slane %v4598, 5
        %v4650 = vsel %vm675, %v4648, %v4649
        %v4651 = vrot.slane %v4599, 5
        %v4652 = vrot.slane %v4651, 4
        %v4653 = vrot.slane %v4600, 5
        %v4654 = vsel %vm675, %v4652, %v4653
        %v4655 = vrot.slane %v4653, 4
        %v4656 = vrot.slane %v4601, 5
        %v4657 = vsel %vm675, %v4655, %v4656
        %v4658 = vrot.slane %v4602, 5
        %v4659 = vrot.slane %v4658, 4
        %v4660 = vrot.slane %v4603, 5
        %v4661 = vsel %vm675, %v4659, %v4660
        %v4662 = vrot.slane %v4660, 4
        %v4663 = vrot.slane %v4604, 5
        %v4664 = vsel %vm675, %v4662, %v4663
        %v4665 = vrot.slane %v4605, 5
        %v4666 = vrot.slane %v4665, 4
        %v4667 = vrot.slane %v4606, 5
        %v4668 = vsel %vm675, %v4666, %v4667
        %v4669 = vrot.slane %v4667, 4
        %v4670 = vrot.slane %v4607, 5
        %v4671 = vsel %vm675, %v4669, %v4670
        %v4672 = vrot.slane %v4608, 5
        %v4673 = vrot.slane %v4672, 4
        %v4674 = vrot.slane %v4609, 5
        %v4675 = vsel %vm675, %v4673, %v4674
        %v4676 = vrot.slane %v4674, 4
        %v4677 = vrot.slane %v4610, 5
        %v4678 = vsel %vm675, %v4676, %v4677
        %v4679 = vrot.slane %v4611, 5
        %v4680 = vrot.slane %v4679, 4
        %v4681 = vrot.slane %v4612, 5
        %v4682 = vsel %vm675, %v4680, %v4681
        %v4683 = vrot.slane %v4681, 4
        %v4684 = vrot.slane %v4613, 5
        %v4685 = vsel %vm675, %v4683, %v4684
        %v4686 = vrot.slane %v4614, 5
        %v4687 = vrot.slane %v4686, 4
        %v4688 = vrot.slane %v4615, 5
        %v4689 = vsel %vm675, %v4687, %v4688
        %v4690 = vrot.slane %v4688, 4
        %v4691 = vrot.slane %v4616, 5
        %v4692 = vsel %vm675, %v4690, %v4691
        %v4693 = vrot.slane %v4617, 5
        %v4694 = vrot.slane %v4693, 4
        %v4695 = vrot.slane %v4618, 5
        %v4696 = vsel %vm675, %v4694, %v4695
        %v4697 = vrot.slane %v4695, 4
        %v4698 = vrot.slane %v4619, 5
        %v4699 = vsel %vm675, %v4697, %v4698
        %4716 = vst [vmem:[#allocation2 + $0x14] sm:$0xf] %v4647
        %4717 = vst [vmem:[#allocation2 + $0x38] sm:$0xf] %v4650
        %4718 = vst [vmem:[#allocation2 + $0x5c] sm:$0xf] %v4654
        %4719 = vst [vmem:[#allocation2 + $0x80] sm:$0xf] %v4657
        %4720 = vst [vmem:[#allocation2 + $0xa4] sm:$0xf] %v4661
        %4721 = vst [vmem:[#allocation2 + $0xc8] sm:$0xf] %v4664
        %4722 = vst [vmem:[#allocation2 + $0xec] sm:$0xf] %v4668
        %4723 = vst [vmem:[#allocation2 + $0x110] sm:$0xf] %v4671
        %4724 = vst [vmem:[#allocation2 + $0x134] sm:$0xf] %v4675
        %4725 = vst [vmem:[#allocation2 + $0x158] sm:$0xf] %v4678
        %4726 = vst [vmem:[#allocation2 + $0x17c] sm:$0xf] %v4682
        %4727 = vst [vmem:[#allocation2 + $0x1a0] sm:$0xf] %v4685
        %4728 = vst [vmem:[#allocation2 + $0x1c4] sm:$0xf] %v4689
        %4729 = vst [vmem:[#allocation2 + $0x1e8] sm:$0xf] %v4692
        %4730 = vst [vmem:[#allocation2 + $0x20c] sm:$0xf] %v4696
        %4731 = vst [vmem:[#allocation2 + $0x230] sm:$0xf] %v4699
        %s4732 = scalar_lea.vmem [#allocation3], 24
        %v4733 = vld [vmem:[%s4732] sm:$0xf]
        %v4734 = vld [vmem:[%s4732 + $0x4] sm:$0xf]
        %v4735 = vld [vmem:[%s4732 + $0xc] sm:$0xf]
        %v4736 = vld [vmem:[%s4732 + $0x10] sm:$0xf]
        %v4737 = vld [vmem:[%s4732 + $0x18] sm:$0xf]
        %v4738 = vld [vmem:[%s4732 + $0x1c] sm:$0xf]
        %v4739 = vld [vmem:[%s4732 + $0x24] sm:$0xf]
        %v4740 = vld [vmem:[%s4732 + $0x28] sm:$0xf]
        %v4741 = vld [vmem:[%s4732 + $0x30] sm:$0xf]
        %v4742 = vld [vmem:[%s4732 + $0x34] sm:$0xf]
        %v4743 = vld [vmem:[%s4732 + $0x3c] sm:$0xf]
        %v4744 = vld [vmem:[%s4732 + $0x40] sm:$0xf]
        %v4745 = vld [vmem:[%s4732 + $0x48] sm:$0xf]
        %v4746 = vld [vmem:[%s4732 + $0x4c] sm:$0xf]
        %v4747 = vld [vmem:[%s4732 + $0x54] sm:$0xf]
        %v4748 = vld [vmem:[%s4732 + $0x58] sm:$0xf]
        %4749 = vst [vmem:[#allocation2 + $0x18] sm:$0xf] %v4733
        %4750 = vst [vmem:[#allocation2 + $0x3c] sm:$0xf] %v4734
        %4751 = vst [vmem:[#allocation2 + $0x60] sm:$0xf] %v4735
        %4752 = vst [vmem:[#allocation2 + $0x84] sm:$0xf] %v4736
        %4753 = vst [vmem:[#allocation2 + $0xa8] sm:$0xf] %v4737
        %4754 = vst [vmem:[#allocation2 + $0xcc] sm:$0xf] %v4738
        %4755 = vst [vmem:[#allocation2 + $0xf0] sm:$0xf] %v4739
        %4756 = vst [vmem:[#allocation2 + $0x114] sm:$0xf] %v4740
        %4757 = vst [vmem:[#allocation2 + $0x138] sm:$0xf] %v4741
        %4758 = vst [vmem:[#allocation2 + $0x15c] sm:$0xf] %v4742
        %4759 = vst [vmem:[#allocation2 + $0x180] sm:$0xf] %v4743
        %4760 = vst [vmem:[#allocation2 + $0x1a4] sm:$0xf] %v4744
        %4761 = vst [vmem:[#allocation2 + $0x1c8] sm:$0xf] %v4745
        %4762 = vst [vmem:[#allocation2 + $0x1ec] sm:$0xf] %v4746
        %4763 = vst [vmem:[#allocation2 + $0x210] sm:$0xf] %v4747
        %4764 = vst [vmem:[#allocation2 + $0x234] sm:$0xf] %v4748
        %v4765 = vld [vmem:[%s4732] sm:$0xf]
        %v4766 = vld [vmem:[%s4732 + $0x4] sm:$0xf]
        %v4767 = vld [vmem:[%s4732 + $0x8] sm:$0x1]
        %v4768 = vld [vmem:[%s4732 + $0xc] sm:$0xf]
        %v4769 = vld [vmem:[%s4732 + $0x10] sm:$0xf]
        %v4770 = vld [vmem:[%s4732 + $0x14] sm:$0x1]
        %v4771 = vld [vmem:[%s4732 + $0x18] sm:$0xf]
        %v4772 = vld [vmem:[%s4732 + $0x1c] sm:$0xf]
        %v4773 = vld [vmem:[%s4732 + $0x20] sm:$0x1]
        %v4774 = vld [vmem:[%s4732 + $0x24] sm:$0xf]
        %v4775 = vld [vmem:[%s4732 + $0x28] sm:$0xf]
        %v4776 = vld [vmem:[%s4732 + $0x2c] sm:$0x1]
        %v4777 = vld [vmem:[%s4732 + $0x30] sm:$0xf]
        %v4778 = vld [vmem:[%s4732 + $0x34] sm:$0xf]
        %v4779 = vld [vmem:[%s4732 + $0x38] sm:$0x1]
        %v4780 = vld [vmem:[%s4732 + $0x3c] sm:$0xf]
        %v4781 = vld [vmem:[%s4732 + $0x40] sm:$0xf]
        %v4782 = vld [vmem:[%s4732 + $0x44] sm:$0x1]
        %v4783 = vld [vmem:[%s4732 + $0x48] sm:$0xf]
        %v4784 = vld [vmem:[%s4732 + $0x4c] sm:$0xf]
        %v4785 = vld [vmem:[%s4732 + $0x50] sm:$0x1]
        %v4786 = vld [vmem:[%s4732 + $0x54] sm:$0xf]
        %v4787 = vld [vmem:[%s4732 + $0x58] sm:$0xf]
        %v4788 = vld [vmem:[%s4732 + $0x5c] sm:$0x1]
        %v4790 = vshrl.u32 %v4765, 16
        %v4792 = vrot.slane %v4790, 4
        %v4793 = vshll.u32 %v4765, 16
        %v4795 = vrot.slane %v4793, 5
        %v4796 = vor.u32 %v4792, %v4795
        %v4797 = vrot.slane %v4796, 4
        %v4799 = vshll.u32 %v4766, 16
        %v4801 = vrot.slane %v4799, 5
        %v4802 = vsel %vm332, %v4797, %v4801
        %v4803 = vshrl.u32 %v4766, 16
        %v4805 = vrot.slane %v4803, 4
        %v4806 = vor.u32 %v4805, %v4801
        %v4807 = vrot.slane %v4806, 4
        %v4809 = vshll.u32 %v4767, 16
        %v4811 = vrot.slane %v4809, 5
        %v4812 = vsel %vm332, %v4807, %v4811
        %v4814 = vshrl.u32 %v4768, 16
        %v4816 = vrot.slane %v4814, 4
        %v4817 = vshll.u32 %v4768, 16
        %v4819 = vrot.slane %v4817, 5
        %v4820 = vor.u32 %v4816, %v4819
        %v4821 = vrot.slane %v4820, 4
        %v4823 = vshll.u32 %v4769, 16
        %v4825 = vrot.slane %v4823, 5
        %v4826 = vsel %vm332, %v4821, %v4825
        %v4827 = vshrl.u32 %v4769, 16
        %v4829 = vrot.slane %v4827, 4
        %v4830 = vor.u32 %v4829, %v4825
        %v4831 = vrot.slane %v4830, 4
        %v4833 = vshll.u32 %v4770, 16
        %v4835 = vrot.slane %v4833, 5
        %v4836 = vsel %vm332, %v4831, %v4835
        %v4838 = vshrl.u32 %v4771, 16
        %v4840 = vrot.slane %v4838, 4
        %v4841 = vshll.u32 %v4771, 16
        %v4843 = vrot.slane %v4841, 5
        %v4844 = vor.u32 %v4840, %v4843
        %v4845 = vrot.slane %v4844, 4
        %v4847 = vshll.u32 %v4772, 16
        %v4849 = vrot.slane %v4847, 5
        %v4850 = vsel %vm332, %v4845, %v4849
        %v4851 = vshrl.u32 %v4772, 16
        %v4853 = vrot.slane %v4851, 4
        %v4854 = vor.u32 %v4853, %v4849
        %v4855 = vrot.slane %v4854, 4
        %v4857 = vshll.u32 %v4773, 16
        %v4859 = vrot.slane %v4857, 5
        %v4860 = vsel %vm332, %v4855, %v4859
        %v4862 = vshrl.u32 %v4774, 16
        %v4864 = vrot.slane %v4862, 4
        %v4865 = vshll.u32 %v4774, 16
        %v4867 = vrot.slane %v4865, 5
        %v4868 = vor.u32 %v4864, %v4867
        %v4869 = vrot.slane %v4868, 4
        %v4871 = vshll.u32 %v4775, 16
        %v4873 = vrot.slane %v4871, 5
        %v4874 = vsel %vm332, %v4869, %v4873
        %v4875 = vshrl.u32 %v4775, 16
        %v4877 = vrot.slane %v4875, 4
        %v4878 = vor.u32 %v4877, %v4873
        %v4879 = vrot.slane %v4878, 4
        %v4881 = vshll.u32 %v4776, 16
        %v4883 = vrot.slane %v4881, 5
        %v4884 = vsel %vm332, %v4879, %v4883
        %v4886 = vshrl.u32 %v4777, 16
        %v4888 = vrot.slane %v4886, 4
        %v4889 = vshll.u32 %v4777, 16
        %v4891 = vrot.slane %v4889, 5
        %v4892 = vor.u32 %v4888, %v4891
        %v4893 = vrot.slane %v4892, 4
        %v4895 = vshll.u32 %v4778, 16
        %v4897 = vrot.slane %v4895, 5
        %v4898 = vsel %vm332, %v4893, %v4897
        %v4899 = vshrl.u32 %v4778, 16
        %v4901 = vrot.slane %v4899, 4
        %v4902 = vor.u32 %v4901, %v4897
        %v4903 = vrot.slane %v4902, 4
        %v4905 = vshll.u32 %v4779, 16
        %v4907 = vrot.slane %v4905, 5
        %v4908 = vsel %vm332, %v4903, %v4907
        %v4910 = vshrl.u32 %v4780, 16
        %v4912 = vrot.slane %v4910, 4
        %v4913 = vshll.u32 %v4780, 16
        %v4915 = vrot.slane %v4913, 5
        %v4916 = vor.u32 %v4912, %v4915
        %v4917 = vrot.slane %v4916, 4
        %v4919 = vshll.u32 %v4781, 16
        %v4921 = vrot.slane %v4919, 5
        %v4922 = vsel %vm332, %v4917, %v4921
        %v4923 = vshrl.u32 %v4781, 16
        %v4925 = vrot.slane %v4923, 4
        %v4926 = vor.u32 %v4925, %v4921
        %v4927 = vrot.slane %v4926, 4
        %v4929 = vshll.u32 %v4782, 16
        %v4931 = vrot.slane %v4929, 5
        %v4932 = vsel %vm332, %v4927, %v4931
        %v4934 = vshrl.u32 %v4783, 16
        %v4936 = vrot.slane %v4934, 4
        %v4937 = vshll.u32 %v4783, 16
        %v4939 = vrot.slane %v4937, 5
        %v4940 = vor.u32 %v4936, %v4939
        %v4941 = vrot.slane %v4940, 4
        %v4943 = vshll.u32 %v4784, 16
        %v4945 = vrot.slane %v4943, 5
        %v4946 = vsel %vm332, %v4941, %v4945
        %v4947 = vshrl.u32 %v4784, 16
        %v4949 = vrot.slane %v4947, 4
        %v4950 = vor.u32 %v4949, %v4945
        %v4951 = vrot.slane %v4950, 4
        %v4953 = vshll.u32 %v4785, 16
        %v4955 = vrot.slane %v4953, 5
        %v4956 = vsel %vm332, %v4951, %v4955
        %v4958 = vshrl.u32 %v4786, 16
        %v4960 = vrot.slane %v4958, 4
        %v4961 = vshll.u32 %v4786, 16
        %v4963 = vrot.slane %v4961, 5
        %v4964 = vor.u32 %v4960, %v4963
        %v4965 = vrot.slane %v4964, 4
        %v4967 = vshll.u32 %v4787, 16
        %v4969 = vrot.slane %v4967, 5
        %v4970 = vsel %vm332, %v4965, %v4969
        %v4971 = vshrl.u32 %v4787, 16
        %v4973 = vrot.slane %v4971, 4
        %v4974 = vor.u32 %v4973, %v4969
        %v4975 = vrot.slane %v4974, 4
        %v4977 = vshll.u32 %v4788, 16
        %v4979 = vrot.slane %v4977, 5
        %v4980 = vsel %vm332, %v4975, %v4979
        %4997 = vst [vmem:[#allocation2 + $0x1c] sm:$0xf] %v4802
        %4998 = vst [vmem:[#allocation2 + $0x40] sm:$0xf] %v4812
        %4999 = vst [vmem:[#allocation2 + $0x64] sm:$0xf] %v4826
        %5000 = vst [vmem:[#allocation2 + $0x88] sm:$0xf] %v4836
        %5001 = vst [vmem:[#allocation2 + $0xac] sm:$0xf] %v4850
        %5002 = vst [vmem:[#allocation2 + $0xd0] sm:$0xf] %v4860
        %5003 = vst [vmem:[#allocation2 + $0xf4] sm:$0xf] %v4874
        %5004 = vst [vmem:[#allocation2 + $0x118] sm:$0xf] %v4884
        %5005 = vst [vmem:[#allocation2 + $0x13c] sm:$0xf] %v4898
        %5006 = vst [vmem:[#allocation2 + $0x160] sm:$0xf] %v4908
        %5007 = vst [vmem:[#allocation2 + $0x184] sm:$0xf] %v4922
        %5008 = vst [vmem:[#allocation2 + $0x1a8] sm:$0xf] %v4932
        %5009 = vst [vmem:[#allocation2 + $0x1cc] sm:$0xf] %v4946
        %5010 = vst [vmem:[#allocation2 + $0x1f0] sm:$0xf] %v4956
        %5011 = vst [vmem:[#allocation2 + $0x214] sm:$0xf] %v4970
        %5012 = vst [vmem:[#allocation2 + $0x238] sm:$0xf] %v4980
        %v5013 = vld [vmem:[%s4732] sm:$0xe]
        %v5014 = vld [vmem:[%s4732 + $0x4] sm:$0xf]
        %v5015 = vld [vmem:[%s4732 + $0x8] sm:$0x1]
        %v5016 = vld [vmem:[%s4732 + $0xc] sm:$0xe]
        %v5017 = vld [vmem:[%s4732 + $0x10] sm:$0xf]
        %v5018 = vld [vmem:[%s4732 + $0x14] sm:$0x1]
        %v5019 = vld [vmem:[%s4732 + $0x18] sm:$0xe]
        %v5020 = vld [vmem:[%s4732 + $0x1c] sm:$0xf]
        %v5021 = vld [vmem:[%s4732 + $0x20] sm:$0x1]
        %v5022 = vld [vmem:[%s4732 + $0x24] sm:$0xe]
        %v5023 = vld [vmem:[%s4732 + $0x28] sm:$0xf]
        %v5024 = vld [vmem:[%s4732 + $0x2c] sm:$0x1]
        %v5025 = vld [vmem:[%s4732 + $0x30] sm:$0xe]
        %v5026 = vld [vmem:[%s4732 + $0x34] sm:$0xf]
        %v5027 = vld [vmem:[%s4732 + $0x38] sm:$0x1]
        %v5028 = vld [vmem:[%s4732 + $0x3c] sm:$0xe]
        %v5029 = vld [vmem:[%s4732 + $0x40] sm:$0xf]
        %v5030 = vld [vmem:[%s4732 + $0x44] sm:$0x1]
        %v5031 = vld [vmem:[%s4732 + $0x48] sm:$0xe]
        %v5032 = vld [vmem:[%s4732 + $0x4c] sm:$0xf]
        %v5033 = vld [vmem:[%s4732 + $0x50] sm:$0x1]
        %v5034 = vld [vmem:[%s4732 + $0x54] sm:$0xe]
        %v5035 = vld [vmem:[%s4732 + $0x58] sm:$0xf]
        %v5036 = vld [vmem:[%s4732 + $0x5c] sm:$0x1]
        %v5061 = vrot.slane %v5013, 5
        %v5062 = vrot.slane %v5061, 4
        %v5063 = vrot.slane %v5014, 5
        %v5064 = vsel %vm675, %v5062, %v5063
        %v5065 = vrot.slane %v5063, 4
        %v5066 = vrot.slane %v5015, 5
        %v5067 = vsel %vm675, %v5065, %v5066
        %v5068 = vrot.slane %v5016, 5
        %v5069 = vrot.slane %v5068, 4
        %v5070 = vrot.slane %v5017, 5
        %v5071 = vsel %vm675, %v5069, %v5070
        %v5072 = vrot.slane %v5070, 4
        %v5073 = vrot.slane %v5018, 5
        %v5074 = vsel %vm675, %v5072, %v5073
        %v5075 = vrot.slane %v5019, 5
        %v5076 = vrot.slane %v5075, 4
        %v5077 = vrot.slane %v5020, 5
        %v5078 = vsel %vm675, %v5076, %v5077
        %v5079 = vrot.slane %v5077, 4
        %v5080 = vrot.slane %v5021, 5
        %v5081 = vsel %vm675, %v5079, %v5080
        %v5082 = vrot.slane %v5022, 5
        %v5083 = vrot.slane %v5082, 4
        %v5084 = vrot.slane %v5023, 5
        %v5085 = vsel %vm675, %v5083, %v5084
        %v5086 = vrot.slane %v5084, 4
        %v5087 = vrot.slane %v5024, 5
        %v5088 = vsel %vm675, %v5086, %v5087
        %v5089 = vrot.slane %v5025, 5
        %v5090 = vrot.slane %v5089, 4
        %v5091 = vrot.slane %v5026, 5
        %v5092 = vsel %vm675, %v5090, %v5091
        %v5093 = vrot.slane %v5091, 4
        %v5094 = vrot.slane %v5027, 5
        %v5095 = vsel %vm675, %v5093, %v5094
        %v5096 = vrot.slane %v5028, 5
        %v5097 = vrot.slane %v5096, 4
        %v5098 = vrot.slane %v5029, 5
        %v5099 = vsel %vm675, %v5097, %v5098
        %v5100 = vrot.slane %v5098, 4
        %v5101 = vrot.slane %v5030, 5
        %v5102 = vsel %vm675, %v5100, %v5101
        %v5103 = vrot.slane %v5031, 5
        %v5104 = vrot.slane %v5103, 4
        %v5105 = vrot.slane %v5032, 5
        %v5106 = vsel %vm675, %v5104, %v5105
        %v5107 = vrot.slane %v5105, 4
        %v5108 = vrot.slane %v5033, 5
        %v5109 = vsel %vm675, %v5107, %v5108
        %v5110 = vrot.slane %v5034, 5
        %v5111 = vrot.slane %v5110, 4
        %v5112 = vrot.slane %v5035, 5
        %v5113 = vsel %vm675, %v5111, %v5112
        %v5114 = vrot.slane %v5112, 4
        %v5115 = vrot.slane %v5036, 5
        %v5116 = vsel %vm675, %v5114, %v5115
        %5133 = vst [vmem:[#allocation2 + $0x20] sm:$0xf] %v5064
        %5134 = vst [vmem:[#allocation2 + $0x44] sm:$0xf] %v5067
        %5135 = vst [vmem:[#allocation2 + $0x68] sm:$0xf] %v5071
        %5136 = vst [vmem:[#allocation2 + $0x8c] sm:$0xf] %v5074
        %5137 = vst [vmem:[#allocation2 + $0xb0] sm:$0xf] %v5078
        %5138 = vst [vmem:[#allocation2 + $0xd4] sm:$0xf] %v5081
        %5139 = vst [vmem:[#allocation2 + $0xf8] sm:$0xf] %v5085
        %5140 = vst [vmem:[#allocation2 + $0x11c] sm:$0xf] %v5088
        %5141 = vst [vmem:[#allocation2 + $0x140] sm:$0xf] %v5092
        %5142 = vst [vmem:[#allocation2 + $0x164] sm:$0xf] %v5095
        %5143 = vst [vmem:[#allocation2 + $0x188] sm:$0xf] %v5099
        %5144 = vst [vmem:[#allocation2 + $0x1ac] sm:$0xf] %v5102
        %5145 = vst [vmem:[#allocation2 + $0x1d0] sm:$0xf] %v5106
        %5146 = vst [vmem:[#allocation2 + $0x1f4] sm:$0xf] %v5109
        %5147 = vst [vmem:[#allocation2 + $0x218] sm:$0xf] %v5113
        %5148 = vst [vmem:[#allocation2 + $0x23c] sm:$0xf] %v5116
        %v5149 = vld [vmem:[#allocation2] sm:$0xff]
        %v5150 = vld [vmem:[#allocation2 + $0x8] sm:$0xff]
        %v5151 = vld [vmem:[#allocation2 + $0x10] sm:$0xff]
        %v5152 = vld [vmem:[#allocation2 + $0x18] sm:$0xff]
        %v5153 = vld [vmem:[#allocation2 + $0x20] sm:$0xf]
        %v5154 = vld [vmem:[#allocation2 + $0x24] sm:$0xff]
        %v5155 = vld [vmem:[#allocation2 + $0x2c] sm:$0xff]
        %v5156 = vld [vmem:[#allocation2 + $0x34] sm:$0xff]
        %v5157 = vld [vmem:[#allocation2 + $0x3c] sm:$0xff]
        %v5158 = vld [vmem:[#allocation2 + $0x44] sm:$0xf]
        %v5159 = vld [vmem:[#allocation2 + $0x48] sm:$0xff]
        %v5160 = vld [vmem:[#allocation2 + $0x50] sm:$0xff]
        %v5161 = vld [vmem:[#allocation2 + $0x58] sm:$0xff]
        %v5162 = vld [vmem:[#allocation2 + $0x60] sm:$0xff]
        %v5163 = vld [vmem:[#allocation2 + $0x68] sm:$0xf]
        %v5164 = vld [vmem:[#allocation2 + $0x6c] sm:$0xff]
        %v5165 = vld [vmem:[#allocation2 + $0x74] sm:$0xff]
        %v5166 = vld [vmem:[#allocation2 + $0x7c] sm:$0xff]
        %v5167 = vld [vmem:[#allocation2 + $0x84] sm:$0xff]
        %v5168 = vld [vmem:[#allocation2 + $0x8c] sm:$0xf]
        %v5169 = vld [vmem:[#allocation2 + $0x90] sm:$0xff]
        %v5170 = vld [vmem:[#allocation2 + $0x98] sm:$0xff]
        %v5171 = vld [vmem:[#allocation2 + $0xa0] sm:$0xff]
        %v5172 = vld [vmem:[#allocation2 + $0xa8] sm:$0xff]
        %v5173 = vld [vmem:[#allocation2 + $0xb0] sm:$0xf]
        %v5174 = vld [vmem:[#allocation2 + $0xb4] sm:$0xff]
        %v5175 = vld [vmem:[#allocation2 + $0xbc] sm:$0xff]
        %v5176 = vld [vmem:[#allocation2 + $0xc4] sm:$0xff]
        %v5177 = vld [vmem:[#allocation2 + $0xcc] sm:$0xff]
        %v5178 = vld [vmem:[#allocation2 + $0xd4] sm:$0xf]
        %v5179 = vld [vmem:[#allocation2 + $0xd8] sm:$0xff]
        %v5180 = vld [vmem:[#allocation2 + $0xe0] sm:$0xff]
        %v5181 = vld [vmem:[#allocation2 + $0xe8] sm:$0xff]
        %v5182 = vld [vmem:[#allocation2 + $0xf0] sm:$0xff]
        %v5183 = vld [vmem:[#allocation2 + $0xf8] sm:$0xf]
        %v5184 = vld [vmem:[#allocation2 + $0xfc] sm:$0xff]
        %v5185 = vld [vmem:[#allocation2 + $0x104] sm:$0xff]
        %v5186 = vld [vmem:[#allocation2 + $0x10c] sm:$0xff]
        %v5187 = vld [vmem:[#allocation2 + $0x114] sm:$0xff]
        %v5188 = vld [vmem:[#allocation2 + $0x11c] sm:$0xf]
        %v5189 = vld [vmem:[#allocation2 + $0x120] sm:$0xff]
        %v5190 = vld [vmem:[#allocation2 + $0x128] sm:$0xff]
        %v5191 = vld [vmem:[#allocation2 + $0x130] sm:$0xff]
        %v5192 = vld [vmem:[#allocation2 + $0x138] sm:$0xff]
        %v5193 = vld [vmem:[#allocation2 + $0x140] sm:$0xf]
        %v5194 = vld [vmem:[#allocation2 + $0x144] sm:$0xff]
        %v5195 = vld [vmem:[#allocation2 + $0x14c] sm:$0xff]
        %v5196 = vld [vmem:[#allocation2 + $0x154] sm:$0xff]
        %v5197 = vld [vmem:[#allocation2 + $0x15c] sm:$0xff]
        %v5198 = vld [vmem:[#allocation2 + $0x164] sm:$0xf]
        %v5199 = vld [vmem:[#allocation2 + $0x168] sm:$0xff]
        %v5200 = vld [vmem:[#allocation2 + $0x170] sm:$0xff]
        %v5201 = vld [vmem:[#allocation2 + $0x178] sm:$0xff]
        %v5202 = vld [vmem:[#allocation2 + $0x180] sm:$0xff]
        %v5203 = vld [vmem:[#allocation2 + $0x188] sm:$0xf]
        %v5204 = vld [vmem:[#allocation2 + $0x18c] sm:$0xff]
        %v5205 = vld [vmem:[#allocation2 + $0x194] sm:$0xff]
        %v5206 = vld [vmem:[#allocation2 + $0x19c] sm:$0xff]
        %v5207 = vld [vmem:[#allocation2 + $0x1a4] sm:$0xff]
        %v5208 = vld [vmem:[#allocation2 + $0x1ac] sm:$0xf]
        %v5209 = vld [vmem:[#allocation2 + $0x1b0] sm:$0xff]
        %v5210 = vld [vmem:[#allocation2 + $0x1b8] sm:$0xff]
        %v5211 = vld [vmem:[#allocation2 + $0x1c0] sm:$0xff]
        %v5212 = vld [vmem:[#allocation2 + $0x1c8] sm:$0xff]
        %v5213 = vld [vmem:[#allocation2 + $0x1d0] sm:$0xf]
        %v5214 = vld [vmem:[#allocation2 + $0x1d4] sm:$0xff]
        %v5215 = vld [vmem:[#allocation2 + $0x1dc] sm:$0xff]
        %v5216 = vld [vmem:[#allocation2 + $0x1e4] sm:$0xff]
        %v5217 = vld [vmem:[#allocation2 + $0x1ec] sm:$0xff]
        %v5218 = vld [vmem:[#allocation2 + $0x1f4] sm:$0xf]
        %v5219 = vld [vmem:[#allocation2 + $0x1f8] sm:$0xff]
        %v5220 = vld [vmem:[#allocation2 + $0x200] sm:$0xff]
        %v5221 = vld [vmem:[#allocation2 + $0x208] sm:$0xff]
        %v5222 = vld [vmem:[#allocation2 + $0x210] sm:$0xff]
        %v5223 = vld [vmem:[#allocation2 + $0x218] sm:$0xf]
        %v5224 = vld [vmem:[#allocation2 + $0x21c] sm:$0xff]
        %v5225 = vld [vmem:[#allocation2 + $0x224] sm:$0xff]
        %v5226 = vld [vmem:[#allocation2 + $0x22c] sm:$0xff]
        %v5227 = vld [vmem:[#allocation2 + $0x234] sm:$0xff]
        %v5228 = vld [vmem:[#allocation2 + $0x23c] sm:$0xf]
        %v5229 = vld [vmem:[#allocation4] sm:$0xf]
        %v5230 = vld [vmem:[#allocation4 + $0x4] sm:$0xf]
        %v5231 = vld [vmem:[#allocation4 + $0x8] sm:$0xf]
        %v5232 = vld [vmem:[#allocation4 + $0xc] sm:$0xf]
        %v5233 = vld [vmem:[#allocation4 + $0x10] sm:$0xf]
        %v5234 = vld [vmem:[#allocation4 + $0x14] sm:$0xf]
        %v5235 = vld [vmem:[#allocation4 + $0x18] sm:$0xf]
        %v5236 = vld [vmem:[#allocation4 + $0x1c] sm:$0xf]
        %v5237 = vld [vmem:[#allocation4 + $0x20] sm:$0xf]
        %v5238 = vld [vmem:[#allocation4 + $0x24] sm:$0xf]
        %v5239 = vld [vmem:[#allocation4 + $0x28] sm:$0xf]
        %v5240 = vld [vmem:[#allocation4 + $0x2c] sm:$0xf]
        %v5241 = vld [vmem:[#allocation4 + $0x30] sm:$0xf]
        %v5242 = vld [vmem:[#allocation4 + $0x34] sm:$0xf]
        %v5243 = vld [vmem:[#allocation4 + $0x38] sm:$0xf]
        %v5244 = vld [vmem:[#allocation4 + $0x3c] sm:$0xf]
        %v5245 = vld [vmem:[#allocation4 + $0x40] sm:$0xf]
        %v5246 = vld [vmem:[#allocation4 + $0x44] sm:$0xf]
        %v5247 = vld [vmem:[#allocation4 + $0x48] sm:$0xf]
        %v5248 = vld [vmem:[#allocation4 + $0x4c] sm:$0xf]
        %v5249 = vld [vmem:[#allocation4 + $0x50] sm:$0xf]
        %v5250 = vld [vmem:[#allocation4 + $0x54] sm:$0xf]
        %v5251 = vld [vmem:[#allocation4 + $0x58] sm:$0xf]
        %v5252 = vld [vmem:[#allocation4 + $0x5c] sm:$0xf]
        %v5253 = vld [vmem:[#allocation4 + $0x60] sm:$0xf]
        %v5254 = vld [vmem:[#allocation4 + $0x64] sm:$0xf]
        %v5255 = vld [vmem:[#allocation4 + $0x68] sm:$0xf]
        %v5256 = vld [vmem:[#allocation4 + $0x6c] sm:$0xf]
        %v5257 = vld [vmem:[#allocation4 + $0x70] sm:$0xf]
        %v5258 = vld [vmem:[#allocation4 + $0x74] sm:$0xf]
        %v5259 = vld [vmem:[#allocation4 + $0x78] sm:$0xf]
        %v5260 = vld [vmem:[#allocation4 + $0x7c] sm:$0xf]
        %v5261 = vld [vmem:[#allocation4 + $0x80] sm:$0xf]
        %v5262 = vld [vmem:[#allocation4 + $0x84] sm:$0xf]
        %v5263 = vld [vmem:[#allocation4 + $0x88] sm:$0xf]
        %v5264 = vld [vmem:[#allocation4 + $0x8c] sm:$0xf]
        %v5265 = vld [vmem:[#allocation4 + $0x90] sm:$0xf]
        %v5266 = vld [vmem:[#allocation4 + $0x94] sm:$0xf]
        %v5267 = vld [vmem:[#allocation4 + $0x98] sm:$0xf]
        %v5268 = vld [vmem:[#allocation4 + $0x9c] sm:$0xf]
        %v5269 = vld [vmem:[#allocation4 + $0xa0] sm:$0xf]
        %v5270 = vld [vmem:[#allocation4 + $0xa4] sm:$0xf]
        %v5271 = vld [vmem:[#allocation4 + $0xa8] sm:$0xf]
        %v5272 = vld [vmem:[#allocation4 + $0xac] sm:$0xf]
        %v5273 = vld [vmem:[#allocation4 + $0xb0] sm:$0xf]
        %v5274 = vld [vmem:[#allocation4 + $0xb4] sm:$0xf]
        %v5275 = vld [vmem:[#allocation4 + $0xb8] sm:$0xf]
        %v5276 = vld [vmem:[#allocation4 + $0xbc] sm:$0xf]
        %v5277 = vld [vmem:[#allocation4 + $0xc0] sm:$0xf]
        %v5278 = vld [vmem:[#allocation4 + $0xc4] sm:$0xf]
        %v5279 = vld [vmem:[#allocation4 + $0xc8] sm:$0xf]
        %v5280 = vld [vmem:[#allocation4 + $0xcc] sm:$0xf]
        %v5281 = vld [vmem:[#allocation4 + $0xd0] sm:$0xf]
        %v5282 = vld [vmem:[#allocation4 + $0xd4] sm:$0xf]
        %v5283 = vld [vmem:[#allocation4 + $0xd8] sm:$0xf]
        %v5284 = vld [vmem:[#allocation4 + $0xdc] sm:$0xf]
        %v5285 = vld [vmem:[#allocation4 + $0xe0] sm:$0xf]
        %v5286 = vld [vmem:[#allocation4 + $0xe4] sm:$0xf]
        %v5287 = vld [vmem:[#allocation4 + $0xe8] sm:$0xf]
        %v5288 = vld [vmem:[#allocation4 + $0xec] sm:$0xf]
        %v5289 = vld [vmem:[#allocation4 + $0xf0] sm:$0xf]
        %v5290 = vld [vmem:[#allocation4 + $0xf4] sm:$0xf]
        %v5291 = vld [vmem:[#allocation4 + $0xf8] sm:$0xf]
        %v5292 = vld [vmem:[#allocation4 + $0xfc] sm:$0xf]
        %v5293 = vld [vmem:[#allocation4 + $0x100] sm:$0xf]
        %v5294 = vld [vmem:[#allocation4 + $0x104] sm:$0xf]
        %v5295 = vld [vmem:[#allocation4 + $0x108] sm:$0xf]
        %v5296 = vld [vmem:[#allocation4 + $0x10c] sm:$0xf]
        %v5297 = vld [vmem:[#allocation4 + $0x110] sm:$0xf]
        %v5298 = vld [vmem:[#allocation4 + $0x114] sm:$0xf]
        %v5299 = vld [vmem:[#allocation4 + $0x118] sm:$0xf]
        %v5300 = vld [vmem:[#allocation4 + $0x11c] sm:$0xf]
        %v5301 = vld [vmem:[#allocation4 + $0x120] sm:$0xf]
        %v5302 = vld [vmem:[#allocation4 + $0x124] sm:$0xf]
        %v5303 = vld [vmem:[#allocation4 + $0x128] sm:$0xf]
        %v5304 = vld [vmem:[#allocation4 + $0x12c] sm:$0xf]
        %v5305 = vld [vmem:[#allocation4 + $0x130] sm:$0xf]
        %v5306 = vld [vmem:[#allocation4 + $0x134] sm:$0xf]
        %v5307 = vld [vmem:[#allocation4 + $0x138] sm:$0xf]
        %v5308 = vld [vmem:[#allocation4 + $0x13c] sm:$0xf]
        %v5309 = vld [vmem:[#allocation4 + $0x140] sm:$0xf]
        %v5310 = vld [vmem:[#allocation4 + $0x144] sm:$0xf]
        %v5311 = vld [vmem:[#allocation4 + $0x148] sm:$0xf]
        %v5312 = vld [vmem:[#allocation4 + $0x14c] sm:$0xf]
        %v5313 = vld [vmem:[#allocation4 + $0x150] sm:$0xf]
        %v5314 = vld [vmem:[#allocation4 + $0x154] sm:$0xf]
        %v5315 = vld [vmem:[#allocation4 + $0x158] sm:$0xf]
        %v5316 = vld [vmem:[#allocation4 + $0x15c] sm:$0xf]
        %v5317 = vld [vmem:[#allocation4 + $0x160] sm:$0xf]
        %v5318 = vld [vmem:[#allocation4 + $0x164] sm:$0xf]
        %v5319 = vld [vmem:[#allocation4 + $0x168] sm:$0xf]
        %v5320 = vld [vmem:[#allocation4 + $0x16c] sm:$0xf]
        %v5321 = vld [vmem:[#allocation4 + $0x170] sm:$0xf]
        %v5322 = vld [vmem:[#allocation4 + $0x174] sm:$0xf]
        %v5323 = vld [vmem:[#allocation4 + $0x178] sm:$0xf]
        %v5324 = vld [vmem:[#allocation4 + $0x17c] sm:$0xf]
        %v5325 = vld [vmem:[#allocation4 + $0x180] sm:$0xf]
        %v5326 = vld [vmem:[#allocation4 + $0x184] sm:$0xf]
        %v5327 = vld [vmem:[#allocation4 + $0x188] sm:$0xf]
        %v5328 = vld [vmem:[#allocation4 + $0x18c] sm:$0xf]
        %v5329 = vld [vmem:[#allocation4 + $0x190] sm:$0xf]
        %v5330 = vld [vmem:[#allocation4 + $0x194] sm:$0xf]
        %v5331 = vld [vmem:[#allocation4 + $0x198] sm:$0xf]
        %v5332 = vld [vmem:[#allocation4 + $0x19c] sm:$0xf]
        %v5333 = vld [vmem:[#allocation4 + $0x1a0] sm:$0xf]
        %v5334 = vld [vmem:[#allocation4 + $0x1a4] sm:$0xf]
        %v5335 = vld [vmem:[#allocation4 + $0x1a8] sm:$0xf]
        %v5336 = vld [vmem:[#allocation4 + $0x1ac] sm:$0xf]
        %v5337 = vld [vmem:[#allocation4 + $0x1b0] sm:$0xf]
        %v5338 = vld [vmem:[#allocation4 + $0x1b4] sm:$0xf]
        %v5339 = vld [vmem:[#allocation4 + $0x1b8] sm:$0xf]
        %v5340 = vld [vmem:[#allocation4 + $0x1bc] sm:$0xf]
        %v5341 = vld [vmem:[#allocation4 + $0x1c0] sm:$0xf]
        %v5342 = vld [vmem:[#allocation4 + $0x1c4] sm:$0xf]
        %v5343 = vld [vmem:[#allocation4 + $0x1c8] sm:$0xf]
        %v5344 = vld [vmem:[#allocation4 + $0x1cc] sm:$0xf]
        %v5345 = vld [vmem:[#allocation4 + $0x1d0] sm:$0xf]
        %v5346 = vld [vmem:[#allocation4 + $0x1d4] sm:$0xf]
        %v5347 = vld [vmem:[#allocation4 + $0x1d8] sm:$0xf]
        %v5348 = vld [vmem:[#allocation4 + $0x1dc] sm:$0xf]
        %v5349 = vld [vmem:[#allocation4 + $0x1e0] sm:$0xf]
        %v5350 = vld [vmem:[#allocation4 + $0x1e4] sm:$0xf]
        %v5351 = vld [vmem:[#allocation4 + $0x1e8] sm:$0xf]
        %v5352 = vld [vmem:[#allocation4 + $0x1ec] sm:$0xf]
        %v5353 = vld [vmem:[#allocation4 + $0x1f0] sm:$0xf]
        %v5354 = vld [vmem:[#allocation4 + $0x1f4] sm:$0xf]
        %v5355 = vld [vmem:[#allocation4 + $0x1f8] sm:$0xf]
        %v5356 = vld [vmem:[#allocation4 + $0x1fc] sm:$0xf]
        %v5357 = vld [vmem:[#allocation4 + $0x200] sm:$0xf]
        %v5358 = vld [vmem:[#allocation4 + $0x204] sm:$0xf]
        %v5359 = vld [vmem:[#allocation4 + $0x208] sm:$0xf]
        %v5360 = vld [vmem:[#allocation4 + $0x20c] sm:$0xf]
        %v5361 = vld [vmem:[#allocation4 + $0x210] sm:$0xf]
        %v5362 = vld [vmem:[#allocation4 + $0x214] sm:$0xf]
        %v5363 = vld [vmem:[#allocation4 + $0x218] sm:$0xf]
        %v5364 = vld [vmem:[#allocation4 + $0x21c] sm:$0xf]
        %v5365 = vld [vmem:[#allocation4 + $0x220] sm:$0xf]
        %v5366 = vld [vmem:[#allocation4 + $0x224] sm:$0xf]
        %v5367 = vld [vmem:[#allocation4 + $0x228] sm:$0xf]
        %v5368 = vld [vmem:[#allocation4 + $0x22c] sm:$0xf]
        %v5369 = vld [vmem:[#allocation4 + $0x230] sm:$0xf]
        %v5370 = vld [vmem:[#allocation4 + $0x234] sm:$0xf]
        %v5371 = vld [vmem:[#allocation4 + $0x238] sm:$0xf]
        %v5372 = vld [vmem:[#allocation4 + $0x23c] sm:$0xf]
        %v5373 = vld [vmem:[%s1313] sm:$0xf]
        %v5374 = vld [vmem:[%s1313 + $0x4] sm:$0xf]
        %v5375 = vld [vmem:[%s1313 + $0x8] sm:$0x1]
        %v5376 = vld [vmem:[%s1313 + $0xc] sm:$0xf]
        %v5377 = vld [vmem:[%s1313 + $0x10] sm:$0xf]
        %v5378 = vld [vmem:[%s1313 + $0x14] sm:$0x1]
        %v5379 = vld [vmem:[%s1313 + $0x18] sm:$0xf]
        %v5380 = vld [vmem:[%s1313 + $0x1c] sm:$0xf]
        %v5381 = vld [vmem:[%s1313 + $0x20] sm:$0x1]
        %v5382 = vld [vmem:[%s1313 + $0x24] sm:$0xf]
        %v5383 = vld [vmem:[%s1313 + $0x28] sm:$0xf]
        %v5384 = vld [vmem:[%s1313 + $0x2c] sm:$0x1]
        %v5385 = vld [vmem:[%s1313 + $0x30] sm:$0xf]
        %v5386 = vld [vmem:[%s1313 + $0x34] sm:$0xf]
        %v5387 = vld [vmem:[%s1313 + $0x38] sm:$0x1]
        %v5388 = vld [vmem:[%s1313 + $0x3c] sm:$0xf]
        %v5389 = vld [vmem:[%s1313 + $0x40] sm:$0xf]
        %v5390 = vld [vmem:[%s1313 + $0x44] sm:$0x1]
        %v5391 = vld [vmem:[%s1313 + $0x48] sm:$0xf]
        %v5392 = vld [vmem:[%s1313 + $0x4c] sm:$0xf]
        %v5393 = vld [vmem:[%s1313 + $0x50] sm:$0x1]
        %v5394 = vld [vmem:[%s1313 + $0x54] sm:$0xf]
        %v5395 = vld [vmem:[%s1313 + $0x58] sm:$0xf]
        %v5396 = vld [vmem:[%s1313 + $0x5c] sm:$0x1]
        %v5398 = vshrl.u32 %v5373, 16
        %v5400 = vrot.slane %v5398, 4
        %v5401 = vshll.u32 %v5373, 16
        %v5403 = vrot.slane %v5401, 5
        %v5404 = vor.u32 %v5400, %v5403
        %v5405 = vrot.slane %v5404, 4
        %v5407 = vshll.u32 %v5374, 16
        %v5409 = vrot.slane %v5407, 5
        %v5410 = vsel %vm332, %v5405, %v5409
        %v5411 = vshrl.u32 %v5374, 16
        %v5413 = vrot.slane %v5411, 4
        %v5414 = vor.u32 %v5413, %v5409
        %v5415 = vrot.slane %v5414, 4
        %v5417 = vshll.u32 %v5375, 16
        %v5419 = vrot.slane %v5417, 5
        %v5420 = vsel %vm332, %v5415, %v5419
        %v5422 = vshrl.u32 %v5376, 16
        %v5424 = vrot.slane %v5422, 4
        %v5425 = vshll.u32 %v5376, 16
        %v5427 = vrot.slane %v5425, 5
        %v5428 = vor.u32 %v5424, %v5427
        %v5429 = vrot.slane %v5428, 4
        %v5431 = vshll.u32 %v5377, 16
        %v5433 = vrot.slane %v5431, 5
        %v5434 = vsel %vm332, %v5429, %v5433
        %v5435 = vshrl.u32 %v5377, 16
        %v5437 = vrot.slane %v5435, 4
        %v5438 = vor.u32 %v5437, %v5433
        %v5439 = vrot.slane %v5438, 4
        %v5441 = vshll.u32 %v5378, 16
        %v5443 = vrot.slane %v5441, 5
        %v5444 = vsel %vm332, %v5439, %v5443
        %v5446 = vshrl.u32 %v5379, 16
        %v5448 = vrot.slane %v5446, 4
        %v5449 = vshll.u32 %v5379, 16
        %v5451 = vrot.slane %v5449, 5
        %v5452 = vor.u32 %v5448, %v5451
        %v5453 = vrot.slane %v5452, 4
        %v5455 = vshll.u32 %v5380, 16
        %v5457 = vrot.slane %v5455, 5
        %v5458 = vsel %vm332, %v5453, %v5457
        %v5459 = vshrl.u32 %v5380, 16
        %v5461 = vrot.slane %v5459, 4
        %v5462 = vor.u32 %v5461, %v5457
        %v5463 = vrot.slane %v5462, 4
        %v5465 = vshll.u32 %v5381, 16
        %v5467 = vrot.slane %v5465, 5
        %v5468 = vsel %vm332, %v5463, %v5467
        %v5470 = vshrl.u32 %v5382, 16
        %v5472 = vrot.slane %v5470, 4
        %v5473 = vshll.u32 %v5382, 16
        %v5475 = vrot.slane %v5473, 5
        %v5476 = vor.u32 %v5472, %v5475
        %v5477 = vrot.slane %v5476, 4
        %v5479 = vshll.u32 %v5383, 16
        %v5481 = vrot.slane %v5479, 5
        %v5482 = vsel %vm332, %v5477, %v5481
        %v5483 = vshrl.u32 %v5383, 16
        %v5485 = vrot.slane %v5483, 4
        %v5486 = vor.u32 %v5485, %v5481
        %v5487 = vrot.slane %v5486, 4
        %v5489 = vshll.u32 %v5384, 16
        %v5491 = vrot.slane %v5489, 5
        %v5492 = vsel %vm332, %v5487, %v5491
        %v5494 = vshrl.u32 %v5385, 16
        %v5496 = vrot.slane %v5494, 4
        %v5497 = vshll.u32 %v5385, 16
        %v5499 = vrot.slane %v5497, 5
        %v5500 = vor.u32 %v5496, %v5499
        %v5501 = vrot.slane %v5500, 4
        %v5503 = vshll.u32 %v5386, 16
        %v5505 = vrot.slane %v5503, 5
        %v5506 = vsel %vm332, %v5501, %v5505
        %v5507 = vshrl.u32 %v5386, 16
        %v5509 = vrot.slane %v5507, 4
        %v5510 = vor.u32 %v5509, %v5505
        %v5511 = vrot.slane %v5510, 4
        %v5513 = vshll.u32 %v5387, 16
        %v5515 = vrot.slane %v5513, 5
        %v5516 = vsel %vm332, %v5511, %v5515
        %v5518 = vshrl.u32 %v5388, 16
        %v5520 = vrot.slane %v5518, 4
        %v5521 = vshll.u32 %v5388, 16
        %v5523 = vrot.slane %v5521, 5
        %v5524 = vor.u32 %v5520, %v5523
        %v5525 = vrot.slane %v5524, 4
        %v5527 = vshll.u32 %v5389, 16
        %v5529 = vrot.slane %v5527, 5
        %v5530 = vsel %vm332, %v5525, %v5529
        %v5531 = vshrl.u32 %v5389, 16
        %v5533 = vrot.slane %v5531, 4
        %v5534 = vor.u32 %v5533, %v5529
        %v5535 = vrot.slane %v5534, 4
        %v5537 = vshll.u32 %v5390, 16
        %v5539 = vrot.slane %v5537, 5
        %v5540 = vsel %vm332, %v5535, %v5539
        %v5542 = vshrl.u32 %v5391, 16
        %v5544 = vrot.slane %v5542, 4
        %v5545 = vshll.u32 %v5391, 16
        %v5547 = vrot.slane %v5545, 5
        %v5548 = vor.u32 %v5544, %v5547
        %v5549 = vrot.slane %v5548, 4
        %v5551 = vshll.u32 %v5392, 16
        %v5553 = vrot.slane %v5551, 5
        %v5554 = vsel %vm332, %v5549, %v5553
        %v5555 = vshrl.u32 %v5392, 16
        %v5557 = vrot.slane %v5555, 4
        %v5558 = vor.u32 %v5557, %v5553
        %v5559 = vrot.slane %v5558, 4
        %v5561 = vshll.u32 %v5393, 16
        %v5563 = vrot.slane %v5561, 5
        %v5564 = vsel %vm332, %v5559, %v5563
        %v5566 = vshrl.u32 %v5394, 16
        %v5568 = vrot.slane %v5566, 4
        %v5569 = vshll.u32 %v5394, 16
        %v5571 = vrot.slane %v5569, 5
        %v5572 = vor.u32 %v5568, %v5571
        %v5573 = vrot.slane %v5572, 4
        %v5575 = vshll.u32 %v5395, 16
        %v5577 = vrot.slane %v5575, 5
        %v5578 = vsel %vm332, %v5573, %v5577
        %v5579 = vshrl.u32 %v5395, 16
        %v5581 = vrot.slane %v5579, 4
        %v5582 = vor.u32 %v5581, %v5577
        %v5583 = vrot.slane %v5582, 4
        %v5585 = vshll.u32 %v5396, 16
        %v5587 = vrot.slane %v5585, 5
        %v5588 = vsel %vm332, %v5583, %v5587
        %v5605 = vunpack.c.l.bf16 %v5410
        %v5606 = vunpack.c.l.bf16 %v5420
        %v5607 = vunpack.c.l.bf16 %v5434
        %v5608 = vunpack.c.l.bf16 %v5444
        %v5609 = vunpack.c.l.bf16 %v5458
        %v5610 = vunpack.c.l.bf16 %v5468
        %v5611 = vunpack.c.l.bf16 %v5482
        %v5612 = vunpack.c.l.bf16 %v5492
        %v5613 = vunpack.c.l.bf16 %v5506
        %v5614 = vunpack.c.l.bf16 %v5516
        %v5615 = vunpack.c.l.bf16 %v5530
        %v5616 = vunpack.c.l.bf16 %v5540
        %v5617 = vunpack.c.l.bf16 %v5554
        %v5618 = vunpack.c.l.bf16 %v5564
        %v5619 = vunpack.c.l.bf16 %v5578
        %v5620 = vunpack.c.l.bf16 %v5588
        %v5621 = vld [vmem:[%s4] sm:$0x1]
        %v5623 = vperm.slane %v5621, 0
        %v5705 = vunpack.c.l.b16 %v5149
        %v5706 = vunpack.c.h.b16 %v5149
        %v5707 = vunpack.c.l.b16 %v5150
        %v5708 = vunpack.c.h.b16 %v5150
        %v5709 = vunpack.c.l.b16 %v5151
        %v5710 = vunpack.c.h.b16 %v5151
        %v5711 = vunpack.c.l.b16 %v5152
        %v5712 = vunpack.c.h.b16 %v5152
        %v5713 = vunpack.c.l.b16 %v5153
        %v5714 = vunpack.c.l.b16 %v5154
        %v5715 = vunpack.c.h.b16 %v5154
        %v5716 = vunpack.c.l.b16 %v5155
        %v5717 = vunpack.c.h.b16 %v5155
        %v5718 = vunpack.c.l.b16 %v5156
        %v5719 = vunpack.c.h.b16 %v5156
        %v5720 = vunpack.c.l.b16 %v5157
        %v5721 = vunpack.c.h.b16 %v5157
        %v5722 = vunpack.c.l.b16 %v5158
        %v5723 = vunpack.c.l.b16 %v5159
        %v5724 = vunpack.c.h.b16 %v5159
        %v5725 = vunpack.c.l.b16 %v5160
        %v5726 = vunpack.c.h.b16 %v5160
        %v5727 = vunpack.c.l.b16 %v5161
        %v5728 = vunpack.c.h.b16 %v5161
        %v5729 = vunpack.c.l.b16 %v5162
        %v5730 = vunpack.c.h.b16 %v5162
        %v5731 = vunpack.c.l.b16 %v5163
        %v5732 = vunpack.c.l.b16 %v5164
        %v5733 = vunpack.c.h.b16 %v5164
        %v5734 = vunpack.c.l.b16 %v5165
        %v5735 = vunpack.c.h.b16 %v5165
        %v5736 = vunpack.c.l.b16 %v5166
        %v5737 = vunpack.c.h.b16 %v5166
        %v5738 = vunpack.c.l.b16 %v5167
        %v5739 = vunpack.c.h.b16 %v5167
        %v5740 = vunpack.c.l.b16 %v5168
        %v5741 = vunpack.c.l.b16 %v5169
        %v5742 = vunpack.c.h.b16 %v5169
        %v5743 = vunpack.c.l.b16 %v5170
        %v5744 = vunpack.c.h.b16 %v5170
        %v5745 = vunpack.c.l.b16 %v5171
        %v5746 = vunpack.c.h.b16 %v5171
        %v5747 = vunpack.c.l.b16 %v5172
        %v5748 = vunpack.c.h.b16 %v5172
        %v5749 = vunpack.c.l.b16 %v5173
        %v5750 = vunpack.c.l.b16 %v5174
        %v5751 = vunpack.c.h.b16 %v5174
        %v5752 = vunpack.c.l.b16 %v5175
        %v5753 = vunpack.c.h.b16 %v5175
        %v5754 = vunpack.c.l.b16 %v5176
        %v5755 = vunpack.c.h.b16 %v5176
        %v5756 = vunpack.c.l.b16 %v5177
        %v5757 = vunpack.c.h.b16 %v5177
        %v5758 = vunpack.c.l.b16 %v5178
        %v5759 = vunpack.c.l.b16 %v5179
        %v5760 = vunpack.c.h.b16 %v5179
        %v5761 = vunpack.c.l.b16 %v5180
        %v5762 = vunpack.c.h.b16 %v5180
        %v5763 = vunpack.c.l.b16 %v5181
        %v5764 = vunpack.c.h.b16 %v5181
        %v5765 = vunpack.c.l.b16 %v5182
        %v5766 = vunpack.c.h.b16 %v5182
        %v5767 = vunpack.c.l.b16 %v5183
        %v5768 = vunpack.c.l.b16 %v5184
        %v5769 = vunpack.c.h.b16 %v5184
        %v5770 = vunpack.c.l.b16 %v5185
        %v5771 = vunpack.c.h.b16 %v5185
        %v5772 = vunpack.c.l.b16 %v5186
        %v5773 = vunpack.c.h.b16 %v5186
        %v5774 = vunpack.c.l.b16 %v5187
        %v5775 = vunpack.c.h.b16 %v5187
        %v5776 = vunpack.c.l.b16 %v5188
        %v5777 = vunpack.c.l.b16 %v5189
        %v5778 = vunpack.c.h.b16 %v5189
        %v5779 = vunpack.c.l.b16 %v5190
        %v5780 = vunpack.c.h.b16 %v5190
        %v5781 = vunpack.c.l.b16 %v5191
        %v5782 = vunpack.c.h.b16 %v5191
        %v5783 = vunpack.c.l.b16 %v5192
        %v5784 = vunpack.c.h.b16 %v5192
        %v5785 = vunpack.c.l.b16 %v5193
        %v5786 = vunpack.c.l.b16 %v5194
        %v5787 = vunpack.c.h.b16 %v5194
        %v5788 = vunpack.c.l.b16 %v5195
        %v5789 = vunpack.c.h.b16 %v5195
        %v5790 = vunpack.c.l.b16 %v5196
        %v5791 = vunpack.c.h.b16 %v5196
        %v5792 = vunpack.c.l.b16 %v5197
        %v5793 = vunpack.c.h.b16 %v5197
        %v5794 = vunpack.c.l.b16 %v5198
        %v5795 = vunpack.c.l.b16 %v5199
        %v5796 = vunpack.c.h.b16 %v5199
        %v5797 = vunpack.c.l.b16 %v5200
        %v5798 = vunpack.c.h.b16 %v5200
        %v5799 = vunpack.c.l.b16 %v5201
        %v5800 = vunpack.c.h.b16 %v5201
        %v5801 = vunpack.c.l.b16 %v5202
        %v5802 = vunpack.c.h.b16 %v5202
        %v5803 = vunpack.c.l.b16 %v5203
        %v5804 = vunpack.c.l.b16 %v5204
        %v5805 = vunpack.c.h.b16 %v5204
        %v5806 = vunpack.c.l.b16 %v5205
        %v5807 = vunpack.c.h.b16 %v5205
        %v5808 = vunpack.c.l.b16 %v5206
        %v5809 = vunpack.c.h.b16 %v5206
        %v5810 = vunpack.c.l.b16 %v5207
        %v5811 = vunpack.c.h.b16 %v5207
        %v5812 = vunpack.c.l.b16 %v5208
        %v5813 = vunpack.c.l.b16 %v5209
        %v5814 = vunpack.c.h.b16 %v5209
        %v5815 = vunpack.c.l.b16 %v5210
        %v5816 = vunpack.c.h.b16 %v5210
        %v5817 = vunpack.c.l.b16 %v5211
        %v5818 = vunpack.c.h.b16 %v5211
        %v5819 = vunpack.c.l.b16 %v5212
        %v5820 = vunpack.c.h.b16 %v5212
        %v5821 = vunpack.c.l.b16 %v5213
        %v5822 = vunpack.c.l.b16 %v5214
        %v5823 = vunpack.c.h.b16 %v5214
        %v5824 = vunpack.c.l.b16 %v5215
        %v5825 = vunpack.c.h.b16 %v5215
        %v5826 = vunpack.c.l.b16 %v5216
        %v5827 = vunpack.c.h.b16 %v5216
        %v5828 = vunpack.c.l.b16 %v5217
        %v5829 = vunpack.c.h.b16 %v5217
        %v5830 = vunpack.c.l.b16 %v5218
        %v5831 = vunpack.c.l.b16 %v5219
        %v5832 = vunpack.c.h.b16 %v5219
        %v5833 = vunpack.c.l.b16 %v5220
        %v5834 = vunpack.c.h.b16 %v5220
        %v5835 = vunpack.c.l.b16 %v5221
        %v5836 = vunpack.c.h.b16 %v5221
        %v5837 = vunpack.c.l.b16 %v5222
        %v5838 = vunpack.c.h.b16 %v5222
        %v5839 = vunpack.c.l.b16 %v5223
        %v5840 = vunpack.c.l.b16 %v5224
        %v5841 = vunpack.c.h.b16 %v5224
        %v5842 = vunpack.c.l.b16 %v5225
        %v5843 = vunpack.c.h.b16 %v5225
        %v5844 = vunpack.c.l.b16 %v5226
        %v5845 = vunpack.c.h.b16 %v5226
        %v5846 = vunpack.c.l.b16 %v5227
        %v5847 = vunpack.c.h.b16 %v5227
        %v5848 = vunpack.c.l.b16 %v5228
        %v5849 = vpack.c.b16 %v5714, %v5705
        %v5850 = vpack.c.b16 %v5715, %v5706
        %v5851 = vpack.c.b16 %v5716, %v5707
        %v5852 = vpack.c.b16 %v5717, %v5708
        %v5853 = vpack.c.b16 %v5718, %v5709
        %v5854 = vpack.c.b16 %v5719, %v5710
        %v5855 = vpack.c.b16 %v5720, %v5711
        %v5856 = vpack.c.b16 %v5721, %v5712
        %v5857 = vpack.c.b16 %v5722, %v5713
        %v5858 = vpack.c.b16 %v5732, %v5723
        %v5859 = vpack.c.b16 %v5733, %v5724
        %v5860 = vpack.c.b16 %v5734, %v5725
        %v5861 = vpack.c.b16 %v5735, %v5726
        %v5862 = vpack.c.b16 %v5736, %v5727
        %v5863 = vpack.c.b16 %v5737, %v5728
        %v5864 = vpack.c.b16 %v5738, %v5729
        %v5865 = vpack.c.b16 %v5739, %v5730
        %v5866 = vpack.c.b16 %v5740, %v5731
        %v5867 = vpack.c.b16 %v5750, %v5741
        %v5868 = vpack.c.b16 %v5751, %v5742
        %v5869 = vpack.c.b16 %v5752, %v5743
        %v5870 = vpack.c.b16 %v5753, %v5744
        %v5871 = vpack.c.b16 %v5754, %v5745
        %v5872 = vpack.c.b16 %v5755, %v5746
        %v5873 = vpack.c.b16 %v5756, %v5747
        %v5874 = vpack.c.b16 %v5757, %v5748
        %v5875 = vpack.c.b16 %v5758, %v5749
        %v5876 = vpack.c.b16 %v5768, %v5759
        %v5877 = vpack.c.b16 %v5769, %v5760
        %v5878 = vpack.c.b16 %v5770, %v5761
        %v5879 = vpack.c.b16 %v5771, %v5762
        %v5880 = vpack.c.b16 %v5772, %v5763
        %v5881 = vpack.c.b16 %v5773, %v5764
        %v5882 = vpack.c.b16 %v5774, %v5765
        %v5883 = vpack.c.b16 %v5775, %v5766
        %v5884 = vpack.c.b16 %v5776, %v5767
        %v5885 = vpack.c.b16 %v5786, %v5777
        %v5886 = vpack.c.b16 %v5787, %v5778
        %v5887 = vpack.c.b16 %v5788, %v5779
        %v5888 = vpack.c.b16 %v5789, %v5780
        %v5889 = vpack.c.b16 %v5790, %v5781
        %v5890 = vpack.c.b16 %v5791, %v5782
        %v5891 = vpack.c.b16 %v5792, %v5783
        %v5892 = vpack.c.b16 %v5793, %v5784
        %v5893 = vpack.c.b16 %v5794, %v5785
        %v5894 = vpack.c.b16 %v5804, %v5795
        %v5895 = vpack.c.b16 %v5805, %v5796
        %v5896 = vpack.c.b16 %v5806, %v5797
        %v5897 = vpack.c.b16 %v5807, %v5798
        %v5898 = vpack.c.b16 %v5808, %v5799
        %v5899 = vpack.c.b16 %v5809, %v5800
        %v5900 = vpack.c.b16 %v5810, %v5801
        %v5901 = vpack.c.b16 %v5811, %v5802
        %v5902 = vpack.c.b16 %v5812, %v5803
        %v5903 = vpack.c.b16 %v5822, %v5813
        %v5904 = vpack.c.b16 %v5823, %v5814
        %v5905 = vpack.c.b16 %v5824, %v5815
        %v5906 = vpack.c.b16 %v5825, %v5816
        %v5907 = vpack.c.b16 %v5826, %v5817
        %v5908 = vpack.c.b16 %v5827, %v5818
        %v5909 = vpack.c.b16 %v5828, %v5819
        %v5910 = vpack.c.b16 %v5829, %v5820
        %v5911 = vpack.c.b16 %v5830, %v5821
        %v5912 = vpack.c.b16 %v5840, %v5831
        %v5913 = vpack.c.b16 %v5841, %v5832
        %v5914 = vpack.c.b16 %v5842, %v5833
        %v5915 = vpack.c.b16 %v5843, %v5834
        %v5916 = vpack.c.b16 %v5844, %v5835
        %v5917 = vpack.c.b16 %v5845, %v5836
        %v5918 = vpack.c.b16 %v5846, %v5837
        %v5919 = vpack.c.b16 %v5847, %v5838
        %v5920 = vpack.c.b16 %v5848, %v5839
        %v6137 = vunpack.c.l.b16 %v5229
        %v6138 = vunpack.c.l.b16 %v5230
        %v6139 = vunpack.c.l.b16 %v5231
        %v6140 = vunpack.c.l.b16 %v5232
        %v6141 = vunpack.c.l.b16 %v5233
        %v6142 = vunpack.c.l.b16 %v5234
        %v6143 = vunpack.c.l.b16 %v5235
        %v6144 = vunpack.c.l.b16 %v5236
        %v6145 = vunpack.c.l.b16 %v5237
        %v6146 = vunpack.c.l.b16 %v5238
        %v6147 = vunpack.c.l.b16 %v5239
        %v6148 = vunpack.c.l.b16 %v5240
        %v6149 = vunpack.c.l.b16 %v5241
        %v6150 = vunpack.c.l.b16 %v5242
        %v6151 = vunpack.c.l.b16 %v5243
        %v6152 = vunpack.c.l.b16 %v5244
        %v6153 = vunpack.c.l.b16 %v5245
        %v6154 = vunpack.c.l.b16 %v5246
        %v6155 = vunpack.c.l.b16 %v5247
        %v6156 = vunpack.c.l.b16 %v5248
        %v6157 = vunpack.c.l.b16 %v5249
        %v6158 = vunpack.c.l.b16 %v5250
        %v6159 = vunpack.c.l.b16 %v5251
        %v6160 = vunpack.c.l.b16 %v5252
        %v6161 = vunpack.c.l.b16 %v5253
        %v6162 = vunpack.c.l.b16 %v5254
        %v6163 = vunpack.c.l.b16 %v5255
        %v6164 = vunpack.c.l.b16 %v5256
        %v6165 = vunpack.c.l.b16 %v5257
        %v6166 = vunpack.c.l.b16 %v5258
        %v6167 = vunpack.c.l.b16 %v5259
        %v6168 = vunpack.c.l.b16 %v5260
        %v6169 = vunpack.c.l.b16 %v5261
        %v6170 = vunpack.c.l.b16 %v5262
        %v6171 = vunpack.c.l.b16 %v5263
        %v6172 = vunpack.c.l.b16 %v5264
        %v6173 = vunpack.c.l.b16 %v5265
        %v6174 = vunpack.c.l.b16 %v5266
        %v6175 = vunpack.c.l.b16 %v5267
        %v6176 = vunpack.c.l.b16 %v5268
        %v6177 = vunpack.c.l.b16 %v5269
        %v6178 = vunpack.c.l.b16 %v5270
        %v6179 = vunpack.c.l.b16 %v5271
        %v6180 = vunpack.c.l.b16 %v5272
        %v6181 = vunpack.c.l.b16 %v5273
        %v6182 = vunpack.c.l.b16 %v5274
        %v6183 = vunpack.c.l.b16 %v5275
        %v6184 = vunpack.c.l.b16 %v5276
        %v6185 = vunpack.c.l.b16 %v5277
        %v6186 = vunpack.c.l.b16 %v5278
        %v6187 = vunpack.c.l.b16 %v5279
        %v6188 = vunpack.c.l.b16 %v5280
        %v6189 = vunpack.c.l.b16 %v5281
        %v6190 = vunpack.c.l.b16 %v5282
        %v6191 = vunpack.c.l.b16 %v5283
        %v6192 = vunpack.c.l.b16 %v5284
        %v6193 = vunpack.c.l.b16 %v5285
        %v6194 = vunpack.c.l.b16 %v5286
        %v6195 = vunpack.c.l.b16 %v5287
        %v6196 = vunpack.c.l.b16 %v5288
        %v6197 = vunpack.c.l.b16 %v5289
        %v6198 = vunpack.c.l.b16 %v5290
        %v6199 = vunpack.c.l.b16 %v5291
        %v6200 = vunpack.c.l.b16 %v5292
        %v6201 = vunpack.c.l.b16 %v5293
        %v6202 = vunpack.c.l.b16 %v5294
        %v6203 = vunpack.c.l.b16 %v5295
        %v6204 = vunpack.c.l.b16 %v5296
        %v6205 = vunpack.c.l.b16 %v5297
        %v6206 = vunpack.c.l.b16 %v5298
        %v6207 = vunpack.c.l.b16 %v5299
        %v6208 = vunpack.c.l.b16 %v5300
        %v6209 = vunpack.c.l.b16 %v5301
        %v6210 = vunpack.c.l.b16 %v5302
        %v6211 = vunpack.c.l.b16 %v5303
        %v6212 = vunpack.c.l.b16 %v5304
        %v6213 = vunpack.c.l.b16 %v5305
        %v6214 = vunpack.c.l.b16 %v5306
        %v6215 = vunpack.c.l.b16 %v5307
        %v6216 = vunpack.c.l.b16 %v5308
        %v6217 = vunpack.c.l.b16 %v5309
        %v6218 = vunpack.c.l.b16 %v5310
        %v6219 = vunpack.c.l.b16 %v5311
        %v6220 = vunpack.c.l.b16 %v5312
        %v6221 = vunpack.c.l.b16 %v5313
        %v6222 = vunpack.c.l.b16 %v5314
        %v6223 = vunpack.c.l.b16 %v5315
        %v6224 = vunpack.c.l.b16 %v5316
        %v6225 = vunpack.c.l.b16 %v5317
        %v6226 = vunpack.c.l.b16 %v5318
        %v6227 = vunpack.c.l.b16 %v5319
        %v6228 = vunpack.c.l.b16 %v5320
        %v6229 = vunpack.c.l.b16 %v5321
        %v6230 = vunpack.c.l.b16 %v5322
        %v6231 = vunpack.c.l.b16 %v5323
        %v6232 = vunpack.c.l.b16 %v5324
        %v6233 = vunpack.c.l.b16 %v5325
        %v6234 = vunpack.c.l.b16 %v5326
        %v6235 = vunpack.c.l.b16 %v5327
        %v6236 = vunpack.c.l.b16 %v5328
        %v6237 = vunpack.c.l.b16 %v5329
        %v6238 = vunpack.c.l.b16 %v5330
        %v6239 = vunpack.c.l.b16 %v5331
        %v6240 = vunpack.c.l.b16 %v5332
        %v6241 = vunpack.c.l.b16 %v5333
        %v6242 = vunpack.c.l.b16 %v5334
        %v6243 = vunpack.c.l.b16 %v5335
        %v6244 = vunpack.c.l.b16 %v5336
        %v6245 = vunpack.c.l.b16 %v5337
        %v6246 = vunpack.c.l.b16 %v5338
        %v6247 = vunpack.c.l.b16 %v5339
        %v6248 = vunpack.c.l.b16 %v5340
        %v6249 = vunpack.c.l.b16 %v5341
        %v6250 = vunpack.c.l.b16 %v5342
        %v6251 = vunpack.c.l.b16 %v5343
        %v6252 = vunpack.c.l.b16 %v5344
        %v6253 = vunpack.c.l.b16 %v5345
        %v6254 = vunpack.c.l.b16 %v5346
        %v6255 = vunpack.c.l.b16 %v5347
        %v6256 = vunpack.c.l.b16 %v5348
        %v6257 = vunpack.c.l.b16 %v5349
        %v6258 = vunpack.c.l.b16 %v5350
        %v6259 = vunpack.c.l.b16 %v5351
        %v6260 = vunpack.c.l.b16 %v5352
        %v6261 = vunpack.c.l.b16 %v5353
        %v6262 = vunpack.c.l.b16 %v5354
        %v6263 = vunpack.c.l.b16 %v5355
        %v6264 = vunpack.c.l.b16 %v5356
        %v6265 = vunpack.c.l.b16 %v5357
        %v6266 = vunpack.c.l.b16 %v5358
        %v6267 = vunpack.c.l.b16 %v5359
        %v6268 = vunpack.c.l.b16 %v5360
        %v6269 = vunpack.c.l.b16 %v5361
        %v6270 = vunpack.c.l.b16 %v5362
        %v6271 = vunpack.c.l.b16 %v5363
        %v6272 = vunpack.c.l.b16 %v5364
        %v6273 = vunpack.c.l.b16 %v5365
        %v6274 = vunpack.c.l.b16 %v5366
        %v6275 = vunpack.c.l.b16 %v5367
        %v6276 = vunpack.c.l.b16 %v5368
        %v6277 = vunpack.c.l.b16 %v5369
        %v6278 = vunpack.c.l.b16 %v5370
        %v6279 = vunpack.c.l.b16 %v5371
        %v6280 = vunpack.c.l.b16 %v5372
        %v6281 = vpack.c.b16 %v6138, %v6137
        %v6282 = vpack.c.b16 %v6140, %v6139
        %v6283 = vpack.c.b16 %v6142, %v6141
        %v6284 = vpack.c.b16 %v6144, %v6143
        %v6285 = vpack.c.b16 %v6146, %v6145
        %v6286 = vpack.c.b16 %v6148, %v6147
        %v6287 = vpack.c.b16 %v6150, %v6149
        %v6288 = vpack.c.b16 %v6152, %v6151
        %v6289 = vpack.c.b16 %v6154, %v6153
        %v6290 = vpack.c.b16 %v6156, %v6155
        %v6291 = vpack.c.b16 %v6158, %v6157
        %v6292 = vpack.c.b16 %v6160, %v6159
        %v6293 = vpack.c.b16 %v6162, %v6161
        %v6294 = vpack.c.b16 %v6164, %v6163
        %v6295 = vpack.c.b16 %v6166, %v6165
        %v6296 = vpack.c.b16 %v6168, %v6167
        %v6297 = vpack.c.b16 %v6170, %v6169
        %v6298 = vpack.c.b16 %v6172, %v6171
        %v6299 = vpack.c.b16 %v6174, %v6173
        %v6300 = vpack.c.b16 %v6176, %v6175
        %v6301 = vpack.c.b16 %v6178, %v6177
        %v6302 = vpack.c.b16 %v6180, %v6179
        %v6303 = vpack.c.b16 %v6182, %v6181
        %v6304 = vpack.c.b16 %v6184, %v6183
        %v6305 = vpack.c.b16 %v6186, %v6185
        %v6306 = vpack.c.b16 %v6188, %v6187
        %v6307 = vpack.c.b16 %v6190, %v6189
        %v6308 = vpack.c.b16 %v6192, %v6191
        %v6309 = vpack.c.b16 %v6194, %v6193
        %v6310 = vpack.c.b16 %v6196, %v6195
        %v6311 = vpack.c.b16 %v6198, %v6197
        %v6312 = vpack.c.b16 %v6200, %v6199
        %v6313 = vpack.c.b16 %v6202, %v6201
        %v6314 = vpack.c.b16 %v6204, %v6203
        %v6315 = vpack.c.b16 %v6206, %v6205
        %v6316 = vpack.c.b16 %v6208, %v6207
        %v6317 = vpack.c.b16 %v6210, %v6209
        %v6318 = vpack.c.b16 %v6212, %v6211
        %v6319 = vpack.c.b16 %v6214, %v6213
        %v6320 = vpack.c.b16 %v6216, %v6215
        %v6321 = vpack.c.b16 %v6218, %v6217
        %v6322 = vpack.c.b16 %v6220, %v6219
        %v6323 = vpack.c.b16 %v6222, %v6221
        %v6324 = vpack.c.b16 %v6224, %v6223
        %v6325 = vpack.c.b16 %v6226, %v6225
        %v6326 = vpack.c.b16 %v6228, %v6227
        %v6327 = vpack.c.b16 %v6230, %v6229
        %v6328 = vpack.c.b16 %v6232, %v6231
        %v6329 = vpack.c.b16 %v6234, %v6233
        %v6330 = vpack.c.b16 %v6236, %v6235
        %v6331 = vpack.c.b16 %v6238, %v6237
        %v6332 = vpack.c.b16 %v6240, %v6239
        %v6333 = vpack.c.b16 %v6242, %v6241
        %v6334 = vpack.c.b16 %v6244, %v6243
        %v6335 = vpack.c.b16 %v6246, %v6245
        %v6336 = vpack.c.b16 %v6248, %v6247
        %v6337 = vpack.c.b16 %v6250, %v6249
        %v6338 = vpack.c.b16 %v6252, %v6251
        %v6339 = vpack.c.b16 %v6254, %v6253
        %v6340 = vpack.c.b16 %v6256, %v6255
        %v6341 = vpack.c.b16 %v6258, %v6257
        %v6342 = vpack.c.b16 %v6260, %v6259
        %v6343 = vpack.c.b16 %v6262, %v6261
        %v6344 = vpack.c.b16 %v6264, %v6263
        %v6345 = vpack.c.b16 %v6266, %v6265
        %v6346 = vpack.c.b16 %v6268, %v6267
        %v6347 = vpack.c.b16 %v6270, %v6269
        %v6348 = vpack.c.b16 %v6272, %v6271
        %v6349 = vpack.c.b16 %v6274, %v6273
        %v6350 = vpack.c.b16 %v6276, %v6275
        %v6351 = vpack.c.b16 %v6278, %v6277
        %v6352 = vpack.c.b16 %v6280, %v6279
        %6425 = vmatpush.bf16.msra.mxu0 %v6288
        %6426 = vmatpush.bf16.msra.mxu0 %v6287
        %6427 = vmatpush.bf16.msra.mxu0 %v6286
        %6428 = vmatpush.bf16.msra.mxu0 %v6285
        %6429 = vmatpush.bf16.msra.mxu0 %v6284
        %6430 = vmatpush.bf16.msra.mxu0 %v6283
        %6431 = vmatpush.bf16.msra.mxu0 %v6282
        %6432 = vmatpush.bf16.msra.mxu0 %v6281
        %6433 = vmatmul.bf16.gmra.mxu0 %v5849
        %v6434 = vpop.f32.mrf.mxu0
        %v6435 = vadd.f32 %v5623, %v6434
        %v6436 = vpop.f32.mrf.mxu0
        %v6437 = vadd.f32 %v5623, %v6436
        %6438 = vmatmul.bf16.gmra.mxu0 %v5858
        %v6439 = vpop.f32.mrf.mxu0
        %v6440 = vadd.f32 %v5623, %v6439
        %v6441 = vpop.f32.mrf.mxu0
        %v6442 = vadd.f32 %v5623, %v6441
        %6443 = vmatmul.bf16.gmra.mxu0 %v5867
        %v6444 = vpop.f32.mrf.mxu0
        %v6445 = vadd.f32 %v5623, %v6444
        %v6446 = vpop.f32.mrf.mxu0
        %v6447 = vadd.f32 %v5623, %v6446
        %6448 = vmatmul.bf16.gmra.mxu0 %v5876
        %v6449 = vpop.f32.mrf.mxu0
        %v6450 = vadd.f32 %v5623, %v6449
        %v6451 = vpop.f32.mrf.mxu0
        %v6452 = vadd.f32 %v5623, %v6451
        %6453 = vmatmul.bf16.gmra.mxu0 %v5885
        %v6454 = vpop.f32.mrf.mxu0
        %v6455 = vadd.f32 %v5623, %v6454
        %v6456 = vpop.f32.mrf.mxu0
        %v6457 = vadd.f32 %v5623, %v6456
        %6458 = vmatmul.bf16.gmra.mxu0 %v5894
        %v6459 = vpop.f32.mrf.mxu0
        %v6460 = vadd.f32 %v5623, %v6459
        %v6461 = vpop.f32.mrf.mxu0
        %v6462 = vadd.f32 %v5623, %v6461
        %6463 = vmatmul.bf16.gmra.mxu0 %v5903
        %v6464 = vpop.f32.mrf.mxu0
        %v6465 = vadd.f32 %v5623, %v6464
        %v6466 = vpop.f32.mrf.mxu0
        %v6467 = vadd.f32 %v5623, %v6466
        %6468 = vmatmul.bf16.gmra.mxu0 %v5912
        %v6469 = vpop.f32.mrf.mxu0
        %v6470 = vadd.f32 %v5623, %v6469
        %v6471 = vpop.f32.mrf.mxu0
        %v6472 = vadd.f32 %v5623, %v6471
        %6473 = vdwg.mxu0
        %6474 = vmatpush.bf16.msra.mxu0 %v6296
        %6475 = vmatpush.bf16.msra.mxu0 %v6295
        %6476 = vmatpush.bf16.msra.mxu0 %v6294
        %6477 = vmatpush.bf16.msra.mxu0 %v6293
        %6478 = vmatpush.bf16.msra.mxu0 %v6292
        %6479 = vmatpush.bf16.msra.mxu0 %v6291
        %6480 = vmatpush.bf16.msra.mxu0 %v6290
        %6481 = vmatpush.bf16.msra.mxu0 %v6289
        %6482 = vmatmul.bf16.gmra.mxu0 %v5850
        %v6483 = vpop.f32.mrf.mxu0
        %v6484 = vadd.f32 %v6435, %v6483
        %v6485 = vpop.f32.mrf.mxu0
        %v6486 = vadd.f32 %v6437, %v6485
        %6487 = vmatmul.bf16.gmra.mxu0 %v5859
        %v6488 = vpop.f32.mrf.mxu0
        %v6489 = vadd.f32 %v6440, %v6488
        %v6490 = vpop.f32.mrf.mxu0
        %v6491 = vadd.f32 %v6442, %v6490
        %6492 = vmatmul.bf16.gmra.mxu0 %v5868
        %v6493 = vpop.f32.mrf.mxu0
        %v6494 = vadd.f32 %v6445, %v6493
        %v6495 = vpop.f32.mrf.mxu0
        %v6496 = vadd.f32 %v6447, %v6495
        %6497 = vmatmul.bf16.gmra.mxu0 %v5877
        %v6498 = vpop.f32.mrf.mxu0
        %v6499 = vadd.f32 %v6450, %v6498
        %v6500 = vpop.f32.mrf.mxu0
        %v6501 = vadd.f32 %v6452, %v6500
        %6502 = vmatmul.bf16.gmra.mxu0 %v5886
        %v6503 = vpop.f32.mrf.mxu0
        %v6504 = vadd.f32 %v6455, %v6503
        %v6505 = vpop.f32.mrf.mxu0
        %v6506 = vadd.f32 %v6457, %v6505
        %6507 = vmatmul.bf16.gmra.mxu0 %v5895
        %v6508 = vpop.f32.mrf.mxu0
        %v6509 = vadd.f32 %v6460, %v6508
        %v6510 = vpop.f32.mrf.mxu0
        %v6511 = vadd.f32 %v6462, %v6510
        %6512 = vmatmul.bf16.gmra.mxu0 %v5904
        %v6513 = vpop.f32.mrf.mxu0
        %v6514 = vadd.f32 %v6465, %v6513
        %v6515 = vpop.f32.mrf.mxu0
        %v6516 = vadd.f32 %v6467, %v6515
        %6517 = vmatmul.bf16.gmra.mxu0 %v5913
        %v6518 = vpop.f32.mrf.mxu0
        %v6519 = vadd.f32 %v6470, %v6518
        %v6520 = vpop.f32.mrf.mxu0
        %v6521 = vadd.f32 %v6472, %v6520
        %6522 = vdwg.mxu0
        %6523 = vmatpush.bf16.msra.mxu0 %v6304
        %6524 = vmatpush.bf16.msra.mxu0 %v6303
        %6525 = vmatpush.bf16.msra.mxu0 %v6302
        %6526 = vmatpush.bf16.msra.mxu0 %v6301
        %6527 = vmatpush.bf16.msra.mxu0 %v6300
        %6528 = vmatpush.bf16.msra.mxu0 %v6299
        %6529 = vmatpush.bf16.msra.mxu0 %v6298
        %6530 = vmatpush.bf16.msra.mxu0 %v6297
        %6531 = vmatmul.bf16.gmra.mxu0 %v5851
        %v6532 = vpop.f32.mrf.mxu0
        %v6533 = vadd.f32 %v6484, %v6532
        %v6534 = vpop.f32.mrf.mxu0
        %v6535 = vadd.f32 %v6486, %v6534
        %6536 = vmatmul.bf16.gmra.mxu0 %v5860
        %v6537 = vpop.f32.mrf.mxu0
        %v6538 = vadd.f32 %v6489, %v6537
        %v6539 = vpop.f32.mrf.mxu0
        %v6540 = vadd.f32 %v6491, %v6539
        %6541 = vmatmul.bf16.gmra.mxu0 %v5869
        %v6542 = vpop.f32.mrf.mxu0
        %v6543 = vadd.f32 %v6494, %v6542
        %v6544 = vpop.f32.mrf.mxu0
        %v6545 = vadd.f32 %v6496, %v6544
        %6546 = vmatmul.bf16.gmra.mxu0 %v5878
        %v6547 = vpop.f32.mrf.mxu0
        %v6548 = vadd.f32 %v6499, %v6547
        %v6549 = vpop.f32.mrf.mxu0
        %v6550 = vadd.f32 %v6501, %v6549
        %6551 = vmatmul.bf16.gmra.mxu0 %v5887
        %v6552 = vpop.f32.mrf.mxu0
        %v6553 = vadd.f32 %v6504, %v6552
        %v6554 = vpop.f32.mrf.mxu0
        %v6555 = vadd.f32 %v6506, %v6554
        %6556 = vmatmul.bf16.gmra.mxu0 %v5896
        %v6557 = vpop.f32.mrf.mxu0
        %v6558 = vadd.f32 %v6509, %v6557
        %v6559 = vpop.f32.mrf.mxu0
        %v6560 = vadd.f32 %v6511, %v6559
        %6561 = vmatmul.bf16.gmra.mxu0 %v5905
        %v6562 = vpop.f32.mrf.mxu0
        %v6563 = vadd.f32 %v6514, %v6562
        %v6564 = vpop.f32.mrf.mxu0
        %v6565 = vadd.f32 %v6516, %v6564
        %6566 = vmatmul.bf16.gmra.mxu0 %v5914
        %v6567 = vpop.f32.mrf.mxu0
        %v6568 = vadd.f32 %v6519, %v6567
        %v6569 = vpop.f32.mrf.mxu0
        %v6570 = vadd.f32 %v6521, %v6569
        %6571 = vdwg.mxu0
        %6572 = vmatpush.bf16.msra.mxu0 %v6312
        %6573 = vmatpush.bf16.msra.mxu0 %v6311
        %6574 = vmatpush.bf16.msra.mxu0 %v6310
        %6575 = vmatpush.bf16.msra.mxu0 %v6309
        %6576 = vmatpush.bf16.msra.mxu0 %v6308
        %6577 = vmatpush.bf16.msra.mxu0 %v6307
        %6578 = vmatpush.bf16.msra.mxu0 %v6306
        %6579 = vmatpush.bf16.msra.mxu0 %v6305
        %6580 = vmatmul.bf16.gmra.mxu0 %v5852
        %v6581 = vpop.f32.mrf.mxu0
        %v6582 = vadd.f32 %v6533, %v6581
        %v6583 = vpop.f32.mrf.mxu0
        %v6584 = vadd.f32 %v6535, %v6583
        %6585 = vmatmul.bf16.gmra.mxu0 %v5861
        %v6586 = vpop.f32.mrf.mxu0
        %v6587 = vadd.f32 %v6538, %v6586
        %v6588 = vpop.f32.mrf.mxu0
        %v6589 = vadd.f32 %v6540, %v6588
        %6590 = vmatmul.bf16.gmra.mxu0 %v5870
        %v6591 = vpop.f32.mrf.mxu0
        %v6592 = vadd.f32 %v6543, %v6591
        %v6593 = vpop.f32.mrf.mxu0
        %v6594 = vadd.f32 %v6545, %v6593
        %6595 = vmatmul.bf16.gmra.mxu0 %v5879
        %v6596 = vpop.f32.mrf.mxu0
        %v6597 = vadd.f32 %v6548, %v6596
        %v6598 = vpop.f32.mrf.mxu0
        %v6599 = vadd.f32 %v6550, %v6598
        %6600 = vmatmul.bf16.gmra.mxu0 %v5888
        %v6601 = vpop.f32.mrf.mxu0
        %v6602 = vadd.f32 %v6553, %v6601
        %v6603 = vpop.f32.mrf.mxu0
        %v6604 = vadd.f32 %v6555, %v6603
        %6605 = vmatmul.bf16.gmra.mxu0 %v5897
        %v6606 = vpop.f32.mrf.mxu0
        %v6607 = vadd.f32 %v6558, %v6606
        %v6608 = vpop.f32.mrf.mxu0
        %v6609 = vadd.f32 %v6560, %v6608
        %6610 = vmatmul.bf16.gmra.mxu0 %v5906
        %v6611 = vpop.f32.mrf.mxu0
        %v6612 = vadd.f32 %v6563, %v6611
        %v6613 = vpop.f32.mrf.mxu0
        %v6614 = vadd.f32 %v6565, %v6613
        %6615 = vmatmul.bf16.gmra.mxu0 %v5915
        %v6616 = vpop.f32.mrf.mxu0
        %v6617 = vadd.f32 %v6568, %v6616
        %v6618 = vpop.f32.mrf.mxu0
        %v6619 = vadd.f32 %v6570, %v6618
        %6620 = vdwg.mxu0
        %6621 = vmatpush.bf16.msra.mxu0 %v6320
        %6622 = vmatpush.bf16.msra.mxu0 %v6319
        %6623 = vmatpush.bf16.msra.mxu0 %v6318
        %6624 = vmatpush.bf16.msra.mxu0 %v6317
        %6625 = vmatpush.bf16.msra.mxu0 %v6316
        %6626 = vmatpush.bf16.msra.mxu0 %v6315
        %6627 = vmatpush.bf16.msra.mxu0 %v6314
        %6628 = vmatpush.bf16.msra.mxu0 %v6313
        %6629 = vmatmul.bf16.gmra.mxu0 %v5853
        %v6630 = vpop.f32.mrf.mxu0
        %v6631 = vadd.f32 %v6582, %v6630
        %v6632 = vpop.f32.mrf.mxu0
        %v6633 = vadd.f32 %v6584, %v6632
        %6634 = vmatmul.bf16.gmra.mxu0 %v5862
        %v6635 = vpop.f32.mrf.mxu0
        %v6636 = vadd.f32 %v6587, %v6635
        %v6637 = vpop.f32.mrf.mxu0
        %v6638 = vadd.f32 %v6589, %v6637
        %6639 = vmatmul.bf16.gmra.mxu0 %v5871
        %v6640 = vpop.f32.mrf.mxu0
        %v6641 = vadd.f32 %v6592, %v6640
        %v6642 = vpop.f32.mrf.mxu0
        %v6643 = vadd.f32 %v6594, %v6642
        %6644 = vmatmul.bf16.gmra.mxu0 %v5880
        %v6645 = vpop.f32.mrf.mxu0
        %v6646 = vadd.f32 %v6597, %v6645
        %v6647 = vpop.f32.mrf.mxu0
        %v6648 = vadd.f32 %v6599, %v6647
        %6649 = vmatmul.bf16.gmra.mxu0 %v5889
        %v6650 = vpop.f32.mrf.mxu0
        %v6651 = vadd.f32 %v6602, %v6650
        %v6652 = vpop.f32.mrf.mxu0
        %v6653 = vadd.f32 %v6604, %v6652
        %6654 = vmatmul.bf16.gmra.mxu0 %v5898
        %v6655 = vpop.f32.mrf.mxu0
        %v6656 = vadd.f32 %v6607, %v6655
        %v6657 = vpop.f32.mrf.mxu0
        %v6658 = vadd.f32 %v6609, %v6657
        %6659 = vmatmul.bf16.gmra.mxu0 %v5907
        %v6660 = vpop.f32.mrf.mxu0
        %v6661 = vadd.f32 %v6612, %v6660
        %v6662 = vpop.f32.mrf.mxu0
        %v6663 = vadd.f32 %v6614, %v6662
        %6664 = vmatmul.bf16.gmra.mxu0 %v5916
        %v6665 = vpop.f32.mrf.mxu0
        %v6666 = vadd.f32 %v6617, %v6665
        %v6667 = vpop.f32.mrf.mxu0
        %v6668 = vadd.f32 %v6619, %v6667
        %6669 = vdwg.mxu0
        %6670 = vmatpush.bf16.msra.mxu0 %v6328
        %6671 = vmatpush.bf16.msra.mxu0 %v6327
        %6672 = vmatpush.bf16.msra.mxu0 %v6326
        %6673 = vmatpush.bf16.msra.mxu0 %v6325
        %6674 = vmatpush.bf16.msra.mxu0 %v6324
        %6675 = vmatpush.bf16.msra.mxu0 %v6323
        %6676 = vmatpush.bf16.msra.mxu0 %v6322
        %6677 = vmatpush.bf16.msra.mxu0 %v6321
        %6678 = vmatmul.bf16.gmra.mxu0 %v5854
        %v6679 = vpop.f32.mrf.mxu0
        %v6680 = vadd.f32 %v6631, %v6679
        %v6681 = vpop.f32.mrf.mxu0
        %v6682 = vadd.f32 %v6633, %v6681
        %6683 = vmatmul.bf16.gmra.mxu0 %v5863
        %v6684 = vpop.f32.mrf.mxu0
        %v6685 = vadd.f32 %v6636, %v6684
        %v6686 = vpop.f32.mrf.mxu0
        %v6687 = vadd.f32 %v6638, %v6686
        %6688 = vmatmul.bf16.gmra.mxu0 %v5872
        %v6689 = vpop.f32.mrf.mxu0
        %v6690 = vadd.f32 %v6641, %v6689
        %v6691 = vpop.f32.mrf.mxu0
        %v6692 = vadd.f32 %v6643, %v6691
        %6693 = vmatmul.bf16.gmra.mxu0 %v5881
        %v6694 = vpop.f32.mrf.mxu0
        %v6695 = vadd.f32 %v6646, %v6694
        %v6696 = vpop.f32.mrf.mxu0
        %v6697 = vadd.f32 %v6648, %v6696
        %6698 = vmatmul.bf16.gmra.mxu0 %v5890
        %v6699 = vpop.f32.mrf.mxu0
        %v6700 = vadd.f32 %v6651, %v6699
        %v6701 = vpop.f32.mrf.mxu0
        %v6702 = vadd.f32 %v6653, %v6701
        %6703 = vmatmul.bf16.gmra.mxu0 %v5899
        %v6704 = vpop.f32.mrf.mxu0
        %v6705 = vadd.f32 %v6656, %v6704
        %v6706 = vpop.f32.mrf.mxu0
        %v6707 = vadd.f32 %v6658, %v6706
        %6708 = vmatmul.bf16.gmra.mxu0 %v5908
        %v6709 = vpop.f32.mrf.mxu0
        %v6710 = vadd.f32 %v6661, %v6709
        %v6711 = vpop.f32.mrf.mxu0
        %v6712 = vadd.f32 %v6663, %v6711
        %6713 = vmatmul.bf16.gmra.mxu0 %v5917
        %v6714 = vpop.f32.mrf.mxu0
        %v6715 = vadd.f32 %v6666, %v6714
        %v6716 = vpop.f32.mrf.mxu0
        %v6717 = vadd.f32 %v6668, %v6716
        %6718 = vdwg.mxu0
        %6719 = vmatpush.bf16.msra.mxu0 %v6336
        %6720 = vmatpush.bf16.msra.mxu0 %v6335
        %6721 = vmatpush.bf16.msra.mxu0 %v6334
        %6722 = vmatpush.bf16.msra.mxu0 %v6333
        %6723 = vmatpush.bf16.msra.mxu0 %v6332
        %6724 = vmatpush.bf16.msra.mxu0 %v6331
        %6725 = vmatpush.bf16.msra.mxu0 %v6330
        %6726 = vmatpush.bf16.msra.mxu0 %v6329
        %6727 = vmatmul.bf16.gmra.mxu0 %v5855
        %v6728 = vpop.f32.mrf.mxu0
        %v6729 = vadd.f32 %v6680, %v6728
        %v6730 = vpop.f32.mrf.mxu0
        %v6731 = vadd.f32 %v6682, %v6730
        %6732 = vmatmul.bf16.gmra.mxu0 %v5864
        %v6733 = vpop.f32.mrf.mxu0
        %v6734 = vadd.f32 %v6685, %v6733
        %v6735 = vpop.f32.mrf.mxu0
        %v6736 = vadd.f32 %v6687, %v6735
        %6737 = vmatmul.bf16.gmra.mxu0 %v5873
        %v6738 = vpop.f32.mrf.mxu0
        %v6739 = vadd.f32 %v6690, %v6738
        %v6740 = vpop.f32.mrf.mxu0
        %v6741 = vadd.f32 %v6692, %v6740
        %6742 = vmatmul.bf16.gmra.mxu0 %v5882
        %v6743 = vpop.f32.mrf.mxu0
        %v6744 = vadd.f32 %v6695, %v6743
        %v6745 = vpop.f32.mrf.mxu0
        %v6746 = vadd.f32 %v6697, %v6745
        %6747 = vmatmul.bf16.gmra.mxu0 %v5891
        %v6748 = vpop.f32.mrf.mxu0
        %v6749 = vadd.f32 %v6700, %v6748
        %v6750 = vpop.f32.mrf.mxu0
        %v6751 = vadd.f32 %v6702, %v6750
        %6752 = vmatmul.bf16.gmra.mxu0 %v5900
        %v6753 = vpop.f32.mrf.mxu0
        %v6754 = vadd.f32 %v6705, %v6753
        %v6755 = vpop.f32.mrf.mxu0
        %v6756 = vadd.f32 %v6707, %v6755
        %6757 = vmatmul.bf16.gmra.mxu0 %v5909
        %v6758 = vpop.f32.mrf.mxu0
        %v6759 = vadd.f32 %v6710, %v6758
        %v6760 = vpop.f32.mrf.mxu0
        %v6761 = vadd.f32 %v6712, %v6760
        %6762 = vmatmul.bf16.gmra.mxu0 %v5918
        %v6763 = vpop.f32.mrf.mxu0
        %v6764 = vadd.f32 %v6715, %v6763
        %v6765 = vpop.f32.mrf.mxu0
        %v6766 = vadd.f32 %v6717, %v6765
        %6767 = vdwg.mxu0
        %6768 = vmatpush.bf16.msra.mxu0 %v6344
        %6769 = vmatpush.bf16.msra.mxu0 %v6343
        %6770 = vmatpush.bf16.msra.mxu0 %v6342
        %6771 = vmatpush.bf16.msra.mxu0 %v6341
        %6772 = vmatpush.bf16.msra.mxu0 %v6340
        %6773 = vmatpush.bf16.msra.mxu0 %v6339
        %6774 = vmatpush.bf16.msra.mxu0 %v6338
        %6775 = vmatpush.bf16.msra.mxu0 %v6337
        %6776 = vmatmul.bf16.gmra.mxu0 %v5856
        %v6777 = vpop.f32.mrf.mxu0
        %v6778 = vadd.f32 %v6729, %v6777
        %v6779 = vpop.f32.mrf.mxu0
        %v6780 = vadd.f32 %v6731, %v6779
        %6781 = vmatmul.bf16.gmra.mxu0 %v5865
        %v6782 = vpop.f32.mrf.mxu0
        %v6783 = vadd.f32 %v6734, %v6782
        %v6784 = vpop.f32.mrf.mxu0
        %v6785 = vadd.f32 %v6736, %v6784
        %6786 = vmatmul.bf16.gmra.mxu0 %v5874
        %v6787 = vpop.f32.mrf.mxu0
        %v6788 = vadd.f32 %v6739, %v6787
        %v6789 = vpop.f32.mrf.mxu0
        %v6790 = vadd.f32 %v6741, %v6789
        %6791 = vmatmul.bf16.gmra.mxu0 %v5883
        %v6792 = vpop.f32.mrf.mxu0
        %v6793 = vadd.f32 %v6744, %v6792
        %v6794 = vpop.f32.mrf.mxu0
        %v6795 = vadd.f32 %v6746, %v6794
        %6796 = vmatmul.bf16.gmra.mxu0 %v5892
        %v6797 = vpop.f32.mrf.mxu0
        %v6798 = vadd.f32 %v6749, %v6797
        %v6799 = vpop.f32.mrf.mxu0
        %v6800 = vadd.f32 %v6751, %v6799
        %6801 = vmatmul.bf16.gmra.mxu0 %v5901
        %v6802 = vpop.f32.mrf.mxu0
        %v6803 = vadd.f32 %v6754, %v6802
        %v6804 = vpop.f32.mrf.mxu0
        %v6805 = vadd.f32 %v6756, %v6804
        %6806 = vmatmul.bf16.gmra.mxu0 %v5910
        %v6807 = vpop.f32.mrf.mxu0
        %v6808 = vadd.f32 %v6759, %v6807
        %v6809 = vpop.f32.mrf.mxu0
        %v6810 = vadd.f32 %v6761, %v6809
        %6811 = vmatmul.bf16.gmra.mxu0 %v5919
        %v6812 = vpop.f32.mrf.mxu0
        %v6813 = vadd.f32 %v6764, %v6812
        %v6814 = vpop.f32.mrf.mxu0
        %v6815 = vadd.f32 %v6766, %v6814
        %6816 = vdwg.mxu0
        %6817 = vmatpush.bf16.msra.mxu0 %v6352
        %6818 = vmatpush.bf16.msra.mxu0 %v6351
        %6819 = vmatpush.bf16.msra.mxu0 %v6350
        %6820 = vmatpush.bf16.msra.mxu0 %v6349
        %6821 = vmatpush.bf16.msra.mxu0 %v6348
        %6822 = vmatpush.bf16.msra.mxu0 %v6347
        %6823 = vmatpush.bf16.msra.mxu0 %v6346
        %6824 = vmatpush.bf16.msra.mxu0 %v6345
        %6825 = vmatmul.bf16.gmra.mxu0 %v5857
        %v6826 = vpop.f32.mrf.mxu0
        %v6827 = vadd.f32 %v6778, %v6826
        %v6828 = vpop.f32.mrf.mxu0
        %v6829 = vadd.f32 %v6780, %v6828
        %6830 = vmatmul.bf16.gmra.mxu0 %v5866
        %v6831 = vpop.f32.mrf.mxu0
        %v6832 = vadd.f32 %v6783, %v6831
        %v6833 = vpop.f32.mrf.mxu0
        %v6834 = vadd.f32 %v6785, %v6833
        %6835 = vmatmul.bf16.gmra.mxu0 %v5875
        %v6836 = vpop.f32.mrf.mxu0
        %v6837 = vadd.f32 %v6788, %v6836
        %v6838 = vpop.f32.mrf.mxu0
        %v6839 = vadd.f32 %v6790, %v6838
        %6840 = vmatmul.bf16.gmra.mxu0 %v5884
        %v6841 = vpop.f32.mrf.mxu0
        %v6842 = vadd.f32 %v6793, %v6841
        %v6843 = vpop.f32.mrf.mxu0
        %v6844 = vadd.f32 %v6795, %v6843
        %6845 = vmatmul.bf16.gmra.mxu0 %v5893
        %v6846 = vpop.f32.mrf.mxu0
        %v6847 = vadd.f32 %v6798, %v6846
        %v6848 = vpop.f32.mrf.mxu0
        %v6849 = vadd.f32 %v6800, %v6848
        %6850 = vmatmul.bf16.gmra.mxu0 %v5902
        %v6851 = vpop.f32.mrf.mxu0
        %v6852 = vadd.f32 %v6803, %v6851
        %v6853 = vpop.f32.mrf.mxu0
        %v6854 = vadd.f32 %v6805, %v6853
        %6855 = vmatmul.bf16.gmra.mxu0 %v5911
        %v6856 = vpop.f32.mrf.mxu0
        %v6857 = vadd.f32 %v6808, %v6856
        %v6858 = vpop.f32.mrf.mxu0
        %v6859 = vadd.f32 %v6810, %v6858
        %6860 = vmatmul.bf16.gmra.mxu0 %v5920
        %v6861 = vpop.f32.mrf.mxu0
        %v6862 = vadd.f32 %v6813, %v6861
        %v6863 = vpop.f32.mrf.mxu0
        %v6864 = vadd.f32 %v6815, %v6863
        %6865 = vdwg.mxu0
        %v6866 = vadd.f32 %v6827, %v5605
        %v6867 = vadd.f32 %v6829, %v5606
        %v6868 = vadd.f32 %v6832, %v5607
        %v6869 = vadd.f32 %v6834, %v5608
        %v6870 = vadd.f32 %v6837, %v5609
        %v6871 = vadd.f32 %v6839, %v5610
        %v6872 = vadd.f32 %v6842, %v5611
        %v6873 = vadd.f32 %v6844, %v5612
        %v6874 = vadd.f32 %v6847, %v5613
        %v6875 = vadd.f32 %v6849, %v5614
        %v6876 = vadd.f32 %v6852, %v5615
        %v6877 = vadd.f32 %v6854, %v5616
        %v6878 = vadd.f32 %v6857, %v5617
        %v6879 = vadd.f32 %v6859, %v5618
        %v6880 = vadd.f32 %v6862, %v5619
        %v6881 = vadd.f32 %v6864, %v5620
        %v6882 = vmax.f32 %v6866, 0.0
        %v6883 = vmax.f32 %v6867, 0.0
        %v6884 = vmax.f32 %v6868, 0.0
        %v6885 = vmax.f32 %v6869, 0.0
        %v6886 = vmax.f32 %v6870, 0.0
        %v6887 = vmax.f32 %v6871, 0.0
        %v6888 = vmax.f32 %v6872, 0.0
        %v6889 = vmax.f32 %v6873, 0.0
        %v6890 = vmax.f32 %v6874, 0.0
        %v6891 = vmax.f32 %v6875, 0.0
        %v6892 = vmax.f32 %v6876, 0.0
        %v6893 = vmax.f32 %v6877, 0.0
        %v6894 = vmax.f32 %v6878, 0.0
        %v6895 = vmax.f32 %v6879, 0.0
        %v6896 = vmax.f32 %v6880, 0.0
        %v6897 = vmax.f32 %v6881, 0.0
        %6898 = vst [vmem:[%s248] sm:$0xff] %v6882
        %6899 = vst [vmem:[%s248 + $0x8] sm:$0xff] %v6883
        %6900 = vst [vmem:[%s248 + $0x10] sm:$0xff] %v6884
        %6901 = vst [vmem:[%s248 + $0x18] sm:$0xff] %v6885
        %6902 = vst [vmem:[%s248 + $0x20] sm:$0xff] %v6886
        %6903 = vst [vmem:[%s248 + $0x28] sm:$0xff] %v6887
        %6904 = vst [vmem:[%s248 + $0x30] sm:$0xff] %v6888
        %6905 = vst [vmem:[%s248 + $0x38] sm:$0xff] %v6889
        %6906 = vst [vmem:[%s248 + $0x40] sm:$0xff] %v6890
        %6907 = vst [vmem:[%s248 + $0x48] sm:$0xff] %v6891
        %6908 = vst [vmem:[%s248 + $0x50] sm:$0xff] %v6892
        %6909 = vst [vmem:[%s248 + $0x58] sm:$0xff] %v6893
        %6910 = vst [vmem:[%s248 + $0x60] sm:$0xff] %v6894
        %6911 = vst [vmem:[%s248 + $0x68] sm:$0xff] %v6895
        %6912 = vst [vmem:[%s248 + $0x70] sm:$0xff] %v6896
        %6913 = vst [vmem:[%s248 + $0x78] sm:$0xff] %v6897
        %s6914 = sand.u32 %s152, 1
        %s6915 = scalar_lea.sflag [#allocation6], %s6914
        %s6916 = sand.u32 %s152, 1
        %s6917 = smul.addr %s6916, 128
        %s6918 = scalar_lea.vmem [#allocation7], %s6917
        // Predicated region
        $region53: #{tpu_custom_call.1} parent=39 // pred_check
          %p6919 = pneg %p162
        $region54: #{tpu_custom_call.1} parent=39 // pred_check_branch
          %6921 = sbr.rel (%p6919) target = $region56
        $region55: #{tpu_custom_call.1} parent=39 // pred_region
          %s6922 = smul.u32 8, %s25
          %6924 = vsyncadd %s6915, 0
          %s6925 = smul.addr %s6922, 2
          %s6926 = smul.addr %s24, 32
          %s6927 = sadd.s32 %s6925, %s6926
          %s6928 = smul.addr %s6927, 8
          %s6929 = scalar_lea.hbm %s5, %s6928
          %s6930 = sshll.u32 %s6918, 4
          %s6931 = int_to_ptr.vmem [resolvable:$true] %s6930
          %s6932 = sshll.u32 %s6929, 4
          %s6933 = int_to_ptr.hbm [resolvable:$true] %s6932
          %6938 = dma.vmem_to_hbm [thread:$0]  %s6931, 2048, %s6933, %s6915, 128, 128, 8
        $region56: #{tpu_custom_call.1} parent=39 // pred_fallthru
          _
      $region40: #{tpu_custom_call.1} parent=5 // pred_fallthru
        _
      %p6939 = scmp.le.s32.totalorder 2, %s15
      // Predicated region
      $region57: #{tpu_custom_call.1} parent=5 // pred_check
        %p6940 = pneg %p6939
      $region58: #{tpu_custom_call.1} parent=5 // pred_check_branch
        %6942 = sbr.rel (%p6940) target = $region60
      $region59: #{tpu_custom_call.1} parent=5 // pred_region
        %s6943 = ssub.s32 %s15, 2
        // Predicated region
        $region61: #{tpu_custom_call.1} parent=59 // pred_check
          %p6944 = pneg %p168
        $region62: #{tpu_custom_call.1} parent=59 // pred_check_branch
          %6946 = sbr.rel (%p6944) target = $region64
        $region63: #{tpu_custom_call.1} parent=59 // pred_region
          %s6947 = sand.u32 %s153, 1
          %s6948 = scalar_lea.sflag [#allocation6], %s6947
          %s6949 = sand.u32 %s153, 1
          %s6950 = smul.addr %s6949, 128
          %s6951 = scalar_lea.vmem [#allocation7], %s6950
          %6953 = dma.done %s6948, 2048
        $region64: #{tpu_custom_call.1} parent=59 // pred_fallthru
          _
      $region60: #{tpu_custom_call.1} parent=5 // pred_fallthru
        _
    $region6: #{tpu_custom_call.1} parent=1 // loop_footer
      %s19 = sadd.s32 1, %s15
    $region7: #{tpu_custom_call.1} parent=1 // loop_footer_branch
      %14 = sbr.rel target = $region3
    $region8: #{tpu_custom_call.1} parent=1 // loop_exit
      _
    %6954 = vsyncpa [#allocation5], 1
    %s6955 = scalar_lea.sflag [#allocation5], 1
    %6956 = vsyncpa %s6955, 1
    %6957 = vsyncpa [#allocation6], 1
    %s6958 = scalar_lea.sflag [#allocation6], 1
    %6959 = vsyncpa %s6958, 1

</llo_original>
